<compile_context>
chip_gen: v7x
topology: tpu7x:2x2x1
jax: 0.10.0
libtpu: 0.0.40
codegen_flags: <defaults>
</compile_context>

<pallas_src>
import functools

import jax
import jax.numpy as jnp
from jax.experimental import pallas as pl
from jax.experimental.pallas import tpu as pltpu

_LANE = 128


def _round_up(x, m):
    return ((x + m - 1) // m) * m


def _sage_layer_kernel(a_ref, xn_ref, wl_ref, wr_ref, b_ref, out_ref, acc_ref,
                       *, activation, valid_cols, valid_rows, tile_m, tile_k):
    """Grid = (rows/tile_m, N/tile_k).  Accumulate A-tile @ X-slice, finalize
    (projection + bias + activation) on the last reduction step."""
    i = pl.program_id(0)
    k = pl.program_id(1)

    @pl.when(k == 0)
    def _():
        acc_ref[...] = jnp.zeros_like(acc_ref)

    # Mean-aggregation partial sum: [tm, tk]bf16 @ [tk, F]bf16 -> f32.
    # xn is VMEM-resident; slice the k-th neighbor block out of it (free view).
    xk = xn_ref[pl.ds(pl.multiple_of(k * tile_k, tile_k), tile_k), :]
    acc_ref[...] += jnp.dot(a_ref[...], xk, preferred_element_type=jnp.float32)

    @pl.when(k == pl.num_programs(1) - 1)
    def _():
        agg = acc_ref[...].astype(jnp.bfloat16)                       # [tm, F]
        # Self features: same resident buffer, row block i.
        xs = xn_ref[pl.ds(pl.multiple_of(i * tile_m, tile_m), tile_m), :]
        z = (jnp.dot(agg, wl_ref[...], preferred_element_type=jnp.float32)
             + jnp.dot(xs, wr_ref[...], preferred_element_type=jnp.float32)
             + b_ref[...])
        if activation == "relu":
            # Zero the padded rows so downstream consumers never see garbage.
            row = jax.lax.broadcasted_iota(jnp.int32, z.shape, 0) + i * tile_m
            z = jnp.maximum(z, 0.0)
            out_ref[...] = jnp.where(row < valid_rows, z, 0.0).astype(out_ref.dtype)
        else:  # log_softmax over the valid (un-padded) class columns
            col = jax.lax.broadcasted_iota(jnp.int32, z.shape, 1)
            valid = col < valid_cols
            zm = jnp.where(valid, z, -1e30)
            m = jnp.max(zm, axis=1, keepdims=True)
            s = zm - m
            lse = jnp.log(jnp.sum(jnp.exp(s), axis=1, keepdims=True))
            out_ref[...] = jnp.where(valid, s - lse, 0.0).astype(out_ref.dtype)


def _sage_layer(a, xn, wl, wr, b, *, activation, valid_cols, valid_rows,
                out_dtype, tile_m, tile_k):
    """One SAGEConv layer (+ ReLU or log_softmax) as a tiled pallas_call."""
    n_pad = a.shape[0]
    f = xn.shape[1]
    fout = wl.shape[1]
    grid = (n_pad // tile_m, n_pad // tile_k)

    kernel = functools.partial(_sage_layer_kernel, activation=activation,
                               valid_cols=valid_cols, valid_rows=valid_rows,
                               tile_m=tile_m, tile_k=tile_k)

    out_itemsize = jnp.dtype(out_dtype).itemsize
    flops = 2 * n_pad * n_pad * f + 2 * 2 * n_pad * f * fout
    transcendentals = 2 * n_pad * fout if activation == "log_softmax" else 0
    # xn is resident: fetched once (constant index_map), not per row tile.
    bytes_accessed = (a.size * 2 + xn.size * 2 + wl.size * 2 + wr.size * 2
                      + b.size * 4 + n_pad * fout * out_itemsize)

    # VMEM footprint (double-buffer the streamed / constant blocks, plus the
    # f32 accumulator); clamp the limit to [32 MiB, 48 MiB] (v7x-safe).
    footprint = (2 * tile_m * tile_k * 2          # A tiles (bf16, 2 buffers)
                 + 2 * n_pad * f * 2              # resident xn (bf16)
                 + tile_m * f * 4                 # accumulator (f32)
                 + 2 * 2 * f * fout * 2           # W_l, W_r (bf16)
                 + 2 * fout * 4                   # bias
                 + 2 * tile_m * fout * out_itemsize)
    vmem_limit = int(min(max(2 * footprint, 32 * 1024 * 1024),
                         48 * 1024 * 1024))

    # TODO(synk): if the A DMA is still exposed at large N, sweep
    # pipeline_mode=pl.Buffered(3) on the A-tile BlockSpec.
    return pl.pallas_call(
        kernel,
        out_shape=jax.ShapeDtypeStruct((n_pad, fout), out_dtype),
        grid_spec=pltpu.PrefetchScalarGridSpec(
            num_scalar_prefetch=0,
            grid=grid,
            in_specs=[
                pl.BlockSpec((tile_m, tile_k), lambda i, k: (i, k)),   # A tile
                pl.BlockSpec((n_pad, f), lambda i, k: (0, 0)),         # X resident
                pl.BlockSpec((f, fout), lambda i, k: (0, 0)),          # W_l
                pl.BlockSpec((f, fout), lambda i, k: (0, 0)),          # W_r
                pl.BlockSpec((1, fout), lambda i, k: (0, 0)),          # bias
            ],
            out_specs=pl.BlockSpec((tile_m, fout), lambda i, k: (i, 0)),
            scratch_shapes=[pltpu.VMEM((tile_m, f), jnp.float32)],
        ),
        compiler_params=pltpu.CompilerParams(
            dimension_semantics=("parallel", "arbitrary"),
            vmem_limit_bytes=vmem_limit),
        cost_estimate=pl.CostEstimate(flops=flops,
                                      transcendentals=transcendentals,
                                      bytes_accessed=bytes_accessed),
    )(a, xn, wl, wr, b)


def _pad2(x, rows, cols, dtype):
    return jnp.zeros((rows, cols), dtype).at[:x.shape[0], :x.shape[1]].set(
        x.astype(dtype))


def _choose_tiles(n, tm_req, tk_req):
    """Shrink requested (power-of-two) tiles for small graphs and pick n_pad
    so both tile sizes divide it."""
    n_min = _round_up(n, _LANE)
    tm, tk = tm_req, tk_req
    while tm > n_min and tm > _LANE:
        tm //= 2
    while tk > n_min and tk > _LANE:
        tk //= 2
    n_pad = _round_up(n, max(tm, tk))
    return tm, tk, n_pad


def sage_forward(x, edge_index, params, *, tile_m=512, tile_k=2048):
    """x: [N, F] f32; edge_index: [2, E] int32 (row 0 = src, row 1 = dst)."""
    n, f_in = x.shape
    hidden = params["w1l"].shape[1]
    classes = params["w2l"].shape[1]

    # Dense normalized mean-aggregation matrix (wrapper glue).
    # TODO(synk): replace with CSR / padded-neighbor-list gather (scalar
    # prefetch) to kill the O(N^2) HBM stream; int8/fp8 A on v6e/v7x.
    src, dst = edge_index[0], edge_index[1]
    adj = jnp.zeros((n, n), jnp.float32).at[dst, src].add(1.0)
    deg = jnp.sum(adj, axis=1, keepdims=True)
    a_norm = adj / jnp.maximum(deg, 1.0)

    # Pad node count to the tile multiple and feature dims to 128 lanes.
    tile_m, tile_k, n_pad = _choose_tiles(n, tile_m, tile_k)
    f_pad = _round_up(f_in, _LANE)
    h_pad = _round_up(hidden, _LANE)
    c_pad = _round_up(classes, _LANE)

    a_p = _pad2(a_norm, n_pad, n_pad, jnp.bfloat16)
    x_p = _pad2(x, n_pad, f_pad, jnp.bfloat16)

    w1l = _pad2(params["w1l"], f_pad, h_pad, jnp.bfloat16)
    w1r = _pad2(params["w1r"], f_pad, h_pad, jnp.bfloat16)
    b1 = _pad2(params["b1"], 1, h_pad, jnp.float32)
    w2l = _pad2(params["w2l"], h_pad, c_pad, jnp.bfloat16)
    w2r = _pad2(params["w2r"], h_pad, c_pad, jnp.bfloat16)
    b2 = _pad2(params["b2"], 1, c_pad, jnp.float32)

    # Layer 1: SAGEConv -> ReLU.  Dropout(training=False) is the identity.
    # TODO(synk): training-mode dropout (pltpu.prng_seed/prng_random_bits) not applied.
    h = _sage_layer(a_p, x_p, w1l, w1r, b1, activation="relu",
                    valid_cols=hidden, valid_rows=n, out_dtype=jnp.bfloat16,
                    tile_m=tile_m, tile_k=tile_k)

    # Layer 2: SAGEConv -> log_softmax over classes.
    out = _sage_layer(a_p, h, w2l, w2r, b2, activation="log_softmax",
                      valid_cols=classes, valid_rows=n, out_dtype=jnp.float32,
                      tile_m=tile_m, tile_k=tile_k)
    return out[:n, :classes]


def init_params(key, features, hidden, classes):
    ks = jax.random.split(key, 6)
    s1 = 1.0 / jnp.sqrt(features)
    s2 = 1.0 / jnp.sqrt(hidden)
    return {
        # weights stored [in, out]
        "w1l": jax.random.uniform(ks[0], (features, hidden), jnp.float32, -s1, s1),
        "w1r": jax.random.uniform(ks[1], (features, hidden), jnp.float32, -s1, s1),
        "b1": jax.random.uniform(ks[2], (1, hidden), jnp.float32, -s1, s1),
        "w2l": jax.random.uniform(ks[3], (hidden, classes), jnp.float32, -s2, s2),
        "w2r": jax.random.uniform(ks[4], (hidden, classes), jnp.float32, -s2, s2),
        "b2": jax.random.uniform(ks[5], (1, classes), jnp.float32, -s2, s2),
    }


def _reference(x, edge_index, params):
    """Pure-JAX reference with matched bf16 rounding of the MXU inputs."""
    n = x.shape[0]
    src, dst = edge_index[0], edge_index[1]
    adj = jnp.zeros((n, n), jnp.float32).at[dst, src].add(1.0)
    deg = jnp.sum(adj, axis=1, keepdims=True)
    a = (adj / jnp.maximum(deg, 1.0)).astype(jnp.bfloat16)
    xb = x.astype(jnp.bfloat16)
    w1l, w1r = (params["w1l"].astype(jnp.bfloat16),
                params["w1r"].astype(jnp.bfloat16))
    w2l, w2r = (params["w2l"].astype(jnp.bfloat16),
                params["w2r"].astype(jnp.bfloat16))

    agg1 = jnp.dot(a, xb, preferred_element_type=jnp.float32).astype(jnp.bfloat16)
    h = (jnp.dot(agg1, w1l, preferred_element_type=jnp.float32)
         + jnp.dot(xb, w1r, preferred_element_type=jnp.float32) + params["b1"])
    h = jnp.maximum(h, 0.0).astype(jnp.bfloat16)
    agg2 = jnp.dot(a, h, preferred_element_type=jnp.float32).astype(jnp.bfloat16)
    z = (jnp.dot(agg2, w2l, preferred_element_type=jnp.float32)
         + jnp.dot(h, w2r, preferred_element_type=jnp.float32) + params["b2"])
    return jax.nn.log_softmax(z, axis=1)


if __name__ == "__main__":
    key = jax.random.PRNGKey(0)
    k_x, k_e, k_p = jax.random.split(key, 3)

    # Small but multi-tile: N=512 with 256-wide tiles -> 2x2 grid per layer,
    # exercising the accumulator init/step/finalize and both row tiles.
    N, F_IN, HIDDEN, CLASSES, E = 512, 8, 32, 4, 2048

    x = jax.random.normal(k_x, (N, F_IN), jnp.float32)
    edge_index = jax.random.randint(k_e, (2, E), 0, N, jnp.int32)
    params = init_params(k_p, F_IN, HIDDEN, CLASSES)

    fwd = jax.jit(lambda x_, e_, p_: sage_forward(x_, e_, p_,
                                                  tile_m=256, tile_k=256))
    out = fwd(x, edge_index, params)
    jax.block_until_ready(out)

    assert out.shape == (N, CLASSES)
    assert bool(jnp.all(jnp.isfinite(out)))
    # log-softmax rows exponentiate-sum to 1
    assert jnp.allclose(jnp.sum(jnp.exp(out), axis=1), 1.0, atol=1e-4)
    # match the pure-JAX reference (bf16 MXU inputs, f32 accumulation)
    ref = _reference(x, edge_index, params)
    assert jnp.allclose(out, ref, atol=3e-2), float(jnp.max(jnp.abs(out - ref)))

    print("KERNEL_OK")
</pallas_src>

<mosaic_0001>
module attributes {stable_mosaic.version = 11 : i64} {
  func.func private @main(%arg0: i32) attributes {dimension_semantics = [#tpu.dimension_semantics<core_parallel>], iteration_bounds = array<i64: 2>, tpu.core_type = #tpu.core_type<sc_scalar_subcore>, window_params = []} {
    return
  }
}

module attributes {stable_mosaic.version = 11 : i64} {
  func.func private @main(%arg0: i32) attributes {dimension_semantics = [#tpu.dimension_semantics<core_parallel>], iteration_bounds = array<i64: 2>, tpu.core_type = #tpu.core_type<sc_scalar_subcore>, window_params = []} {
    return
  }
}

module attributes {stable_mosaic.version = 11 : i64} {
  func.func @_sage_layer_kernel(%arg0: i32, %arg1: i32, %arg2: memref<256x256xbf16, #tpu.memory_space<vmem>>, %arg3: memref<512x128xbf16, #tpu.memory_space<vmem>>, %arg4: memref<128x128xbf16, #tpu.memory_space<vmem>>, %arg5: memref<128x128xbf16, #tpu.memory_space<vmem>>, %arg6: memref<1x128xf32, #tpu.memory_space<vmem>>, %arg7: memref<256x128xbf16, #tpu.memory_space<vmem>>, %arg8: memref<256x128xf32, #tpu.memory_space<vmem>>) attributes {dimension_semantics = [#tpu.dimension_semantics<parallel>, #tpu.dimension_semantics<arbitrary>], iteration_bounds = array<i64: 2, 2>, scalar_prefetch = 0 : i64, scratch_operands = 1 : i64, tpu.core_type = #tpu.core_type<tc>, window_params = [{transform_indices = @transform_0, window_bounds = array<i64: 256, 256>}, {pipeline_mode = #tpu.pipeline_mode<synchronous>, transform_indices = @transform_1, window_bounds = array<i64: 512, 128>}, {pipeline_mode = #tpu.pipeline_mode<synchronous>, transform_indices = @transform_2, window_bounds = array<i64: 128, 128>}, {pipeline_mode = #tpu.pipeline_mode<synchronous>, transform_indices = @transform_3, window_bounds = array<i64: 128, 128>}, {pipeline_mode = #tpu.pipeline_mode<synchronous>, transform_indices = @transform_4, window_bounds = array<i64: 1, 128>}, {transform_indices = @transform_5, window_bounds = array<i64: 256, 128>}]} {
    %c0_i32 = arith.constant 0 : i32
    %0 = arith.cmpi eq, %arg1, %c0_i32 : i32
    %1 = arith.extui %0 : i1 to i32
    %c0_i32_0 = arith.constant 0 : i32
    %2 = arith.cmpi ne, %1, %c0_i32_0 : i32
    scf.if %2 {
      %cst_8 = arith.constant 0.000000e+00 : f32
      %15 = vector.broadcast %cst_8 : f32 to vector<256x128xf32>
      %c0_9 = arith.constant 0 : index
      %c0_10 = arith.constant 0 : index
      %16 = vector.load %arg8[%c0_9, %c0_10] : memref<256x128xf32, #tpu.memory_space<vmem>>, vector<256x128xf32>
      tpu.vector_store %arg8[%c0_9, %c0_10], %15 {strides = array<i32>} : memref<256x128xf32, #tpu.memory_space<vmem>>, vector<256x128xf32>,
    } else {
    }
    %c256_i32 = arith.constant 256 : i32
    %3 = arith.muli %arg1, %c256_i32 : i32
    %4 = tpu.assume_multiple %3, 256 : i32
    %5 = arith.index_cast %4 : i32 to index
    %c0 = arith.constant 0 : index
    %6 = vector.load %arg3[%5, %c0] : memref<512x128xbf16, #tpu.memory_space<vmem>>, vector<256x128xbf16>
    %c0_1 = arith.constant 0 : index
    %c0_2 = arith.constant 0 : index
    %7 = vector.load %arg8[%c0_1, %c0_2] : memref<256x128xf32, #tpu.memory_space<vmem>>, vector<256x128xf32>
    %c0_3 = arith.constant 0 : index
    %c0_4 = arith.constant 0 : index
    %8 = vector.load %arg2[%c0_3, %c0_4] : memref<256x256xbf16, #tpu.memory_space<vmem>>, vector<256x256xbf16>
    %cst = arith.constant dense<0.000000e+00> : vector<256x128xf32>
    %9 = tpu.matmul %8, %6, %cst {dimension_numbers = #tpu.dot_dimension_numbers<[1], [0], [0], [1], [0, 0, 1, 1], [], []>} : vector<256x256xbf16>, vector<256x128xbf16>, vector<256x128xf32> -> vector<256x128xf32>
    %10 = arith.addf %7, %9 : vector<256x128xf32>
    %c0_5 = arith.constant 0 : index
    %c0_6 = arith.constant 0 : index
    %11 = vector.load %arg8[%c0_5, %c0_6] : memref<256x128xf32, #tpu.memory_space<vmem>>, vector<256x128xf32>
    tpu.vector_store %arg8[%c0_5, %c0_6], %10 {strides = array<i32>} : memref<256x128xf32, #tpu.memory_space<vmem>>, vector<256x128xf32>,
    %c1_i32 = arith.constant 1 : i32
    %12 = arith.cmpi eq, %arg1, %c1_i32 : i32
    %13 = arith.extui %12 : i1 to i32
    %c0_i32_7 = arith.constant 0 : i32
    %14 = arith.cmpi ne, %13, %c0_i32_7 : i32
    scf.if %14 {
      %c0_8 = arith.constant 0 : index
      %c0_9 = arith.constant 0 : index
      %15 = vector.load %arg8[%c0_8, %c0_9] : memref<256x128xf32, #tpu.memory_space<vmem>>, vector<256x128xf32>
      %16 = arith.truncf %15 : vector<256x128xf32> to vector<256x128xbf16>
      %c256_i32_10 = arith.constant 256 : i32
      %17 = arith.muli %arg0, %c256_i32_10 : i32
      %18 = tpu.assume_multiple %17, 256 : i32
      %19 = arith.index_cast %18 : i32 to index
      %c0_11 = arith.constant 0 : index
      %20 = vector.load %arg3[%19, %c0_11] : memref<512x128xbf16, #tpu.memory_space<vmem>>, vector<256x128xbf16>
      %c0_12 = arith.constant 0 : index
      %c0_13 = arith.constant 0 : index
      %21 = vector.load %arg4[%c0_12, %c0_13] : memref<128x128xbf16, #tpu.memory_space<vmem>>, vector<128x128xbf16>
      %cst_14 = arith.constant dense<0.000000e+00> : vector<256x128xf32>
      %22 = tpu.matmul %16, %21, %cst_14 {dimension_numbers = #tpu.dot_dimension_numbers<[1], [0], [0], [1], [0, 0, 1, 1], [], []>} : vector<256x128xbf16>, vector<128x128xbf16>, vector<256x128xf32> -> vector<256x128xf32>
      %c0_15 = arith.constant 0 : index
      %c0_16 = arith.constant 0 : index
      %23 = vector.load %arg5[%c0_15, %c0_16] : memref<128x128xbf16, #tpu.memory_space<vmem>>, vector<128x128xbf16>
      %cst_17 = arith.constant dense<0.000000e+00> : vector<256x128xf32>
      %24 = tpu.matmul %20, %23, %cst_17 {dimension_numbers = #tpu.dot_dimension_numbers<[1], [0], [0], [1], [0, 0, 1, 1], [], []>} : vector<256x128xbf16>, vector<128x128xbf16>, vector<256x128xf32> -> vector<256x128xf32>
      %25 = arith.addf %22, %24 : vector<256x128xf32>
      %c0_18 = arith.constant 0 : index
      %c0_19 = arith.constant 0 : index
      %26 = vector.load %arg6[%c0_18, %c0_19] : memref<1x128xf32, #tpu.memory_space<vmem>>, vector<1x128xf32>
      %27 = vector.broadcast %26 : vector<1x128xf32> to vector<256x128xf32>
      %28 = arith.addf %25, %27 : vector<256x128xf32>
      %29 = tpu.iota {dimensions = array<i32: 0>} : vector<256x128xi32>
      %c256_i32_20 = arith.constant 256 : i32
      %30 = arith.muli %arg0, %c256_i32_20 : i32
      %31 = vector.broadcast %30 : i32 to vector<256x128xi32>
      %32 = arith.addi %29, %31 : vector<256x128xi32>
      %cst_21 = arith.constant 0.000000e+00 : f32
      %33 = vector.broadcast %cst_21 : f32 to vector<256x128xf32>
      %34 = arith.maximumf %28, %33 : vector<256x128xf32>
      %c512_i32 = arith.constant 512 : i32
      %35 = vector.broadcast %c512_i32 : i32 to vector<256x128xi32>
      %36 = arith.cmpi slt, %32, %35 : vector<256x128xi32>
      %cst_22 = arith.constant 0.000000e+00 : f32
      %37 = vector.broadcast %cst_22 : f32 to vector<256x128xf32>
      %38 = arith.select %36, %34, %37 : vector<256x128xi1>, vector<256x128xf32>
      %39 = arith.truncf %38 : vector<256x128xf32> to vector<256x128xbf16>
      %c0_23 = arith.constant 0 : index
      %c0_24 = arith.constant 0 : index
      %40 = vector.load %arg7[%c0_23, %c0_24] : memref<256x128xbf16, #tpu.memory_space<vmem>>, vector<256x128xbf16>
      tpu.vector_store %arg7[%c0_23, %c0_24], %39 {strides = array<i32>} : memref<256x128xbf16, #tpu.memory_space<vmem>>, vector<256x128xbf16>,
    } else {
    }
    return
  }
  func.func @transform_0(%arg0: i32, %arg1: i32) -> (i32, i32) {
    %c0_i32 = arith.constant 0 : i32
    return %arg0, %arg1 : i32, i32
  }
  func.func @transform_1(%arg0: i32, %arg1: i32) -> (i32, i32) {
    %c0_i32 = arith.constant 0 : i32
    %c0_i32_0 = arith.constant 0 : i32
    %c0_i32_1 = arith.constant 0 : i32
    return %c0_i32, %c0_i32_0 : i32, i32
  }
  func.func @transform_2(%arg0: i32, %arg1: i32) -> (i32, i32) {
    %c0_i32 = arith.constant 0 : i32
    %c0_i32_0 = arith.constant 0 : i32
    %c0_i32_1 = arith.constant 0 : i32
    return %c0_i32, %c0_i32_0 : i32, i32
  }
  func.func @transform_3(%arg0: i32, %arg1: i32) -> (i32, i32) {
    %c0_i32 = arith.constant 0 : i32
    %c0_i32_0 = arith.constant 0 : i32
    %c0_i32_1 = arith.constant 0 : i32
    return %c0_i32, %c0_i32_0 : i32, i32
  }
  func.func @transform_4(%arg0: i32, %arg1: i32) -> (i32, i32) {
    %c0_i32 = arith.constant 0 : i32
    %c0_i32_0 = arith.constant 0 : i32
    %c0_i32_1 = arith.constant 0 : i32
    return %c0_i32, %c0_i32_0 : i32, i32
  }
  func.func @transform_5(%arg0: i32, %arg1: i32) -> (i32, i32) {
    %c0_i32 = arith.constant 0 : i32
    %c0_i32_0 = arith.constant 0 : i32
    return %arg0, %c0_i32 : i32, i32
  }
}

module attributes {stable_mosaic.version = 11 : i64} {
  func.func @_sage_layer_kernel(%arg0: i32, %arg1: i32, %arg2: memref<256x256xbf16, #tpu.memory_space<vmem>>, %arg3: memref<512x128xbf16, #tpu.memory_space<vmem>>, %arg4: memref<128x128xbf16, #tpu.memory_space<vmem>>, %arg5: memref<128x128xbf16, #tpu.memory_space<vmem>>, %arg6: memref<1x128xf32, #tpu.memory_space<vmem>>, %arg7: memref<256x128xf32, #tpu.memory_space<vmem>>, %arg8: memref<256x128xf32, #tpu.memory_space<vmem>>) attributes {dimension_semantics = [#tpu.dimension_semantics<parallel>, #tpu.dimension_semantics<arbitrary>], iteration_bounds = array<i64: 2, 2>, scalar_prefetch = 0 : i64, scratch_operands = 1 : i64, tpu.core_type = #tpu.core_type<tc>, window_params = [{transform_indices = @transform_0, window_bounds = array<i64: 256, 256>}, {pipeline_mode = #tpu.pipeline_mode<synchronous>, transform_indices = @transform_1, window_bounds = array<i64: 512, 128>}, {pipeline_mode = #tpu.pipeline_mode<synchronous>, transform_indices = @transform_2, window_bounds = array<i64: 128, 128>}, {pipeline_mode = #tpu.pipeline_mode<synchronous>, transform_indices = @transform_3, window_bounds = array<i64: 128, 128>}, {pipeline_mode = #tpu.pipeline_mode<synchronous>, transform_indices = @transform_4, window_bounds = array<i64: 1, 128>}, {transform_indices = @transform_5, window_bounds = array<i64: 256, 128>}]} {
    %c0_i32 = arith.constant 0 : i32
    %0 = arith.cmpi eq, %arg1, %c0_i32 : i32
    %1 = arith.extui %0 : i1 to i32
    %c0_i32_0 = arith.constant 0 : i32
    %2 = arith.cmpi ne, %1, %c0_i32_0 : i32
    scf.if %2 {
      %cst_8 = arith.constant 0.000000e+00 : f32
      %15 = vector.broadcast %cst_8 : f32 to vector<256x128xf32>
      %c0_9 = arith.constant 0 : index
      %c0_10 = arith.constant 0 : index
      %16 = vector.load %arg8[%c0_9, %c0_10] : memref<256x128xf32, #tpu.memory_space<vmem>>, vector<256x128xf32>
      tpu.vector_store %arg8[%c0_9, %c0_10], %15 {strides = array<i32>} : memref<256x128xf32, #tpu.memory_space<vmem>>, vector<256x128xf32>,
    } else {
    }
    %c256_i32 = arith.constant 256 : i32
    %3 = arith.muli %arg1, %c256_i32 : i32
    %4 = tpu.assume_multiple %3, 256 : i32
    %5 = arith.index_cast %4 : i32 to index
    %c0 = arith.constant 0 : index
    %6 = vector.load %arg3[%5, %c0] : memref<512x128xbf16, #tpu.memory_space<vmem>>, vector<256x128xbf16>
    %c0_1 = arith.constant 0 : index
    %c0_2 = arith.constant 0 : index
    %7 = vector.load %arg8[%c0_1, %c0_2] : memref<256x128xf32, #tpu.memory_space<vmem>>, vector<256x128xf32>
    %c0_3 = arith.constant 0 : index
    %c0_4 = arith.constant 0 : index
    %8 = vector.load %arg2[%c0_3, %c0_4] : memref<256x256xbf16, #tpu.memory_space<vmem>>, vector<256x256xbf16>
    %cst = arith.constant dense<0.000000e+00> : vector<256x128xf32>
    %9 = tpu.matmul %8, %6, %cst {dimension_numbers = #tpu.dot_dimension_numbers<[1], [0], [0], [1], [0, 0, 1, 1], [], []>} : vector<256x256xbf16>, vector<256x128xbf16>, vector<256x128xf32> -> vector<256x128xf32>
    %10 = arith.addf %7, %9 : vector<256x128xf32>
    %c0_5 = arith.constant 0 : index
    %c0_6 = arith.constant 0 : index
    %11 = vector.load %arg8[%c0_5, %c0_6] : memref<256x128xf32, #tpu.memory_space<vmem>>, vector<256x128xf32>
    tpu.vector_store %arg8[%c0_5, %c0_6], %10 {strides = array<i32>} : memref<256x128xf32, #tpu.memory_space<vmem>>, vector<256x128xf32>,
    %c1_i32 = arith.constant 1 : i32
    %12 = arith.cmpi eq, %arg1, %c1_i32 : i32
    %13 = arith.extui %12 : i1 to i32
    %c0_i32_7 = arith.constant 0 : i32
    %14 = arith.cmpi ne, %13, %c0_i32_7 : i32
    scf.if %14 {
      %c0_8 = arith.constant 0 : index
      %c0_9 = arith.constant 0 : index
      %15 = vector.load %arg8[%c0_8, %c0_9] : memref<256x128xf32, #tpu.memory_space<vmem>>, vector<256x128xf32>
      %16 = arith.truncf %15 : vector<256x128xf32> to vector<256x128xbf16>
      %c256_i32_10 = arith.constant 256 : i32
      %17 = arith.muli %arg0, %c256_i32_10 : i32
      %18 = tpu.assume_multiple %17, 256 : i32
      %19 = arith.index_cast %18 : i32 to index
      %c0_11 = arith.constant 0 : index
      %20 = vector.load %arg3[%19, %c0_11] : memref<512x128xbf16, #tpu.memory_space<vmem>>, vector<256x128xbf16>
      %c0_12 = arith.constant 0 : index
      %c0_13 = arith.constant 0 : index
      %21 = vector.load %arg4[%c0_12, %c0_13] : memref<128x128xbf16, #tpu.memory_space<vmem>>, vector<128x128xbf16>
      %cst_14 = arith.constant dense<0.000000e+00> : vector<256x128xf32>
      %22 = tpu.matmul %16, %21, %cst_14 {dimension_numbers = #tpu.dot_dimension_numbers<[1], [0], [0], [1], [0, 0, 1, 1], [], []>} : vector<256x128xbf16>, vector<128x128xbf16>, vector<256x128xf32> -> vector<256x128xf32>
      %c0_15 = arith.constant 0 : index
      %c0_16 = arith.constant 0 : index
      %23 = vector.load %arg5[%c0_15, %c0_16] : memref<128x128xbf16, #tpu.memory_space<vmem>>, vector<128x128xbf16>
      %cst_17 = arith.constant dense<0.000000e+00> : vector<256x128xf32>
      %24 = tpu.matmul %20, %23, %cst_17 {dimension_numbers = #tpu.dot_dimension_numbers<[1], [0], [0], [1], [0, 0, 1, 1], [], []>} : vector<256x128xbf16>, vector<128x128xbf16>, vector<256x128xf32> -> vector<256x128xf32>
      %25 = arith.addf %22, %24 : vector<256x128xf32>
      %c0_18 = arith.constant 0 : index
      %c0_19 = arith.constant 0 : index
      %26 = vector.load %arg6[%c0_18, %c0_19] : memref<1x128xf32, #tpu.memory_space<vmem>>, vector<1x128xf32>
      %27 = vector.broadcast %26 : vector<1x128xf32> to vector<256x128xf32>
      %28 = arith.addf %25, %27 : vector<256x128xf32>
      %29 = tpu.iota {dimensions = array<i32: 1>} : vector<256x128xi32>
      %c4_i32 = arith.constant 4 : i32
      %30 = vector.broadcast %c4_i32 : i32 to vector<256x128xi32>
      %31 = arith.cmpi slt, %29, %30 : vector<256x128xi32>
      %cst_20 = arith.constant -1.000000e+30 : f32
      %32 = vector.broadcast %cst_20 : f32 to vector<256x128xf32>
      %33 = arith.select %31, %28, %32 : vector<256x128xi1>, vector<256x128xf32>
      %cst_21 = arith.constant dense<0xFF800000> : vector<256xf32>
      %34 = vector.multi_reduction <maximumf>, %33, %cst_21 [1] : vector<256x128xf32> to vector<256xf32>
      %35 = vector.shape_cast %34 : vector<256xf32> to vector<256x1xf32>
      %36 = vector.broadcast %35 : vector<256x1xf32> to vector<256x128xf32>
      %37 = arith.subf %33, %36 : vector<256x128xf32>
      %38 = math.exp %37 : vector<256x128xf32>
      %cst_22 = arith.constant dense<0.000000e+00> : vector<256xf32>
      %39 = vector.multi_reduction <add>, %38, %cst_22 [1] : vector<256x128xf32> to vector<256xf32>
      %40 = vector.shape_cast %39 : vector<256xf32> to vector<256x1xf32>
      %41 = math.log %40 : vector<256x1xf32>
      %42 = vector.broadcast %41 : vector<256x1xf32> to vector<256x128xf32>
      %43 = arith.subf %37, %42 : vector<256x128xf32>
      %cst_23 = arith.constant 0.000000e+00 : f32
      %44 = vector.broadcast %cst_23 : f32 to vector<256x128xf32>
      %45 = arith.select %31, %43, %44 : vector<256x128xi1>, vector<256x128xf32>
      %c0_24 = arith.constant 0 : index
      %c0_25 = arith.constant 0 : index
      %46 = vector.load %arg7[%c0_24, %c0_25] : memref<256x128xf32, #tpu.memory_space<vmem>>, vector<256x128xf32>
      tpu.vector_store %arg7[%c0_24, %c0_25], %45 {strides = array<i32>} : memref<256x128xf32, #tpu.memory_space<vmem>>, vector<256x128xf32>,
    } else {
    }
    return
  }
  func.func @transform_0(%arg0: i32, %arg1: i32) -> (i32, i32) {
    %c0_i32 = arith.constant 0 : i32
    return %arg0, %arg1 : i32, i32
  }
  func.func @transform_1(%arg0: i32, %arg1: i32) -> (i32, i32) {
    %c0_i32 = arith.constant 0 : i32
    %c0_i32_0 = arith.constant 0 : i32
    %c0_i32_1 = arith.constant 0 : i32
    return %c0_i32, %c0_i32_0 : i32, i32
  }
  func.func @transform_2(%arg0: i32, %arg1: i32) -> (i32, i32) {
    %c0_i32 = arith.constant 0 : i32
    %c0_i32_0 = arith.constant 0 : i32
    %c0_i32_1 = arith.constant 0 : i32
    return %c0_i32, %c0_i32_0 : i32, i32
  }
  func.func @transform_3(%arg0: i32, %arg1: i32) -> (i32, i32) {
    %c0_i32 = arith.constant 0 : i32
    %c0_i32_0 = arith.constant 0 : i32
    %c0_i32_1 = arith.constant 0 : i32
    return %c0_i32, %c0_i32_0 : i32, i32
  }
  func.func @transform_4(%arg0: i32, %arg1: i32) -> (i32, i32) {
    %c0_i32 = arith.constant 0 : i32
    %c0_i32_0 = arith.constant 0 : i32
    %c0_i32_1 = arith.constant 0 : i32
    return %c0_i32, %c0_i32_0 : i32, i32
  }
  func.func @transform_5(%arg0: i32, %arg1: i32) -> (i32, i32) {
    %c0_i32 = arith.constant 0 : i32
    %c0_i32_0 = arith.constant 0 : i32
    return %arg0, %c0_i32 : i32, i32
  }
}

</mosaic_0001>

<llo_original>
// kernel: _lambda_.3
$region0: #{_lambda_.3}
  #allocation0 [shape = 'u32[]', space=smem, size = 0x4, offset = 0x4, fixed_abs, tag = 'smem constant byte address 0x4 - core index']
  #allocation1 [shape = 'u32[144,128]{1,0:T(1,128)}', space=vmem, size = 0x12000, scoped, tag = 'internal scratch']
  #allocation2 [shape = 'f32[256,128]{1,0:T(8,128)}', space=vmem, size = 0x20000, scoped, tag = 'scratch operand']
  %s0 = inlined_call_operand.vmem [shape: bf16[512,512], index: 0, kind: input, shape index: {}]
  %s1 = inlined_call_operand.vmem [shape: bf16[512,128], index: 1, kind: input, shape index: {}]
  %s2 = inlined_call_operand.vmem [shape: bf16[128,128], index: 2, kind: input, shape index: {}]
  %s3 = inlined_call_operand.vmem [shape: bf16[128,128], index: 3, kind: input, shape index: {}]
  %s4 = inlined_call_operand.vmem [shape: f32[1,128], index: 4, kind: input, shape index: {}]
  %s5 = inlined_call_operand.vmem [shape: f32[512,128], index: 5, kind: output, shape index: {}]
  %s6 = sld [smem:[#allocation0]]
  $region99: #{_lambda_.3} parent=0
    _
  %s8 = ssub.s32 1, %s6
  %s9 = scalar_select 0, %s8, %s6
  $region1: #{_lambda_.3} parent=0
    #allocation3 [shape = 'u8[262144]{0}', space=vmem, size = 0x40000, scoped, tag = 'input window, operand 0']
    loop: start=0, step=1, limit=6
    $region2: #{_lambda_.3} parent=1 // loop_pre_header
      _
    $region3: #{_lambda_.3} parent=1 // loop_header
      %s11 = sphi 0, %s15
      %p12 = scmp.ge.s32.totalorder %s11, 6
      %s18 = sphi 0, %s30
      %s19 = sphi 0, %s26
      %s20 = sphi 0, %s18
      %s21 = sphi 0, %s19
      %s22 = sphi 0, %s20
      %s23 = sphi 0, %s21
      %s35 = sphi 0, %s37
      %s38 = sphi 0, %s35
      %s39 = sphi 0, %s38
      %s55 = sphi 0, %s39
      %s59 = sphi 0, %s59
      %s61 = sphi 0, %s59
      %s62 = sphi 0, %s61
      %s76 = sphi 0, %s62
      %s80 = sphi 0, %s80
      %s82 = sphi 0, %s80
      %s83 = sphi 0, %s82
      %s97 = sphi 0, %s83
      %s101 = sphi 0, %s101
      %s103 = sphi 0, %s101
      %s104 = sphi 0, %s103
      %s118 = sphi 0, %s104
      %s122 = sphi 0, %s122
      %s124 = sphi 0, %s122
      %s125 = sphi 0, %s124
      %s139 = sphi 0, %s125
      %s145 = sphi 0, %s147
      %s148 = sphi 0, %s145
      %s149 = sphi 0, %s148
      %s165 = sphi 0, %s149
    $region4: #{_lambda_.3} parent=1 // loop_header_branch
      %14 = sbr.rel (%p12) target = $region8
    $region5: #{_lambda_.3} parent=1 // loop_body
      %s16 = ssub.s32 %s11, 1
      %s17 = ssub.s32 %s11, 2
      %s24 = sadd.s32 1, %s19
      %p25 = scmp.ge.s32.totalorder %s24, 2
      %s26 = scalar_select %p25, 0, %s24
      %s27 = sadd.s32 1, %s18
      %s28 = scalar_select %p25, %s27, %s18
      %p29 = scmp.ge.s32.totalorder %s28, 2
      %s30 = scalar_select %p29, 0, %s28
      %s31 = ssub.s32 %s18, %s30
      %s32 = ssub.s32 %s19, %s26
      %s33 = sor.u32 %s31, %s32
      %p34 = scmp.eq.s32.totalorder %s33, 0
      %s36 = sadd.s32 %s35, 1
      %s37 = scalar_select %p34, %s35, %s36
      %p40 = pneg %p34
      %p41 = scmp.eq.s32.totalorder %s11, 3
      %p42 = por %p40, %p41
      %p43 = scmp.ne.s32.totalorder %s35, %s38
      %p44 = scmp.eq.s32.totalorder %s11, 0
      %p45 = por %p43, %p44
      %p46 = scmp.ne.s32.totalorder %s35, %s38
      %p47 = scmp.eq.s32.totalorder %s16, 3
      %p48 = por %p46, %p47
      %p49 = scmp.ne.s32.totalorder %s38, %s39
      %p50 = scmp.eq.s32.totalorder %s16, 0
      %p51 = por %p49, %p50
      %p52 = scmp.ne.s32.totalorder %s38, %s39
      %p53 = scmp.eq.s32.totalorder %s17, 3
      %p54 = por %p52, %p53
      %p56 = scmp.ne.s32.totalorder %s39, %s55
      %p57 = scmp.eq.s32.totalorder %s17, 0
      %p58 = por %p56, %p57
      %s60 = sadd.s32 %s59, 1
      %p63 = scmp.eq.s32.totalorder %s11, 3
      %p64 = scmp.ne.s32.totalorder %s59, %s61
      %p65 = scmp.eq.s32.totalorder %s11, 0
      %p66 = por %p64, %p65
      %p67 = scmp.ne.s32.totalorder %s59, %s61
      %p68 = scmp.eq.s32.totalorder %s16, 3
      %p69 = por %p67, %p68
      %p70 = scmp.ne.s32.totalorder %s61, %s62
      %p71 = scmp.eq.s32.totalorder %s16, 0
      %p72 = por %p70, %p71
      %p73 = scmp.ne.s32.totalorder %s61, %s62
      %p74 = scmp.eq.s32.totalorder %s17, 3
      %p75 = por %p73, %p74
      %p77 = scmp.ne.s32.totalorder %s62, %s76
      %p78 = scmp.eq.s32.totalorder %s17, 0
      %p79 = por %p77, %p78
      %s81 = sadd.s32 %s80, 1
      %p84 = scmp.eq.s32.totalorder %s11, 3
      %p85 = scmp.ne.s32.totalorder %s80, %s82
      %p86 = scmp.eq.s32.totalorder %s11, 0
      %p87 = por %p85, %p86
      %p88 = scmp.ne.s32.totalorder %s80, %s82
      %p89 = scmp.eq.s32.totalorder %s16, 3
      %p90 = por %p88, %p89
      %p91 = scmp.ne.s32.totalorder %s82, %s83
      %p92 = scmp.eq.s32.totalorder %s16, 0
      %p93 = por %p91, %p92
      %p94 = scmp.ne.s32.totalorder %s82, %s83
      %p95 = scmp.eq.s32.totalorder %s17, 3
      %p96 = por %p94, %p95
      %p98 = scmp.ne.s32.totalorder %s83, %s97
      %p99 = scmp.eq.s32.totalorder %s17, 0
      %p100 = por %p98, %p99
      %s102 = sadd.s32 %s101, 1
      %p105 = scmp.eq.s32.totalorder %s11, 3
      %p106 = scmp.ne.s32.totalorder %s101, %s103
      %p107 = scmp.eq.s32.totalorder %s11, 0
      %p108 = por %p106, %p107
      %p109 = scmp.ne.s32.totalorder %s101, %s103
      %p110 = scmp.eq.s32.totalorder %s16, 3
      %p111 = por %p109, %p110
      %p112 = scmp.ne.s32.totalorder %s103, %s104
      %p113 = scmp.eq.s32.totalorder %s16, 0
      %p114 = por %p112, %p113
      %p115 = scmp.ne.s32.totalorder %s103, %s104
      %p116 = scmp.eq.s32.totalorder %s17, 3
      %p117 = por %p115, %p116
      %p119 = scmp.ne.s32.totalorder %s104, %s118
      %p120 = scmp.eq.s32.totalorder %s17, 0
      %p121 = por %p119, %p120
      %s123 = sadd.s32 %s122, 1
      %p126 = scmp.eq.s32.totalorder %s11, 3
      %p127 = scmp.ne.s32.totalorder %s122, %s124
      %p128 = scmp.eq.s32.totalorder %s11, 0
      %p129 = por %p127, %p128
      %p130 = scmp.ne.s32.totalorder %s122, %s124
      %p131 = scmp.eq.s32.totalorder %s16, 3
      %p132 = por %p130, %p131
      %p133 = scmp.ne.s32.totalorder %s124, %s125
      %p134 = scmp.eq.s32.totalorder %s16, 0
      %p135 = por %p133, %p134
      %p136 = scmp.ne.s32.totalorder %s124, %s125
      %p137 = scmp.eq.s32.totalorder %s17, 3
      %p138 = por %p136, %p137
      %p140 = scmp.ne.s32.totalorder %s125, %s139
      %p141 = scmp.eq.s32.totalorder %s17, 0
      %p142 = por %p140, %p141
      %s143 = ssub.s32 %s18, %s30
      %p144 = scmp.eq.s32.totalorder %s143, 0
      %s146 = sadd.s32 %s145, 1
      %s147 = scalar_select %p144, %s145, %s146
      %p150 = pneg %p144
      %p151 = scmp.eq.s32.totalorder %s11, 3
      %p152 = por %p150, %p151
      %p153 = scmp.ne.s32.totalorder %s145, %s148
      %p154 = scmp.eq.s32.totalorder %s11, 0
      %p155 = por %p153, %p154
      %p156 = scmp.ne.s32.totalorder %s145, %s148
      %p157 = scmp.eq.s32.totalorder %s16, 3
      %p158 = por %p156, %p157
      %p159 = scmp.ne.s32.totalorder %s148, %s149
      %p160 = scmp.eq.s32.totalorder %s16, 0
      %p161 = por %p159, %p160
      %p162 = scmp.ne.s32.totalorder %s148, %s149
      %p163 = scmp.eq.s32.totalorder %s17, 3
      %p164 = por %p162, %p163
      %p166 = scmp.ne.s32.totalorder %s149, %s165
      %p167 = scmp.eq.s32.totalorder %s17, 0
      %p168 = por %p166, %p167
      %p169 = scmp.le.s32.totalorder 1, %s11
      %p170 = scmp.lt.s32.totalorder %s11, 5
      %p171 = pnand %p169, %p170
      %p172 = pneg %p171
      // Predicated region
      $region9: #{_lambda_.3} parent=5 // pred_check
        _
      $region10: #{_lambda_.3} parent=5 // pred_check_branch
        %174 = sbr.rel (%p171) target = $region12
      $region11: #{_lambda_.3} parent=5 // pred_region
        %s175 = ssub.s32 %s11, 1
        // Predicated region
        $region13: #{_lambda_.3} parent=11 // pred_check
          %p176 = pneg %p72
        $region14: #{_lambda_.3} parent=11 // pred_check_branch
          %178 = sbr.rel (%p176) target = $region16
        $region15: #{_lambda_.3} parent=11 // pred_region
          _
        $region16: #{_lambda_.3} parent=11 // pred_fallthru
          _
        // Predicated region
        $region17: #{_lambda_.3} parent=11 // pred_check
          %p179 = pneg %p93
        $region18: #{_lambda_.3} parent=11 // pred_check_branch
          %181 = sbr.rel (%p179) target = $region20
        $region19: #{_lambda_.3} parent=11 // pred_region
          _
        $region20: #{_lambda_.3} parent=11 // pred_fallthru
          _
        // Predicated region
        $region21: #{_lambda_.3} parent=11 // pred_check
          %p182 = pneg %p114
        $region22: #{_lambda_.3} parent=11 // pred_check_branch
          %184 = sbr.rel (%p182) target = $region24
        $region23: #{_lambda_.3} parent=11 // pred_region
          _
        $region24: #{_lambda_.3} parent=11 // pred_fallthru
          _
        // Predicated region
        $region25: #{_lambda_.3} parent=11 // pred_check
          %p185 = pneg %p135
        $region26: #{_lambda_.3} parent=11 // pred_check_branch
          %187 = sbr.rel (%p185) target = $region28
        $region27: #{_lambda_.3} parent=11 // pred_region
          _
        $region28: #{_lambda_.3} parent=11 // pred_fallthru
          _
      $region12: #{_lambda_.3} parent=5 // pred_fallthru
        _
      %p188 = scmp.lt.s32.totalorder %s11, 4
      // Predicated region
      $region29: #{_lambda_.3} parent=5 // pred_check
        %p189 = pneg %p188
      $region30: #{_lambda_.3} parent=5 // pred_check_branch
        %191 = sbr.rel (%p189) target = $region32
      $region31: #{_lambda_.3} parent=5 // pred_region
        // Predicated region
        $region33: #{_lambda_.3} parent=31 // pred_check
          %p192 = pneg %p45
        $region34: #{_lambda_.3} parent=31 // pred_check_branch
          %194 = sbr.rel (%p192) target = $region36
        $region35: #{_lambda_.3} parent=31 // pred_region
          %s195 = sand.u32 %s35, 1
          %s196 = sand.u32 %s35, 1
          %s197 = smul.addr %s196, 256
          %s198 = scalar_lea.vmem [#allocation3], %s197
          %s199 = smul.u32 32, %s18
          %s200 = smul.u32 2, %s19
          %s201 = smul.addr %s199, 4
          %s202 = sadd.s32 %s200, %s201
          %s203 = smul.addr %s202, 4
          %s204 = scalar_lea.vmem %s0, %s203
          // Predicated region
          $region37: #{_lambda_.3} parent=35 // pred_check
            _
          $region38: #{_lambda_.3} parent=35 // pred_check_branch
            %206 = sbr.rel (0) target = $region40
          $region39: #{_lambda_.3} parent=35 // pred_region
            // Predicated region
            $region41: #{_lambda_.3} parent=39 // pred_check
              _
            $region42: #{_lambda_.3} parent=39 // pred_check_branch
              %208 = sbr.rel (0) target = $region44
            $region43: #{_lambda_.3} parent=39 // pred_region
              // Predicated region
              $region56: #{_lambda_.3} parent=43 // pred_check
                _
              $region57: #{_lambda_.3} parent=43 // pred_check_branch
                %285 = sbr.rel (0) target = $region59
              $region58: #{_lambda_.3} parent=43 // pred_region
                loop: start=0, step=1, limit=1
                $region60: #{_lambda_.3} parent=58 // loop_pre_header
                  _
                $region61: #{_lambda_.3} parent=58 // loop_header
                  %s287 = sphi 0, %s291
                  %p288 = scmp.ge.s32.totalorder %s287, 1
                  %s292 = sphi %s204, %s204
                  %s293 = sphi %s198, %s198
                $region62: #{_lambda_.3} parent=58 // loop_header_branch
                  %290 = sbr.rel (%p288) target = $region66
                $region63: #{_lambda_.3} parent=58 // loop_body
                  %v294 = vld [vmem:[%s292] sm:$0xff]
                  %295 = vst [vmem:[%s293] sm:$0xff] %v294
                  %v296 = vld [vmem:[%s292 + $0x10] sm:$0xff]
                  %297 = vst [vmem:[%s293 + $0x8] sm:$0xff] %v296
                  %v298 = vld [vmem:[%s292 + $0x20] sm:$0xff]
                  %299 = vst [vmem:[%s293 + $0x10] sm:$0xff] %v298
                  %v300 = vld [vmem:[%s292 + $0x30] sm:$0xff]
                  %301 = vst [vmem:[%s293 + $0x18] sm:$0xff] %v300
                  %v302 = vld [vmem:[%s292 + $0x40] sm:$0xff]
                  %303 = vst [vmem:[%s293 + $0x20] sm:$0xff] %v302
                  %v304 = vld [vmem:[%s292 + $0x50] sm:$0xff]
                  %305 = vst [vmem:[%s293 + $0x28] sm:$0xff] %v304
                  %v306 = vld [vmem:[%s292 + $0x60] sm:$0xff]
                  %307 = vst [vmem:[%s293 + $0x30] sm:$0xff] %v306
                  %v308 = vld [vmem:[%s292 + $0x70] sm:$0xff]
                  %309 = vst [vmem:[%s293 + $0x38] sm:$0xff] %v308
                  %v310 = vld [vmem:[%s292 + $0x80] sm:$0xff]
                  %311 = vst [vmem:[%s293 + $0x40] sm:$0xff] %v310
                  %v312 = vld [vmem:[%s292 + $0x90] sm:$0xff]
                  %313 = vst [vmem:[%s293 + $0x48] sm:$0xff] %v312
                  %v314 = vld [vmem:[%s292 + $0xa0] sm:$0xff]
                  %315 = vst [vmem:[%s293 + $0x50] sm:$0xff] %v314
                  %v316 = vld [vmem:[%s292 + $0xb0] sm:$0xff]
                  %317 = vst [vmem:[%s293 + $0x58] sm:$0xff] %v316
                  %v318 = vld [vmem:[%s292 + $0xc0] sm:$0xff]
                  %319 = vst [vmem:[%s293 + $0x60] sm:$0xff] %v318
                  %v320 = vld [vmem:[%s292 + $0xd0] sm:$0xff]
                  %321 = vst [vmem:[%s293 + $0x68] sm:$0xff] %v320
                  %v322 = vld [vmem:[%s292 + $0xe0] sm:$0xff]
                  %323 = vst [vmem:[%s293 + $0x70] sm:$0xff] %v322
                  %v324 = vld [vmem:[%s292 + $0xf0] sm:$0xff]
                  %325 = vst [vmem:[%s293 + $0x78] sm:$0xff] %v324
                  %v326 = vld [vmem:[%s292 + $0x100] sm:$0xff]
                  %327 = vst [vmem:[%s293 + $0x80] sm:$0xff] %v326
                  %v328 = vld [vmem:[%s292 + $0x110] sm:$0xff]
                  %329 = vst [vmem:[%s293 + $0x88] sm:$0xff] %v328
                  %v330 = vld [vmem:[%s292 + $0x120] sm:$0xff]
                  %331 = vst [vmem:[%s293 + $0x90] sm:$0xff] %v330
                  %v332 = vld [vmem:[%s292 + $0x130] sm:$0xff]
                  %333 = vst [vmem:[%s293 + $0x98] sm:$0xff] %v332
                  %v334 = vld [vmem:[%s292 + $0x140] sm:$0xff]
                  %335 = vst [vmem:[%s293 + $0xa0] sm:$0xff] %v334
                  %v336 = vld [vmem:[%s292 + $0x150] sm:$0xff]
                  %337 = vst [vmem:[%s293 + $0xa8] sm:$0xff] %v336
                  %v338 = vld [vmem:[%s292 + $0x160] sm:$0xff]
                  %339 = vst [vmem:[%s293 + $0xb0] sm:$0xff] %v338
                  %v340 = vld [vmem:[%s292 + $0x170] sm:$0xff]
                  %341 = vst [vmem:[%s293 + $0xb8] sm:$0xff] %v340
                  %v342 = vld [vmem:[%s292 + $0x180] sm:$0xff]
                  %343 = vst [vmem:[%s293 + $0xc0] sm:$0xff] %v342
                  %v344 = vld [vmem:[%s292 + $0x190] sm:$0xff]
                  %345 = vst [vmem:[%s293 + $0xc8] sm:$0xff] %v344
                  %v346 = vld [vmem:[%s292 + $0x1a0] sm:$0xff]
                  %347 = vst [vmem:[%s293 + $0xd0] sm:$0xff] %v346
                  %v348 = vld [vmem:[%s292 + $0x1b0] sm:$0xff]
                  %349 = vst [vmem:[%s293 + $0xd8] sm:$0xff] %v348
                  %v350 = vld [vmem:[%s292 + $0x1c0] sm:$0xff]
                  %351 = vst [vmem:[%s293 + $0xe0] sm:$0xff] %v350
                  %v352 = vld [vmem:[%s292 + $0x1d0] sm:$0xff]
                  %353 = vst [vmem:[%s293 + $0xe8] sm:$0xff] %v352
                  %v354 = vld [vmem:[%s292 + $0x1e0] sm:$0xff]
                  %355 = vst [vmem:[%s293 + $0xf0] sm:$0xff] %v354
                  %v356 = vld [vmem:[%s292 + $0x1f0] sm:$0xff]
                  %357 = vst [vmem:[%s293 + $0xf8] sm:$0xff] %v356
                $region64: #{_lambda_.3} parent=58 // loop_footer
                  %s291 = sadd.s32 1, %s287
                $region65: #{_lambda_.3} parent=58 // loop_footer_branch
                  %286 = sbr.rel target = $region61
                $region66: #{_lambda_.3} parent=58 // loop_exit
                  _
              $region59: #{_lambda_.3} parent=43 // pred_fallthru
                _
              // Predicated region
              $region67: #{_lambda_.3} parent=43 // pred_check
                _
              $region68: #{_lambda_.3} parent=43 // pred_check_branch
                %359 = sbr.rel target = $region70
              $region69: #{_lambda_.3} parent=43 // pred_region
                _
              $region70: #{_lambda_.3} parent=43 // pred_fallthru
                _
            $region44: #{_lambda_.3} parent=39 // pred_fallthru
              _
            // Predicated region
            $region45: #{_lambda_.3} parent=39 // pred_check
              _
            $region46: #{_lambda_.3} parent=39 // pred_check_branch
              %210 = sbr.rel target = $region48
            $region47: #{_lambda_.3} parent=39 // pred_region
              loop: start=0, step=1, limit=1
              $region49: #{_lambda_.3} parent=47 // loop_pre_header
                _
              $region50: #{_lambda_.3} parent=47 // loop_header
                %s213 = sphi 0, %s217
                %p214 = scmp.ge.s32.totalorder %s213, 1
                %s218 = sphi %s204, %s204
                %s219 = sphi %s198, %s198
              $region51: #{_lambda_.3} parent=47 // loop_header_branch
                %216 = sbr.rel (%p214) target = $region55
              $region52: #{_lambda_.3} parent=47 // loop_body
                %v220 = vld [vmem:[%s218] sm:$0xff]
                %221 = vst [vmem:[%s219] sm:$0xff] %v220
                %v222 = vld [vmem:[%s218 + $0x10] sm:$0xff]
                %223 = vst [vmem:[%s219 + $0x8] sm:$0xff] %v222
                %v224 = vld [vmem:[%s218 + $0x20] sm:$0xff]
                %225 = vst [vmem:[%s219 + $0x10] sm:$0xff] %v224
                %v226 = vld [vmem:[%s218 + $0x30] sm:$0xff]
                %227 = vst [vmem:[%s219 + $0x18] sm:$0xff] %v226
                %v228 = vld [vmem:[%s218 + $0x40] sm:$0xff]
                %229 = vst [vmem:[%s219 + $0x20] sm:$0xff] %v228
                %v230 = vld [vmem:[%s218 + $0x50] sm:$0xff]
                %231 = vst [vmem:[%s219 + $0x28] sm:$0xff] %v230
                %v232 = vld [vmem:[%s218 + $0x60] sm:$0xff]
                %233 = vst [vmem:[%s219 + $0x30] sm:$0xff] %v232
                %v234 = vld [vmem:[%s218 + $0x70] sm:$0xff]
                %235 = vst [vmem:[%s219 + $0x38] sm:$0xff] %v234
                %v236 = vld [vmem:[%s218 + $0x80] sm:$0xff]
                %237 = vst [vmem:[%s219 + $0x40] sm:$0xff] %v236
                %v238 = vld [vmem:[%s218 + $0x90] sm:$0xff]
                %239 = vst [vmem:[%s219 + $0x48] sm:$0xff] %v238
                %v240 = vld [vmem:[%s218 + $0xa0] sm:$0xff]
                %241 = vst [vmem:[%s219 + $0x50] sm:$0xff] %v240
                %v242 = vld [vmem:[%s218 + $0xb0] sm:$0xff]
                %243 = vst [vmem:[%s219 + $0x58] sm:$0xff] %v242
                %v244 = vld [vmem:[%s218 + $0xc0] sm:$0xff]
                %245 = vst [vmem:[%s219 + $0x60] sm:$0xff] %v244
                %v246 = vld [vmem:[%s218 + $0xd0] sm:$0xff]
                %247 = vst [vmem:[%s219 + $0x68] sm:$0xff] %v246
                %v248 = vld [vmem:[%s218 + $0xe0] sm:$0xff]
                %249 = vst [vmem:[%s219 + $0x70] sm:$0xff] %v248
                %v250 = vld [vmem:[%s218 + $0xf0] sm:$0xff]
                %251 = vst [vmem:[%s219 + $0x78] sm:$0xff] %v250
                %v252 = vld [vmem:[%s218 + $0x100] sm:$0xff]
                %253 = vst [vmem:[%s219 + $0x80] sm:$0xff] %v252
                %v254 = vld [vmem:[%s218 + $0x110] sm:$0xff]
                %255 = vst [vmem:[%s219 + $0x88] sm:$0xff] %v254
                %v256 = vld [vmem:[%s218 + $0x120] sm:$0xff]
                %257 = vst [vmem:[%s219 + $0x90] sm:$0xff] %v256
                %v258 = vld [vmem:[%s218 + $0x130] sm:$0xff]
                %259 = vst [vmem:[%s219 + $0x98] sm:$0xff] %v258
                %v260 = vld [vmem:[%s218 + $0x140] sm:$0xff]
                %261 = vst [vmem:[%s219 + $0xa0] sm:$0xff] %v260
                %v262 = vld [vmem:[%s218 + $0x150] sm:$0xff]
                %263 = vst [vmem:[%s219 + $0xa8] sm:$0xff] %v262
                %v264 = vld [vmem:[%s218 + $0x160] sm:$0xff]
                %265 = vst [vmem:[%s219 + $0xb0] sm:$0xff] %v264
                %v266 = vld [vmem:[%s218 + $0x170] sm:$0xff]
                %267 = vst [vmem:[%s219 + $0xb8] sm:$0xff] %v266
                %v268 = vld [vmem:[%s218 + $0x180] sm:$0xff]
                %269 = vst [vmem:[%s219 + $0xc0] sm:$0xff] %v268
                %v270 = vld [vmem:[%s218 + $0x190] sm:$0xff]
                %271 = vst [vmem:[%s219 + $0xc8] sm:$0xff] %v270
                %v272 = vld [vmem:[%s218 + $0x1a0] sm:$0xff]
                %273 = vst [vmem:[%s219 + $0xd0] sm:$0xff] %v272
                %v274 = vld [vmem:[%s218 + $0x1b0] sm:$0xff]
                %275 = vst [vmem:[%s219 + $0xd8] sm:$0xff] %v274
                %v276 = vld [vmem:[%s218 + $0x1c0] sm:$0xff]
                %277 = vst [vmem:[%s219 + $0xe0] sm:$0xff] %v276
                %v278 = vld [vmem:[%s218 + $0x1d0] sm:$0xff]
                %279 = vst [vmem:[%s219 + $0xe8] sm:$0xff] %v278
                %v280 = vld [vmem:[%s218 + $0x1e0] sm:$0xff]
                %281 = vst [vmem:[%s219 + $0xf0] sm:$0xff] %v280
                %v282 = vld [vmem:[%s218 + $0x1f0] sm:$0xff]
                %283 = vst [vmem:[%s219 + $0xf8] sm:$0xff] %v282
              $region53: #{_lambda_.3} parent=47 // loop_footer
                %s217 = sadd.s32 1, %s213
              $region54: #{_lambda_.3} parent=47 // loop_footer_branch
                %212 = sbr.rel target = $region50
              $region55: #{_lambda_.3} parent=47 // loop_exit
                _
            $region48: #{_lambda_.3} parent=39 // pred_fallthru
              _
          $region40: #{_lambda_.3} parent=35 // pred_fallthru
            _
          %360 = vnop
        $region36: #{_lambda_.3} parent=31 // pred_fallthru
          _
      $region32: #{_lambda_.3} parent=5 // pred_fallthru
        _
      %p361 = scmp.le.s32.totalorder 1, %s11
      %p362 = scmp.lt.s32.totalorder %s11, 5
      %p363 = pnand %p361, %p362
      %p364 = pneg %p363
      // Predicated region
      $region71: #{_lambda_.3} parent=5 // pred_check
        _
      $region72: #{_lambda_.3} parent=5 // pred_check_branch
        %366 = sbr.rel (%p363) target = $region74
      $region73: #{_lambda_.3} parent=5 // pred_region
        %s367 = ssub.s32 %s11, 1
        %s368 = sand.u32 %s38, 1
        %s369 = sand.u32 %s38, 1
        %s370 = smul.addr %s369, 256
        %s371 = scalar_lea.vmem [#allocation3], %s370
        // Predicated region
        $region75: #{_lambda_.3} parent=73 // pred_check
          %p372 = pneg %p51
        $region76: #{_lambda_.3} parent=73 // pred_check_branch
          %374 = sbr.rel (%p372) target = $region78
        $region77: #{_lambda_.3} parent=73 // pred_region
          _
        $region78: #{_lambda_.3} parent=73 // pred_fallthru
          _
        %s375 = sand.u32 %s38, 1
        %s376 = sand.u32 %s38, 1
        %s377 = smul.addr %s376, 256
        %s378 = scalar_lea.vmem [#allocation3], %s377
        %p379 = pneg %p51
        %p380 = pneg %p48
        %p381 = pneg %p72
        %p382 = pneg %p69
        %p383 = pneg %p93
        %p384 = pneg %p90
        %p385 = pneg %p114
        %p386 = pneg %p111
        %p387 = pneg %p135
        %p388 = pneg %p132
        %p389 = pneg %p161
        %p390 = pneg %p158
        %s391 = smul.u32 32, %s20
        %p392 = scmp.lt.s32.totalorder %s391, 63
        %s393 = scalar_select %p392, %s391, 63
        %s394 = smul.addr %s393, 8
        %s395 = scalar_lea.vmem %s5, %s394
        %s396 = smul.u32 32, %s20
        %s397 = smul.u32 2, %s21
        %s398 = smul.u32 32, %s20
        %p399 = scmp.lt.s32.totalorder %s398, 63
        %s400 = scalar_select %p399, %s398, 63
        %s401 = smul.addr %s400, 8
        %s402 = scalar_lea.vmem %s5, %s401
        %s403 = smul.u32 32, %s20
        %p405 = scmp.eq.s32.totalorder %s21, 0
        // Predicated region
        $region79: #{_lambda_.3} parent=73 // pred_check
          %p406 = pneg %p405
        $region80: #{_lambda_.3} parent=73 // pred_check_branch
          %408 = sbr.rel (%p406) target = $region82
        $region81: #{_lambda_.3} parent=73 // pred_region
          %409 = vst [vmem:[#allocation2] sm:$0xff] 0.0
          %410 = vst [vmem:[#allocation2 + $0x8] sm:$0xff] 0.0
          %411 = vst [vmem:[#allocation2 + $0x10] sm:$0xff] 0.0
          %412 = vst [vmem:[#allocation2 + $0x18] sm:$0xff] 0.0
          %413 = vst [vmem:[#allocation2 + $0x20] sm:$0xff] 0.0
          %414 = vst [vmem:[#allocation2 + $0x28] sm:$0xff] 0.0
          %415 = vst [vmem:[#allocation2 + $0x30] sm:$0xff] 0.0
          %416 = vst [vmem:[#allocation2 + $0x38] sm:$0xff] 0.0
          %417 = vst [vmem:[#allocation2 + $0x40] sm:$0xff] 0.0
          %418 = vst [vmem:[#allocation2 + $0x48] sm:$0xff] 0.0
          %419 = vst [vmem:[#allocation2 + $0x50] sm:$0xff] 0.0
          %420 = vst [vmem:[#allocation2 + $0x58] sm:$0xff] 0.0
          %421 = vst [vmem:[#allocation2 + $0x60] sm:$0xff] 0.0
          %422 = vst [vmem:[#allocation2 + $0x68] sm:$0xff] 0.0
          %423 = vst [vmem:[#allocation2 + $0x70] sm:$0xff] 0.0
          %424 = vst [vmem:[#allocation2 + $0x78] sm:$0xff] 0.0
          %425 = vst [vmem:[#allocation2 + $0x80] sm:$0xff] 0.0
          %426 = vst [vmem:[#allocation2 + $0x88] sm:$0xff] 0.0
          %427 = vst [vmem:[#allocation2 + $0x90] sm:$0xff] 0.0
          %428 = vst [vmem:[#allocation2 + $0x98] sm:$0xff] 0.0
          %429 = vst [vmem:[#allocation2 + $0xa0] sm:$0xff] 0.0
          %430 = vst [vmem:[#allocation2 + $0xa8] sm:$0xff] 0.0
          %431 = vst [vmem:[#allocation2 + $0xb0] sm:$0xff] 0.0
          %432 = vst [vmem:[#allocation2 + $0xb8] sm:$0xff] 0.0
          %433 = vst [vmem:[#allocation2 + $0xc0] sm:$0xff] 0.0
          %434 = vst [vmem:[#allocation2 + $0xc8] sm:$0xff] 0.0
          %435 = vst [vmem:[#allocation2 + $0xd0] sm:$0xff] 0.0
          %436 = vst [vmem:[#allocation2 + $0xd8] sm:$0xff] 0.0
          %437 = vst [vmem:[#allocation2 + $0xe0] sm:$0xff] 0.0
          %438 = vst [vmem:[#allocation2 + $0xe8] sm:$0xff] 0.0
          %439 = vst [vmem:[#allocation2 + $0xf0] sm:$0xff] 0.0
          %440 = vst [vmem:[#allocation2 + $0xf8] sm:$0xff] 0.0
        $region82: #{_lambda_.3} parent=73 // pred_fallthru
          _
        %s441 = smul.u32 %s21, 256
        %s442 = sshra.s32 %s441, 3
        %s443 = sand.u32 %s441, 7
        %s444 = smul.addr %s442, 4
        %s445 = scalar_lea.vmem %s1, %s444
        %v446 = vld [vmem:[%s445] sm:$0xf]
        %v447 = vld [vmem:[%s445 + $0x4] sm:$0xf]
        %v448 = vld [vmem:[%s445 + $0x8] sm:$0xf]
        %v449 = vld [vmem:[%s445 + $0xc] sm:$0xf]
        %v450 = vld [vmem:[%s445 + $0x10] sm:$0xf]
        %v451 = vld [vmem:[%s445 + $0x14] sm:$0xf]
        %v452 = vld [vmem:[%s445 + $0x18] sm:$0xf]
        %v453 = vld [vmem:[%s445 + $0x1c] sm:$0xf]
        %v454 = vld [vmem:[%s445 + $0x20] sm:$0xf]
        %v455 = vld [vmem:[%s445 + $0x24] sm:$0xf]
        %v456 = vld [vmem:[%s445 + $0x28] sm:$0xf]
        %v457 = vld [vmem:[%s445 + $0x2c] sm:$0xf]
        %v458 = vld [vmem:[%s445 + $0x30] sm:$0xf]
        %v459 = vld [vmem:[%s445 + $0x34] sm:$0xf]
        %v460 = vld [vmem:[%s445 + $0x38] sm:$0xf]
        %v461 = vld [vmem:[%s445 + $0x3c] sm:$0xf]
        %v462 = vld [vmem:[%s445 + $0x40] sm:$0xf]
        %v463 = vld [vmem:[%s445 + $0x44] sm:$0xf]
        %v464 = vld [vmem:[%s445 + $0x48] sm:$0xf]
        %v465 = vld [vmem:[%s445 + $0x4c] sm:$0xf]
        %v466 = vld [vmem:[%s445 + $0x50] sm:$0xf]
        %v467 = vld [vmem:[%s445 + $0x54] sm:$0xf]
        %v468 = vld [vmem:[%s445 + $0x58] sm:$0xf]
        %v469 = vld [vmem:[%s445 + $0x5c] sm:$0xf]
        %v470 = vld [vmem:[%s445 + $0x60] sm:$0xf]
        %v471 = vld [vmem:[%s445 + $0x64] sm:$0xf]
        %v472 = vld [vmem:[%s445 + $0x68] sm:$0xf]
        %v473 = vld [vmem:[%s445 + $0x6c] sm:$0xf]
        %v474 = vld [vmem:[%s445 + $0x70] sm:$0xf]
        %v475 = vld [vmem:[%s445 + $0x74] sm:$0xf]
        %v476 = vld [vmem:[%s445 + $0x78] sm:$0xf]
        %v477 = vld [vmem:[%s445 + $0x7c] sm:$0xf]
        %v478 = vld [vmem:[#allocation2] sm:$0xff]
        %v479 = vld [vmem:[#allocation2 + $0x8] sm:$0xff]
        %v480 = vld [vmem:[#allocation2 + $0x10] sm:$0xff]
        %v481 = vld [vmem:[#allocation2 + $0x18] sm:$0xff]
        %v482 = vld [vmem:[#allocation2 + $0x20] sm:$0xff]
        %v483 = vld [vmem:[#allocation2 + $0x28] sm:$0xff]
        %v484 = vld [vmem:[#allocation2 + $0x30] sm:$0xff]
        %v485 = vld [vmem:[#allocation2 + $0x38] sm:$0xff]
        %v486 = vld [vmem:[#allocation2 + $0x40] sm:$0xff]
        %v487 = vld [vmem:[#allocation2 + $0x48] sm:$0xff]
        %v488 = vld [vmem:[#allocation2 + $0x50] sm:$0xff]
        %v489 = vld [vmem:[#allocation2 + $0x58] sm:$0xff]
        %v490 = vld [vmem:[#allocation2 + $0x60] sm:$0xff]
        %v491 = vld [vmem:[#allocation2 + $0x68] sm:$0xff]
        %v492 = vld [vmem:[#allocation2 + $0x70] sm:$0xff]
        %v493 = vld [vmem:[#allocation2 + $0x78] sm:$0xff]
        %v494 = vld [vmem:[#allocation2 + $0x80] sm:$0xff]
        %v495 = vld [vmem:[#allocation2 + $0x88] sm:$0xff]
        %v496 = vld [vmem:[#allocation2 + $0x90] sm:$0xff]
        %v497 = vld [vmem:[#allocation2 + $0x98] sm:$0xff]
        %v498 = vld [vmem:[#allocation2 + $0xa0] sm:$0xff]
        %v499 = vld [vmem:[#allocation2 + $0xa8] sm:$0xff]
        %v500 = vld [vmem:[#allocation2 + $0xb0] sm:$0xff]
        %v501 = vld [vmem:[#allocation2 + $0xb8] sm:$0xff]
        %v502 = vld [vmem:[#allocation2 + $0xc0] sm:$0xff]
        %v503 = vld [vmem:[#allocation2 + $0xc8] sm:$0xff]
        %v504 = vld [vmem:[#allocation2 + $0xd0] sm:$0xff]
        %v505 = vld [vmem:[#allocation2 + $0xd8] sm:$0xff]
        %v506 = vld [vmem:[#allocation2 + $0xe0] sm:$0xff]
        %v507 = vld [vmem:[#allocation2 + $0xe8] sm:$0xff]
        %v508 = vld [vmem:[#allocation2 + $0xf0] sm:$0xff]
        %v509 = vld [vmem:[#allocation2 + $0xf8] sm:$0xff]
        %v510 = vld [vmem:[%s371] sm:$0xff]
        %v511 = vld [vmem:[%s371 + $0x8] sm:$0xff]
        %v512 = vld [vmem:[%s371 + $0x10] sm:$0xff]
        %v513 = vld [vmem:[%s371 + $0x18] sm:$0xff]
        %v514 = vld [vmem:[%s371 + $0x20] sm:$0xff]
        %v515 = vld [vmem:[%s371 + $0x28] sm:$0xff]
        %v516 = vld [vmem:[%s371 + $0x30] sm:$0xff]
        %v517 = vld [vmem:[%s371 + $0x38] sm:$0xff]
        %v518 = vld [vmem:[%s371 + $0x40] sm:$0xff]
        %v519 = vld [vmem:[%s371 + $0x48] sm:$0xff]
        %v520 = vld [vmem:[%s371 + $0x50] sm:$0xff]
        %v521 = vld [vmem:[%s371 + $0x58] sm:$0xff]
        %v522 = vld [vmem:[%s371 + $0x60] sm:$0xff]
        %v523 = vld [vmem:[%s371 + $0x68] sm:$0xff]
        %v524 = vld [vmem:[%s371 + $0x70] sm:$0xff]
        %v525 = vld [vmem:[%s371 + $0x78] sm:$0xff]
        %v526 = vld [vmem:[%s371 + $0x80] sm:$0xff]
        %v527 = vld [vmem:[%s371 + $0x88] sm:$0xff]
        %v528 = vld [vmem:[%s371 + $0x90] sm:$0xff]
        %v529 = vld [vmem:[%s371 + $0x98] sm:$0xff]
        %v530 = vld [vmem:[%s371 + $0xa0] sm:$0xff]
        %v531 = vld [vmem:[%s371 + $0xa8] sm:$0xff]
        %v532 = vld [vmem:[%s371 + $0xb0] sm:$0xff]
        %v533 = vld [vmem:[%s371 + $0xb8] sm:$0xff]
        %v534 = vld [vmem:[%s371 + $0xc0] sm:$0xff]
        %v535 = vld [vmem:[%s371 + $0xc8] sm:$0xff]
        %v536 = vld [vmem:[%s371 + $0xd0] sm:$0xff]
        %v537 = vld [vmem:[%s371 + $0xd8] sm:$0xff]
        %v538 = vld [vmem:[%s371 + $0xe0] sm:$0xff]
        %v539 = vld [vmem:[%s371 + $0xe8] sm:$0xff]
        %v540 = vld [vmem:[%s371 + $0xf0] sm:$0xff]
        %v541 = vld [vmem:[%s371 + $0xf8] sm:$0xff]
        %v574 = vunpack.c.l.b16 %v510
        %v575 = vunpack.c.h.b16 %v510
        %v576 = vunpack.c.l.b16 %v511
        %v577 = vunpack.c.h.b16 %v511
        %v578 = vunpack.c.l.b16 %v512
        %v579 = vunpack.c.h.b16 %v512
        %v580 = vunpack.c.l.b16 %v513
        %v581 = vunpack.c.h.b16 %v513
        %v582 = vunpack.c.l.b16 %v514
        %v583 = vunpack.c.h.b16 %v514
        %v584 = vunpack.c.l.b16 %v515
        %v585 = vunpack.c.h.b16 %v515
        %v586 = vunpack.c.l.b16 %v516
        %v587 = vunpack.c.h.b16 %v516
        %v588 = vunpack.c.l.b16 %v517
        %v589 = vunpack.c.h.b16 %v517
        %v590 = vunpack.c.l.b16 %v518
        %v591 = vunpack.c.h.b16 %v518
        %v592 = vunpack.c.l.b16 %v519
        %v593 = vunpack.c.h.b16 %v519
        %v594 = vunpack.c.l.b16 %v520
        %v595 = vunpack.c.h.b16 %v520
        %v596 = vunpack.c.l.b16 %v521
        %v597 = vunpack.c.h.b16 %v521
        %v598 = vunpack.c.l.b16 %v522
        %v599 = vunpack.c.h.b16 %v522
        %v600 = vunpack.c.l.b16 %v523
        %v601 = vunpack.c.h.b16 %v523
        %v602 = vunpack.c.l.b16 %v524
        %v603 = vunpack.c.h.b16 %v524
        %v604 = vunpack.c.l.b16 %v525
        %v605 = vunpack.c.h.b16 %v525
        %v606 = vunpack.c.l.b16 %v526
        %v607 = vunpack.c.h.b16 %v526
        %v608 = vunpack.c.l.b16 %v527
        %v609 = vunpack.c.h.b16 %v527
        %v610 = vunpack.c.l.b16 %v528
        %v611 = vunpack.c.h.b16 %v528
        %v612 = vunpack.c.l.b16 %v529
        %v613 = vunpack.c.h.b16 %v529
        %v614 = vunpack.c.l.b16 %v530
        %v615 = vunpack.c.h.b16 %v530
        %v616 = vunpack.c.l.b16 %v531
        %v617 = vunpack.c.h.b16 %v531
        %v618 = vunpack.c.l.b16 %v532
        %v619 = vunpack.c.h.b16 %v532
        %v620 = vunpack.c.l.b16 %v533
        %v621 = vunpack.c.h.b16 %v533
        %v622 = vunpack.c.l.b16 %v534
        %v623 = vunpack.c.h.b16 %v534
        %v624 = vunpack.c.l.b16 %v535
        %v625 = vunpack.c.h.b16 %v535
        %v626 = vunpack.c.l.b16 %v536
        %v627 = vunpack.c.h.b16 %v536
        %v628 = vunpack.c.l.b16 %v537
        %v629 = vunpack.c.h.b16 %v537
        %v630 = vunpack.c.l.b16 %v538
        %v631 = vunpack.c.h.b16 %v538
        %v632 = vunpack.c.l.b16 %v539
        %v633 = vunpack.c.h.b16 %v539
        %v634 = vunpack.c.l.b16 %v540
        %v635 = vunpack.c.h.b16 %v540
        %v636 = vunpack.c.l.b16 %v541
        %v637 = vunpack.c.h.b16 %v541
        %v638 = vpack.c.b16 %v576, %v574
        %v639 = vpack.c.b16 %v577, %v575
        %v640 = vpack.c.b16 %v580, %v578
        %v641 = vpack.c.b16 %v581, %v579
        %v642 = vpack.c.b16 %v584, %v582
        %v643 = vpack.c.b16 %v585, %v583
        %v644 = vpack.c.b16 %v588, %v586
        %v645 = vpack.c.b16 %v589, %v587
        %v646 = vpack.c.b16 %v592, %v590
        %v647 = vpack.c.b16 %v593, %v591
        %v648 = vpack.c.b16 %v596, %v594
        %v649 = vpack.c.b16 %v597, %v595
        %v650 = vpack.c.b16 %v600, %v598
        %v651 = vpack.c.b16 %v601, %v599
        %v652 = vpack.c.b16 %v604, %v602
        %v653 = vpack.c.b16 %v605, %v603
        %v654 = vpack.c.b16 %v608, %v606
        %v655 = vpack.c.b16 %v609, %v607
        %v656 = vpack.c.b16 %v612, %v610
        %v657 = vpack.c.b16 %v613, %v611
        %v658 = vpack.c.b16 %v616, %v614
        %v659 = vpack.c.b16 %v617, %v615
        %v660 = vpack.c.b16 %v620, %v618
        %v661 = vpack.c.b16 %v621, %v619
        %v662 = vpack.c.b16 %v624, %v622
        %v663 = vpack.c.b16 %v625, %v623
        %v664 = vpack.c.b16 %v628, %v626
        %v665 = vpack.c.b16 %v629, %v627
        %v666 = vpack.c.b16 %v632, %v630
        %v667 = vpack.c.b16 %v633, %v631
        %v668 = vpack.c.b16 %v636, %v634
        %v669 = vpack.c.b16 %v637, %v635
        %v734 = vunpack.c.l.b16 %v446
        %v735 = vunpack.c.l.b16 %v447
        %v736 = vunpack.c.l.b16 %v448
        %v737 = vunpack.c.l.b16 %v449
        %v738 = vunpack.c.l.b16 %v450
        %v739 = vunpack.c.l.b16 %v451
        %v740 = vunpack.c.l.b16 %v452
        %v741 = vunpack.c.l.b16 %v453
        %v742 = vunpack.c.l.b16 %v454
        %v743 = vunpack.c.l.b16 %v455
        %v744 = vunpack.c.l.b16 %v456
        %v745 = vunpack.c.l.b16 %v457
        %v746 = vunpack.c.l.b16 %v458
        %v747 = vunpack.c.l.b16 %v459
        %v748 = vunpack.c.l.b16 %v460
        %v749 = vunpack.c.l.b16 %v461
        %v750 = vunpack.c.l.b16 %v462
        %v751 = vunpack.c.l.b16 %v463
        %v752 = vunpack.c.l.b16 %v464
        %v753 = vunpack.c.l.b16 %v465
        %v754 = vunpack.c.l.b16 %v466
        %v755 = vunpack.c.l.b16 %v467
        %v756 = vunpack.c.l.b16 %v468
        %v757 = vunpack.c.l.b16 %v469
        %v758 = vunpack.c.l.b16 %v470
        %v759 = vunpack.c.l.b16 %v471
        %v760 = vunpack.c.l.b16 %v472
        %v761 = vunpack.c.l.b16 %v473
        %v762 = vunpack.c.l.b16 %v474
        %v763 = vunpack.c.l.b16 %v475
        %v764 = vunpack.c.l.b16 %v476
        %v765 = vunpack.c.l.b16 %v477
        %v766 = vpack.c.b16 %v735, %v734
        %v767 = vpack.c.b16 %v737, %v736
        %v768 = vpack.c.b16 %v739, %v738
        %v769 = vpack.c.b16 %v741, %v740
        %v770 = vpack.c.b16 %v743, %v742
        %v771 = vpack.c.b16 %v745, %v744
        %v772 = vpack.c.b16 %v747, %v746
        %v773 = vpack.c.b16 %v749, %v748
        %v774 = vpack.c.b16 %v751, %v750
        %v775 = vpack.c.b16 %v753, %v752
        %v776 = vpack.c.b16 %v755, %v754
        %v777 = vpack.c.b16 %v757, %v756
        %v778 = vpack.c.b16 %v759, %v758
        %v779 = vpack.c.b16 %v761, %v760
        %v780 = vpack.c.b16 %v763, %v762
        %v781 = vpack.c.b16 %v765, %v764
        %798 = vmatprep.subr.bf16.mxu0 0
        %799 = vmatpush1.bf16.msra.mxu0 %v766
        %800 = vmatprep.subr.bf16.mxu0 0
        %801 = vmatpush1.bf16.msra.mxu0 %v767
        %802 = vmatprep.subr.bf16.mxu0 0
        %803 = vmatpush1.bf16.msra.mxu0 %v768
        %804 = vmatprep.subr.bf16.mxu0 0
        %805 = vmatpush1.bf16.msra.mxu0 %v769
        %806 = vmatprep.subr.bf16.mxu0 0
        %807 = vmatpush1.bf16.msra.mxu0 %v770
        %808 = vmatprep.subr.bf16.mxu0 0
        %809 = vmatpush1.bf16.msra.mxu0 %v771
        %810 = vmatprep.subr.bf16.mxu0 0
        %811 = vmatpush1.bf16.msra.mxu0 %v772
        %812 = vmatprep.subr.bf16.mxu0 0
        %813 = vmatpush1.bf16.msra.mxu0 %v773
        %814 = vmatprep.subr.bf16.mxu0 0
        %815 = vmatpush1.bf16.msra.mxu0 %v774
        %816 = vmatprep.subr.bf16.mxu0 0
        %817 = vmatpush1.bf16.msra.mxu0 %v775
        %818 = vmatprep.subr.bf16.mxu0 0
        %819 = vmatpush1.bf16.msra.mxu0 %v776
        %820 = vmatprep.subr.bf16.mxu0 0
        %821 = vmatpush1.bf16.msra.mxu0 %v777
        %822 = vmatprep.subr.bf16.mxu0 0
        %823 = vmatpush1.bf16.msra.mxu0 %v778
        %824 = vmatprep.subr.bf16.mxu0 0
        %825 = vmatpush1.bf16.msra.mxu0 %v779
        %826 = vmatprep.subr.bf16.mxu0 0
        %827 = vmatpush1.bf16.msra.mxu0 %v780
        %828 = vmatprep.subr.bf16.mxu0 0
        %829 = vmatpush1.bf16.msra.mxu0 %v781
        %830 = vmatprep.mubr.bf16.mxu0 %v639
        %831 = vmatmul.mubr.bf16.gmra.mrb[0].mxu0 %v638
        %v832 = vpop.f32.mrb[0].mxu0
        %v833 = vadd.f32 0.0, %v832
        %v834 = vpop.f32.mrb[0].mxu0
        %v835 = vpop.f32.mrb[0].mxu0
        %v836 = vadd.f32 0.0, %v835
        %v837 = vpop.f32.mrb[0].mxu0
        %838 = vmatprep.mubr.bf16.mxu0 %v641
        %839 = vmatmul.mubr.bf16.gmra.mrb[0].mxu0 %v640
        %v840 = vpop.f32.mrb[0].mxu0
        %v841 = vadd.f32 0.0, %v840
        %v842 = vpop.f32.mrb[0].mxu0
        %v843 = vpop.f32.mrb[0].mxu0
        %v844 = vadd.f32 0.0, %v843
        %v845 = vpop.f32.mrb[0].mxu0
        %846 = vmatprep.mubr.bf16.mxu0 %v643
        %847 = vmatmul.mubr.bf16.gmra.mrb[0].mxu0 %v642
        %v848 = vpop.f32.mrb[0].mxu0
        %v849 = vadd.f32 0.0, %v848
        %v850 = vpop.f32.mrb[0].mxu0
        %v851 = vpop.f32.mrb[0].mxu0
        %v852 = vadd.f32 0.0, %v851
        %v853 = vpop.f32.mrb[0].mxu0
        %854 = vmatprep.mubr.bf16.mxu0 %v645
        %855 = vmatmul.mubr.bf16.gmra.mrb[0].mxu0 %v644
        %v856 = vpop.f32.mrb[0].mxu0
        %v857 = vadd.f32 0.0, %v856
        %v858 = vpop.f32.mrb[0].mxu0
        %v859 = vpop.f32.mrb[0].mxu0
        %v860 = vadd.f32 0.0, %v859
        %v861 = vpop.f32.mrb[0].mxu0
        %862 = vmatprep.mubr.bf16.mxu0 %v647
        %863 = vmatmul.mubr.bf16.gmra.mrb[0].mxu0 %v646
        %v864 = vpop.f32.mrb[0].mxu0
        %v865 = vadd.f32 0.0, %v864
        %v866 = vpop.f32.mrb[0].mxu0
        %v867 = vpop.f32.mrb[0].mxu0
        %v868 = vadd.f32 0.0, %v867
        %v869 = vpop.f32.mrb[0].mxu0
        %870 = vmatprep.mubr.bf16.mxu0 %v649
        %871 = vmatmul.mubr.bf16.gmra.mrb[0].mxu0 %v648
        %v872 = vpop.f32.mrb[0].mxu0
        %v873 = vadd.f32 0.0, %v872
        %v874 = vpop.f32.mrb[0].mxu0
        %v875 = vpop.f32.mrb[0].mxu0
        %v876 = vadd.f32 0.0, %v875
        %v877 = vpop.f32.mrb[0].mxu0
        %878 = vmatprep.mubr.bf16.mxu0 %v651
        %879 = vmatmul.mubr.bf16.gmra.mrb[0].mxu0 %v650
        %v880 = vpop.f32.mrb[0].mxu0
        %v881 = vadd.f32 0.0, %v880
        %v882 = vpop.f32.mrb[0].mxu0
        %v883 = vpop.f32.mrb[0].mxu0
        %v884 = vadd.f32 0.0, %v883
        %v885 = vpop.f32.mrb[0].mxu0
        %886 = vmatprep.mubr.bf16.mxu0 %v653
        %887 = vmatmul.mubr.bf16.gmra.mrb[0].mxu0 %v652
        %v888 = vpop.f32.mrb[0].mxu0
        %v889 = vadd.f32 0.0, %v888
        %v890 = vpop.f32.mrb[0].mxu0
        %v891 = vpop.f32.mrb[0].mxu0
        %v892 = vadd.f32 0.0, %v891
        %v893 = vpop.f32.mrb[0].mxu0
        %894 = vmatprep.mubr.bf16.mxu0 %v655
        %895 = vmatmul.mubr.bf16.gmra.mrb[0].mxu0 %v654
        %v896 = vpop.f32.mrb[0].mxu0
        %v897 = vadd.f32 0.0, %v896
        %v898 = vpop.f32.mrb[0].mxu0
        %v899 = vpop.f32.mrb[0].mxu0
        %v900 = vadd.f32 0.0, %v899
        %v901 = vpop.f32.mrb[0].mxu0
        %902 = vmatprep.mubr.bf16.mxu0 %v657
        %903 = vmatmul.mubr.bf16.gmra.mrb[0].mxu0 %v656
        %v904 = vpop.f32.mrb[0].mxu0
        %v905 = vadd.f32 0.0, %v904
        %v906 = vpop.f32.mrb[0].mxu0
        %v907 = vpop.f32.mrb[0].mxu0
        %v908 = vadd.f32 0.0, %v907
        %v909 = vpop.f32.mrb[0].mxu0
        %910 = vmatprep.mubr.bf16.mxu0 %v659
        %911 = vmatmul.mubr.bf16.gmra.mrb[0].mxu0 %v658
        %v912 = vpop.f32.mrb[0].mxu0
        %v913 = vadd.f32 0.0, %v912
        %v914 = vpop.f32.mrb[0].mxu0
        %v915 = vpop.f32.mrb[0].mxu0
        %v916 = vadd.f32 0.0, %v915
        %v917 = vpop.f32.mrb[0].mxu0
        %918 = vmatprep.mubr.bf16.mxu0 %v661
        %919 = vmatmul.mubr.bf16.gmra.mrb[0].mxu0 %v660
        %v920 = vpop.f32.mrb[0].mxu0
        %v921 = vadd.f32 0.0, %v920
        %v922 = vpop.f32.mrb[0].mxu0
        %v923 = vpop.f32.mrb[0].mxu0
        %v924 = vadd.f32 0.0, %v923
        %v925 = vpop.f32.mrb[0].mxu0
        %926 = vmatprep.mubr.bf16.mxu0 %v663
        %927 = vmatmul.mubr.bf16.gmra.mrb[0].mxu0 %v662
        %v928 = vpop.f32.mrb[0].mxu0
        %v929 = vadd.f32 0.0, %v928
        %v930 = vpop.f32.mrb[0].mxu0
        %v931 = vpop.f32.mrb[0].mxu0
        %v932 = vadd.f32 0.0, %v931
        %v933 = vpop.f32.mrb[0].mxu0
        %934 = vmatprep.mubr.bf16.mxu0 %v665
        %935 = vmatmul.mubr.bf16.gmra.mrb[0].mxu0 %v664
        %v936 = vpop.f32.mrb[0].mxu0
        %v937 = vadd.f32 0.0, %v936
        %v938 = vpop.f32.mrb[0].mxu0
        %v939 = vpop.f32.mrb[0].mxu0
        %v940 = vadd.f32 0.0, %v939
        %v941 = vpop.f32.mrb[0].mxu0
        %942 = vmatprep.mubr.bf16.mxu0 %v667
        %943 = vmatmul.mubr.bf16.gmra.mrb[0].mxu0 %v666
        %v944 = vpop.f32.mrb[0].mxu0
        %v945 = vadd.f32 0.0, %v944
        %v946 = vpop.f32.mrb[0].mxu0
        %v947 = vpop.f32.mrb[0].mxu0
        %v948 = vadd.f32 0.0, %v947
        %v949 = vpop.f32.mrb[0].mxu0
        %950 = vmatprep.mubr.bf16.mxu0 %v669
        %951 = vmatmul.mubr.bf16.gmra.mrb[0].mxu0 %v668
        %v952 = vpop.f32.mrb[0].mxu0
        %v953 = vadd.f32 0.0, %v952
        %v954 = vpop.f32.mrb[0].mxu0
        %v955 = vpop.f32.mrb[0].mxu0
        %v956 = vadd.f32 0.0, %v955
        %v957 = vpop.f32.mrb[0].mxu0
        %958 = vdwg.mxu0
        %v959 = vadd.f32 %v478, %v833
        %v960 = vadd.f32 %v479, %v836
        %v961 = vadd.f32 %v480, %v841
        %v962 = vadd.f32 %v481, %v844
        %v963 = vadd.f32 %v482, %v849
        %v964 = vadd.f32 %v483, %v852
        %v965 = vadd.f32 %v484, %v857
        %v966 = vadd.f32 %v485, %v860
        %v967 = vadd.f32 %v486, %v865
        %v968 = vadd.f32 %v487, %v868
        %v969 = vadd.f32 %v488, %v873
        %v970 = vadd.f32 %v489, %v876
        %v971 = vadd.f32 %v490, %v881
        %v972 = vadd.f32 %v491, %v884
        %v973 = vadd.f32 %v492, %v889
        %v974 = vadd.f32 %v493, %v892
        %v975 = vadd.f32 %v494, %v897
        %v976 = vadd.f32 %v495, %v900
        %v977 = vadd.f32 %v496, %v905
        %v978 = vadd.f32 %v497, %v908
        %v979 = vadd.f32 %v498, %v913
        %v980 = vadd.f32 %v499, %v916
        %v981 = vadd.f32 %v500, %v921
        %v982 = vadd.f32 %v501, %v924
        %v983 = vadd.f32 %v502, %v929
        %v984 = vadd.f32 %v503, %v932
        %v985 = vadd.f32 %v504, %v937
        %v986 = vadd.f32 %v505, %v940
        %v987 = vadd.f32 %v506, %v945
        %v988 = vadd.f32 %v507, %v948
        %v989 = vadd.f32 %v508, %v953
        %v990 = vadd.f32 %v509, %v956
        %991 = vst [vmem:[#allocation2] sm:$0xff] %v959
        %992 = vst [vmem:[#allocation2 + $0x8] sm:$0xff] %v960
        %993 = vst [vmem:[#allocation2 + $0x10] sm:$0xff] %v961
        %994 = vst [vmem:[#allocation2 + $0x18] sm:$0xff] %v962
        %995 = vst [vmem:[#allocation2 + $0x20] sm:$0xff] %v963
        %996 = vst [vmem:[#allocation2 + $0x28] sm:$0xff] %v964
        %997 = vst [vmem:[#allocation2 + $0x30] sm:$0xff] %v965
        %998 = vst [vmem:[#allocation2 + $0x38] sm:$0xff] %v966
        %999 = vst [vmem:[#allocation2 + $0x40] sm:$0xff] %v967
        %1000 = vst [vmem:[#allocation2 + $0x48] sm:$0xff] %v968
        %1001 = vst [vmem:[#allocation2 + $0x50] sm:$0xff] %v969
        %1002 = vst [vmem:[#allocation2 + $0x58] sm:$0xff] %v970
        %1003 = vst [vmem:[#allocation2 + $0x60] sm:$0xff] %v971
        %1004 = vst [vmem:[#allocation2 + $0x68] sm:$0xff] %v972
        %1005 = vst [vmem:[#allocation2 + $0x70] sm:$0xff] %v973
        %1006 = vst [vmem:[#allocation2 + $0x78] sm:$0xff] %v974
        %1007 = vst [vmem:[#allocation2 + $0x80] sm:$0xff] %v975
        %1008 = vst [vmem:[#allocation2 + $0x88] sm:$0xff] %v976
        %1009 = vst [vmem:[#allocation2 + $0x90] sm:$0xff] %v977
        %1010 = vst [vmem:[#allocation2 + $0x98] sm:$0xff] %v978
        %1011 = vst [vmem:[#allocation2 + $0xa0] sm:$0xff] %v979
        %1012 = vst [vmem:[#allocation2 + $0xa8] sm:$0xff] %v980
        %1013 = vst [vmem:[#allocation2 + $0xb0] sm:$0xff] %v981
        %1014 = vst [vmem:[#allocation2 + $0xb8] sm:$0xff] %v982
        %1015 = vst [vmem:[#allocation2 + $0xc0] sm:$0xff] %v983
        %1016 = vst [vmem:[#allocation2 + $0xc8] sm:$0xff] %v984
        %1017 = vst [vmem:[#allocation2 + $0xd0] sm:$0xff] %v985
        %1018 = vst [vmem:[#allocation2 + $0xd8] sm:$0xff] %v986
        %1019 = vst [vmem:[#allocation2 + $0xe0] sm:$0xff] %v987
        %1020 = vst [vmem:[#allocation2 + $0xe8] sm:$0xff] %v988
        %1021 = vst [vmem:[#allocation2 + $0xf0] sm:$0xff] %v989
        %1022 = vst [vmem:[#allocation2 + $0xf8] sm:$0xff] %v990
        %p1023 = scmp.eq.s32.totalorder %s21, 1
        // Predicated region
        $region83: #{_lambda_.3} parent=73 // pred_check
          %p1024 = pneg %p1023
        $region84: #{_lambda_.3} parent=73 // pred_check_branch
          %1026 = sbr.rel (%p1024) target = $region86
        $region85: #{_lambda_.3} parent=73 // pred_region
          %v1027 = vld [vmem:[#allocation2] sm:$0xff]
          %v1028 = vld [vmem:[#allocation2 + $0x8] sm:$0xff]
          %v1029 = vld [vmem:[#allocation2 + $0x10] sm:$0xff]
          %v1030 = vld [vmem:[#allocation2 + $0x18] sm:$0xff]
          %v1031 = vld [vmem:[#allocation2 + $0x20] sm:$0xff]
          %v1032 = vld [vmem:[#allocation2 + $0x28] sm:$0xff]
          %v1033 = vld [vmem:[#allocation2 + $0x30] sm:$0xff]
          %v1034 = vld [vmem:[#allocation2 + $0x38] sm:$0xff]
          %v1035 = vld [vmem:[#allocation2 + $0x40] sm:$0xff]
          %v1036 = vld [vmem:[#allocation2 + $0x48] sm:$0xff]
          %v1037 = vld [vmem:[#allocation2 + $0x50] sm:$0xff]
          %v1038 = vld [vmem:[#allocation2 + $0x58] sm:$0xff]
          %v1039 = vld [vmem:[#allocation2 + $0x60] sm:$0xff]
          %v1040 = vld [vmem:[#allocation2 + $0x68] sm:$0xff]
          %v1041 = vld [vmem:[#allocation2 + $0x70] sm:$0xff]
          %v1042 = vld [vmem:[#allocation2 + $0x78] sm:$0xff]
          %v1043 = vld [vmem:[#allocation2 + $0x80] sm:$0xff]
          %v1044 = vld [vmem:[#allocation2 + $0x88] sm:$0xff]
          %v1045 = vld [vmem:[#allocation2 + $0x90] sm:$0xff]
          %v1046 = vld [vmem:[#allocation2 + $0x98] sm:$0xff]
          %v1047 = vld [vmem:[#allocation2 + $0xa0] sm:$0xff]
          %v1048 = vld [vmem:[#allocation2 + $0xa8] sm:$0xff]
          %v1049 = vld [vmem:[#allocation2 + $0xb0] sm:$0xff]
          %v1050 = vld [vmem:[#allocation2 + $0xb8] sm:$0xff]
          %v1051 = vld [vmem:[#allocation2 + $0xc0] sm:$0xff]
          %v1052 = vld [vmem:[#allocation2 + $0xc8] sm:$0xff]
          %v1053 = vld [vmem:[#allocation2 + $0xd0] sm:$0xff]
          %v1054 = vld [vmem:[#allocation2 + $0xd8] sm:$0xff]
          %v1055 = vld [vmem:[#allocation2 + $0xe0] sm:$0xff]
          %v1056 = vld [vmem:[#allocation2 + $0xe8] sm:$0xff]
          %v1057 = vld [vmem:[#allocation2 + $0xf0] sm:$0xff]
          %v1058 = vld [vmem:[#allocation2 + $0xf8] sm:$0xff]
          %v1059 = vpack.c.bf16 %v1028, %v1027
          %v1060 = vpack.c.bf16 %v1030, %v1029
          %v1061 = vpack.c.bf16 %v1032, %v1031
          %v1062 = vpack.c.bf16 %v1034, %v1033
          %v1063 = vpack.c.bf16 %v1036, %v1035
          %v1064 = vpack.c.bf16 %v1038, %v1037
          %v1065 = vpack.c.bf16 %v1040, %v1039
          %v1066 = vpack.c.bf16 %v1042, %v1041
          %v1067 = vpack.c.bf16 %v1044, %v1043
          %v1068 = vpack.c.bf16 %v1046, %v1045
          %v1069 = vpack.c.bf16 %v1048, %v1047
          %v1070 = vpack.c.bf16 %v1050, %v1049
          %v1071 = vpack.c.bf16 %v1052, %v1051
          %v1072 = vpack.c.bf16 %v1054, %v1053
          %v1073 = vpack.c.bf16 %v1056, %v1055
          %v1074 = vpack.c.bf16 %v1058, %v1057
          %s1075 = smul.u32 %s20, 256
          %s1076 = sshra.s32 %s1075, 3
          %s1077 = sand.u32 %s1075, 7
          %s1078 = smul.addr %s1076, 4
          %s1079 = scalar_lea.vmem %s1, %s1078
          %v1080 = vld [vmem:[%s1079] sm:$0xf]
          %v1081 = vld [vmem:[%s1079 + $0x4] sm:$0xf]
          %v1082 = vld [vmem:[%s1079 + $0x8] sm:$0xf]
          %v1083 = vld [vmem:[%s1079 + $0xc] sm:$0xf]
          %v1084 = vld [vmem:[%s1079 + $0x10] sm:$0xf]
          %v1085 = vld [vmem:[%s1079 + $0x14] sm:$0xf]
          %v1086 = vld [vmem:[%s1079 + $0x18] sm:$0xf]
          %v1087 = vld [vmem:[%s1079 + $0x1c] sm:$0xf]
          %v1088 = vld [vmem:[%s1079 + $0x20] sm:$0xf]
          %v1089 = vld [vmem:[%s1079 + $0x24] sm:$0xf]
          %v1090 = vld [vmem:[%s1079 + $0x28] sm:$0xf]
          %v1091 = vld [vmem:[%s1079 + $0x2c] sm:$0xf]
          %v1092 = vld [vmem:[%s1079 + $0x30] sm:$0xf]
          %v1093 = vld [vmem:[%s1079 + $0x34] sm:$0xf]
          %v1094 = vld [vmem:[%s1079 + $0x38] sm:$0xf]
          %v1095 = vld [vmem:[%s1079 + $0x3c] sm:$0xf]
          %v1096 = vld [vmem:[%s1079 + $0x40] sm:$0xf]
          %v1097 = vld [vmem:[%s1079 + $0x44] sm:$0xf]
          %v1098 = vld [vmem:[%s1079 + $0x48] sm:$0xf]
          %v1099 = vld [vmem:[%s1079 + $0x4c] sm:$0xf]
          %v1100 = vld [vmem:[%s1079 + $0x50] sm:$0xf]
          %v1101 = vld [vmem:[%s1079 + $0x54] sm:$0xf]
          %v1102 = vld [vmem:[%s1079 + $0x58] sm:$0xf]
          %v1103 = vld [vmem:[%s1079 + $0x5c] sm:$0xf]
          %v1104 = vld [vmem:[%s1079 + $0x60] sm:$0xf]
          %v1105 = vld [vmem:[%s1079 + $0x64] sm:$0xf]
          %v1106 = vld [vmem:[%s1079 + $0x68] sm:$0xf]
          %v1107 = vld [vmem:[%s1079 + $0x6c] sm:$0xf]
          %v1108 = vld [vmem:[%s1079 + $0x70] sm:$0xf]
          %v1109 = vld [vmem:[%s1079 + $0x74] sm:$0xf]
          %v1110 = vld [vmem:[%s1079 + $0x78] sm:$0xf]
          %v1111 = vld [vmem:[%s1079 + $0x7c] sm:$0xf]
          %v1112 = vld [vmem:[%s2] sm:$0xf]
          %v1113 = vld [vmem:[%s2 + $0x4] sm:$0xf]
          %v1114 = vld [vmem:[%s2 + $0x8] sm:$0xf]
          %v1115 = vld [vmem:[%s2 + $0xc] sm:$0xf]
          %v1116 = vld [vmem:[%s2 + $0x10] sm:$0xf]
          %v1117 = vld [vmem:[%s2 + $0x14] sm:$0xf]
          %v1118 = vld [vmem:[%s2 + $0x18] sm:$0xf]
          %v1119 = vld [vmem:[%s2 + $0x1c] sm:$0xf]
          %v1120 = vld [vmem:[%s2 + $0x20] sm:$0xf]
          %v1121 = vld [vmem:[%s2 + $0x24] sm:$0xf]
          %v1122 = vld [vmem:[%s2 + $0x28] sm:$0xf]
          %v1123 = vld [vmem:[%s2 + $0x2c] sm:$0xf]
          %v1124 = vld [vmem:[%s2 + $0x30] sm:$0xf]
          %v1125 = vld [vmem:[%s2 + $0x34] sm:$0xf]
          %v1126 = vld [vmem:[%s2 + $0x38] sm:$0xf]
          %v1127 = vld [vmem:[%s2 + $0x3c] sm:$0xf]
          %v1128 = vld [vmem:[%s3] sm:$0xf]
          %v1129 = vld [vmem:[%s3 + $0x4] sm:$0xf]
          %v1130 = vld [vmem:[%s3 + $0x8] sm:$0xf]
          %v1131 = vld [vmem:[%s3 + $0xc] sm:$0xf]
          %v1132 = vld [vmem:[%s3 + $0x10] sm:$0xf]
          %v1133 = vld [vmem:[%s3 + $0x14] sm:$0xf]
          %v1134 = vld [vmem:[%s3 + $0x18] sm:$0xf]
          %v1135 = vld [vmem:[%s3 + $0x1c] sm:$0xf]
          %v1136 = vld [vmem:[%s3 + $0x20] sm:$0xf]
          %v1137 = vld [vmem:[%s3 + $0x24] sm:$0xf]
          %v1138 = vld [vmem:[%s3 + $0x28] sm:$0xf]
          %v1139 = vld [vmem:[%s3 + $0x2c] sm:$0xf]
          %v1140 = vld [vmem:[%s3 + $0x30] sm:$0xf]
          %v1141 = vld [vmem:[%s3 + $0x34] sm:$0xf]
          %v1142 = vld [vmem:[%s3 + $0x38] sm:$0xf]
          %v1143 = vld [vmem:[%s3 + $0x3c] sm:$0xf]
          %v1176 = vunpack.c.l.b16 %v1080
          %v1177 = vunpack.c.l.b16 %v1081
          %v1178 = vunpack.c.l.b16 %v1082
          %v1179 = vunpack.c.l.b16 %v1083
          %v1180 = vunpack.c.l.b16 %v1084
          %v1181 = vunpack.c.l.b16 %v1085
          %v1182 = vunpack.c.l.b16 %v1086
          %v1183 = vunpack.c.l.b16 %v1087
          %v1184 = vunpack.c.l.b16 %v1088
          %v1185 = vunpack.c.l.b16 %v1089
          %v1186 = vunpack.c.l.b16 %v1090
          %v1187 = vunpack.c.l.b16 %v1091
          %v1188 = vunpack.c.l.b16 %v1092
          %v1189 = vunpack.c.l.b16 %v1093
          %v1190 = vunpack.c.l.b16 %v1094
          %v1191 = vunpack.c.l.b16 %v1095
          %v1192 = vunpack.c.l.b16 %v1096
          %v1193 = vunpack.c.l.b16 %v1097
          %v1194 = vunpack.c.l.b16 %v1098
          %v1195 = vunpack.c.l.b16 %v1099
          %v1196 = vunpack.c.l.b16 %v1100
          %v1197 = vunpack.c.l.b16 %v1101
          %v1198 = vunpack.c.l.b16 %v1102
          %v1199 = vunpack.c.l.b16 %v1103
          %v1200 = vunpack.c.l.b16 %v1104
          %v1201 = vunpack.c.l.b16 %v1105
          %v1202 = vunpack.c.l.b16 %v1106
          %v1203 = vunpack.c.l.b16 %v1107
          %v1204 = vunpack.c.l.b16 %v1108
          %v1205 = vunpack.c.l.b16 %v1109
          %v1206 = vunpack.c.l.b16 %v1110
          %v1207 = vunpack.c.l.b16 %v1111
          %v1208 = vpack.c.b16 %v1177, %v1176
          %v1209 = vpack.c.b16 %v1179, %v1178
          %v1210 = vpack.c.b16 %v1181, %v1180
          %v1211 = vpack.c.b16 %v1183, %v1182
          %v1212 = vpack.c.b16 %v1185, %v1184
          %v1213 = vpack.c.b16 %v1187, %v1186
          %v1214 = vpack.c.b16 %v1189, %v1188
          %v1215 = vpack.c.b16 %v1191, %v1190
          %v1216 = vpack.c.b16 %v1193, %v1192
          %v1217 = vpack.c.b16 %v1195, %v1194
          %v1218 = vpack.c.b16 %v1197, %v1196
          %v1219 = vpack.c.b16 %v1199, %v1198
          %v1220 = vpack.c.b16 %v1201, %v1200
          %v1221 = vpack.c.b16 %v1203, %v1202
          %v1222 = vpack.c.b16 %v1205, %v1204
          %v1223 = vpack.c.b16 %v1207, %v1206
          %v1256 = vunpack.c.l.b16 %v1128
          %v1257 = vunpack.c.l.b16 %v1129
          %v1258 = vunpack.c.l.b16 %v1130
          %v1259 = vunpack.c.l.b16 %v1131
          %v1260 = vunpack.c.l.b16 %v1132
          %v1261 = vunpack.c.l.b16 %v1133
          %v1262 = vunpack.c.l.b16 %v1134
          %v1263 = vunpack.c.l.b16 %v1135
          %v1264 = vunpack.c.l.b16 %v1136
          %v1265 = vunpack.c.l.b16 %v1137
          %v1266 = vunpack.c.l.b16 %v1138
          %v1267 = vunpack.c.l.b16 %v1139
          %v1268 = vunpack.c.l.b16 %v1140
          %v1269 = vunpack.c.l.b16 %v1141
          %v1270 = vunpack.c.l.b16 %v1142
          %v1271 = vunpack.c.l.b16 %v1143
          %v1272 = vpack.c.b16 %v1257, %v1256
          %v1273 = vpack.c.b16 %v1259, %v1258
          %v1274 = vpack.c.b16 %v1261, %v1260
          %v1275 = vpack.c.b16 %v1263, %v1262
          %v1276 = vpack.c.b16 %v1265, %v1264
          %v1277 = vpack.c.b16 %v1267, %v1266
          %v1278 = vpack.c.b16 %v1269, %v1268
          %v1279 = vpack.c.b16 %v1271, %v1270
          %1288 = vmatprep.subr.bf16.mxu0 0
          %1289 = vmatpush1.bf16.msra.mxu0 %v1272
          %1290 = vmatprep.subr.bf16.mxu0 0
          %1291 = vmatpush1.bf16.msra.mxu0 %v1273
          %1292 = vmatprep.subr.bf16.mxu0 0
          %1293 = vmatpush1.bf16.msra.mxu0 %v1274
          %1294 = vmatprep.subr.bf16.mxu0 0
          %1295 = vmatpush1.bf16.msra.mxu0 %v1275
          %1296 = vmatprep.subr.bf16.mxu0 0
          %1297 = vmatpush1.bf16.msra.mxu0 %v1276
          %1298 = vmatprep.subr.bf16.mxu0 0
          %1299 = vmatpush1.bf16.msra.mxu0 %v1277
          %1300 = vmatprep.subr.bf16.mxu0 0
          %1301 = vmatpush1.bf16.msra.mxu0 %v1278
          %1302 = vmatprep.subr.bf16.mxu0 0
          %1303 = vmatpush1.bf16.msra.mxu0 %v1279
          %1304 = vmatprep.subr.bf16.mxu0 0
          %1305 = vmatpush1.bf16.msra.mxu0 0
          %1306 = vmatprep.subr.bf16.mxu0 0
          %1307 = vmatpush1.bf16.msra.mxu0 0
          %1308 = vmatprep.subr.bf16.mxu0 0
          %1309 = vmatpush1.bf16.msra.mxu0 0
          %1310 = vmatprep.subr.bf16.mxu0 0
          %1311 = vmatpush1.bf16.msra.mxu0 0
          %1312 = vmatprep.subr.bf16.mxu0 0
          %1313 = vmatpush1.bf16.msra.mxu0 0
          %1314 = vmatprep.subr.bf16.mxu0 0
          %1315 = vmatpush1.bf16.msra.mxu0 0
          %1316 = vmatprep.subr.bf16.mxu0 0
          %1317 = vmatpush1.bf16.msra.mxu0 0
          %1318 = vmatprep.subr.bf16.mxu0 0
          %1319 = vmatpush1.bf16.msra.mxu0 0
          %1320 = vmatprep.mubr.bf16.mxu0 0
          %1321 = vmatmul.mubr.bf16.gmra.mrb[0].mxu0 %v1208
          %v1322 = vpop.f32.mrb[0].mxu0
          %v1323 = vadd.f32 0.0, %v1322
          %v1324 = vpop.f32.mrb[0].mxu0
          %v1325 = vpop.f32.mrb[0].mxu0
          %v1326 = vadd.f32 0.0, %v1325
          %v1327 = vpop.f32.mrb[0].mxu0
          %1328 = vmatprep.mubr.bf16.mxu0 0
          %1329 = vmatmul.mubr.bf16.gmra.mrb[0].mxu0 %v1209
          %v1330 = vpop.f32.mrb[0].mxu0
          %v1331 = vadd.f32 0.0, %v1330
          %v1332 = vpop.f32.mrb[0].mxu0
          %v1333 = vpop.f32.mrb[0].mxu0
          %v1334 = vadd.f32 0.0, %v1333
          %v1335 = vpop.f32.mrb[0].mxu0
          %1336 = vmatprep.mubr.bf16.mxu0 0
          %1337 = vmatmul.mubr.bf16.gmra.mrb[0].mxu0 %v1210
          %v1338 = vpop.f32.mrb[0].mxu0
          %v1339 = vadd.f32 0.0, %v1338
          %v1340 = vpop.f32.mrb[0].mxu0
          %v1341 = vpop.f32.mrb[0].mxu0
          %v1342 = vadd.f32 0.0, %v1341
          %v1343 = vpop.f32.mrb[0].mxu0
          %1344 = vmatprep.mubr.bf16.mxu0 0
          %1345 = vmatmul.mubr.bf16.gmra.mrb[0].mxu0 %v1211
          %v1346 = vpop.f32.mrb[0].mxu0
          %v1347 = vadd.f32 0.0, %v1346
          %v1348 = vpop.f32.mrb[0].mxu0
          %v1349 = vpop.f32.mrb[0].mxu0
          %v1350 = vadd.f32 0.0, %v1349
          %v1351 = vpop.f32.mrb[0].mxu0
          %1352 = vmatprep.mubr.bf16.mxu0 0
          %1353 = vmatmul.mubr.bf16.gmra.mrb[0].mxu0 %v1212
          %v1354 = vpop.f32.mrb[0].mxu0
          %v1355 = vadd.f32 0.0, %v1354
          %v1356 = vpop.f32.mrb[0].mxu0
          %v1357 = vpop.f32.mrb[0].mxu0
          %v1358 = vadd.f32 0.0, %v1357
          %v1359 = vpop.f32.mrb[0].mxu0
          %1360 = vmatprep.mubr.bf16.mxu0 0
          %1361 = vmatmul.mubr.bf16.gmra.mrb[0].mxu0 %v1213
          %v1362 = vpop.f32.mrb[0].mxu0
          %v1363 = vadd.f32 0.0, %v1362
          %v1364 = vpop.f32.mrb[0].mxu0
          %v1365 = vpop.f32.mrb[0].mxu0
          %v1366 = vadd.f32 0.0, %v1365
          %v1367 = vpop.f32.mrb[0].mxu0
          %1368 = vmatprep.mubr.bf16.mxu0 0
          %1369 = vmatmul.mubr.bf16.gmra.mrb[0].mxu0 %v1214
          %v1370 = vpop.f32.mrb[0].mxu0
          %v1371 = vadd.f32 0.0, %v1370
          %v1372 = vpop.f32.mrb[0].mxu0
          %v1373 = vpop.f32.mrb[0].mxu0
          %v1374 = vadd.f32 0.0, %v1373
          %v1375 = vpop.f32.mrb[0].mxu0
          %1376 = vmatprep.mubr.bf16.mxu0 0
          %1377 = vmatmul.mubr.bf16.gmra.mrb[0].mxu0 %v1215
          %v1378 = vpop.f32.mrb[0].mxu0
          %v1379 = vadd.f32 0.0, %v1378
          %v1380 = vpop.f32.mrb[0].mxu0
          %v1381 = vpop.f32.mrb[0].mxu0
          %v1382 = vadd.f32 0.0, %v1381
          %v1383 = vpop.f32.mrb[0].mxu0
          %1384 = vmatprep.mubr.bf16.mxu0 0
          %1385 = vmatmul.mubr.bf16.gmra.mrb[0].mxu0 %v1216
          %v1386 = vpop.f32.mrb[0].mxu0
          %v1387 = vadd.f32 0.0, %v1386
          %v1388 = vpop.f32.mrb[0].mxu0
          %v1389 = vpop.f32.mrb[0].mxu0
          %v1390 = vadd.f32 0.0, %v1389
          %v1391 = vpop.f32.mrb[0].mxu0
          %1392 = vmatprep.mubr.bf16.mxu0 0
          %1393 = vmatmul.mubr.bf16.gmra.mrb[0].mxu0 %v1217
          %v1394 = vpop.f32.mrb[0].mxu0
          %v1395 = vadd.f32 0.0, %v1394
          %v1396 = vpop.f32.mrb[0].mxu0
          %v1397 = vpop.f32.mrb[0].mxu0
          %v1398 = vadd.f32 0.0, %v1397
          %v1399 = vpop.f32.mrb[0].mxu0
          %1400 = vmatprep.mubr.bf16.mxu0 0
          %1401 = vmatmul.mubr.bf16.gmra.mrb[0].mxu0 %v1218
          %v1402 = vpop.f32.mrb[0].mxu0
          %v1403 = vadd.f32 0.0, %v1402
          %v1404 = vpop.f32.mrb[0].mxu0
          %v1405 = vpop.f32.mrb[0].mxu0
          %v1406 = vadd.f32 0.0, %v1405
          %v1407 = vpop.f32.mrb[0].mxu0
          %1408 = vmatprep.mubr.bf16.mxu0 0
          %1409 = vmatmul.mubr.bf16.gmra.mrb[0].mxu0 %v1219
          %v1410 = vpop.f32.mrb[0].mxu0
          %v1411 = vadd.f32 0.0, %v1410
          %v1412 = vpop.f32.mrb[0].mxu0
          %v1413 = vpop.f32.mrb[0].mxu0
          %v1414 = vadd.f32 0.0, %v1413
          %v1415 = vpop.f32.mrb[0].mxu0
          %1416 = vmatprep.mubr.bf16.mxu0 0
          %1417 = vmatmul.mubr.bf16.gmra.mrb[0].mxu0 %v1220
          %v1418 = vpop.f32.mrb[0].mxu0
          %v1419 = vadd.f32 0.0, %v1418
          %v1420 = vpop.f32.mrb[0].mxu0
          %v1421 = vpop.f32.mrb[0].mxu0
          %v1422 = vadd.f32 0.0, %v1421
          %v1423 = vpop.f32.mrb[0].mxu0
          %1424 = vmatprep.mubr.bf16.mxu0 0
          %1425 = vmatmul.mubr.bf16.gmra.mrb[0].mxu0 %v1221
          %v1426 = vpop.f32.mrb[0].mxu0
          %v1427 = vadd.f32 0.0, %v1426
          %v1428 = vpop.f32.mrb[0].mxu0
          %v1429 = vpop.f32.mrb[0].mxu0
          %v1430 = vadd.f32 0.0, %v1429
          %v1431 = vpop.f32.mrb[0].mxu0
          %1432 = vmatprep.mubr.bf16.mxu0 0
          %1433 = vmatmul.mubr.bf16.gmra.mrb[0].mxu0 %v1222
          %v1434 = vpop.f32.mrb[0].mxu0
          %v1435 = vadd.f32 0.0, %v1434
          %v1436 = vpop.f32.mrb[0].mxu0
          %v1437 = vpop.f32.mrb[0].mxu0
          %v1438 = vadd.f32 0.0, %v1437
          %v1439 = vpop.f32.mrb[0].mxu0
          %1440 = vmatprep.mubr.bf16.mxu0 0
          %1441 = vmatmul.mubr.bf16.gmra.mrb[0].mxu0 %v1223
          %v1442 = vpop.f32.mrb[0].mxu0
          %v1443 = vadd.f32 0.0, %v1442
          %v1444 = vpop.f32.mrb[0].mxu0
          %v1445 = vpop.f32.mrb[0].mxu0
          %v1446 = vadd.f32 0.0, %v1445
          %v1447 = vpop.f32.mrb[0].mxu0
          %1448 = vdwg.mxu0
          %v1465 = vunpack.c.l.b16 %v1112
          %v1466 = vunpack.c.l.b16 %v1113
          %v1467 = vunpack.c.l.b16 %v1114
          %v1468 = vunpack.c.l.b16 %v1115
          %v1469 = vunpack.c.l.b16 %v1116
          %v1470 = vunpack.c.l.b16 %v1117
          %v1471 = vunpack.c.l.b16 %v1118
          %v1472 = vunpack.c.l.b16 %v1119
          %v1473 = vunpack.c.l.b16 %v1120
          %v1474 = vunpack.c.l.b16 %v1121
          %v1475 = vunpack.c.l.b16 %v1122
          %v1476 = vunpack.c.l.b16 %v1123
          %v1477 = vunpack.c.l.b16 %v1124
          %v1478 = vunpack.c.l.b16 %v1125
          %v1479 = vunpack.c.l.b16 %v1126
          %v1480 = vunpack.c.l.b16 %v1127
          %v1481 = vpack.c.b16 %v1466, %v1465
          %v1482 = vpack.c.b16 %v1468, %v1467
          %v1483 = vpack.c.b16 %v1470, %v1469
          %v1484 = vpack.c.b16 %v1472, %v1471
          %v1485 = vpack.c.b16 %v1474, %v1473
          %v1486 = vpack.c.b16 %v1476, %v1475
          %v1487 = vpack.c.b16 %v1478, %v1477
          %v1488 = vpack.c.b16 %v1480, %v1479
          %1497 = vmatprep.subr.bf16.mxu0 0
          %1498 = vmatpush1.bf16.msra.mxu0 %v1481
          %1499 = vmatprep.subr.bf16.mxu0 0
          %1500 = vmatpush1.bf16.msra.mxu0 %v1482
          %1501 = vmatprep.subr.bf16.mxu0 0
          %1502 = vmatpush1.bf16.msra.mxu0 %v1483
          %1503 = vmatprep.subr.bf16.mxu0 0
          %1504 = vmatpush1.bf16.msra.mxu0 %v1484
          %1505 = vmatprep.subr.bf16.mxu0 0
          %1506 = vmatpush1.bf16.msra.mxu0 %v1485
          %1507 = vmatprep.subr.bf16.mxu0 0
          %1508 = vmatpush1.bf16.msra.mxu0 %v1486
          %1509 = vmatprep.subr.bf16.mxu0 0
          %1510 = vmatpush1.bf16.msra.mxu0 %v1487
          %1511 = vmatprep.subr.bf16.mxu0 0
          %1512 = vmatpush1.bf16.msra.mxu0 %v1488
          %1513 = vmatprep.subr.bf16.mxu0 0
          %1514 = vmatpush1.bf16.msra.mxu0 0
          %1515 = vmatprep.subr.bf16.mxu0 0
          %1516 = vmatpush1.bf16.msra.mxu0 0
          %1517 = vmatprep.subr.bf16.mxu0 0
          %1518 = vmatpush1.bf16.msra.mxu0 0
          %1519 = vmatprep.subr.bf16.mxu0 0
          %1520 = vmatpush1.bf16.msra.mxu0 0
          %1521 = vmatprep.subr.bf16.mxu0 0
          %1522 = vmatpush1.bf16.msra.mxu0 0
          %1523 = vmatprep.subr.bf16.mxu0 0
          %1524 = vmatpush1.bf16.msra.mxu0 0
          %1525 = vmatprep.subr.bf16.mxu0 0
          %1526 = vmatpush1.bf16.msra.mxu0 0
          %1527 = vmatprep.subr.bf16.mxu0 0
          %1528 = vmatpush1.bf16.msra.mxu0 0
          %1529 = vmatprep.mubr.bf16.mxu0 0
          %1530 = vmatmul.mubr.bf16.gmra.mrb[0].mxu0 %v1059
          %v1531 = vpop.f32.mrb[0].mxu0
          %v1532 = vadd.f32 %v1323, %v1531
          %v1533 = vpop.f32.mrb[0].mxu0
          %v1534 = vpop.f32.mrb[0].mxu0
          %v1535 = vadd.f32 %v1326, %v1534
          %v1536 = vpop.f32.mrb[0].mxu0
          %1537 = vmatprep.mubr.bf16.mxu0 0
          %1538 = vmatmul.mubr.bf16.gmra.mrb[0].mxu0 %v1060
          %v1539 = vpop.f32.mrb[0].mxu0
          %v1540 = vadd.f32 %v1331, %v1539
          %v1541 = vpop.f32.mrb[0].mxu0
          %v1542 = vpop.f32.mrb[0].mxu0
          %v1543 = vadd.f32 %v1334, %v1542
          %v1544 = vpop.f32.mrb[0].mxu0
          %1545 = vmatprep.mubr.bf16.mxu0 0
          %1546 = vmatmul.mubr.bf16.gmra.mrb[0].mxu0 %v1061
          %v1547 = vpop.f32.mrb[0].mxu0
          %v1548 = vadd.f32 %v1339, %v1547
          %v1549 = vpop.f32.mrb[0].mxu0
          %v1550 = vpop.f32.mrb[0].mxu0
          %v1551 = vadd.f32 %v1342, %v1550
          %v1552 = vpop.f32.mrb[0].mxu0
          %1553 = vmatprep.mubr.bf16.mxu0 0
          %1554 = vmatmul.mubr.bf16.gmra.mrb[0].mxu0 %v1062
          %v1555 = vpop.f32.mrb[0].mxu0
          %v1556 = vadd.f32 %v1347, %v1555
          %v1557 = vpop.f32.mrb[0].mxu0
          %v1558 = vpop.f32.mrb[0].mxu0
          %v1559 = vadd.f32 %v1350, %v1558
          %v1560 = vpop.f32.mrb[0].mxu0
          %1561 = vmatprep.mubr.bf16.mxu0 0
          %1562 = vmatmul.mubr.bf16.gmra.mrb[0].mxu0 %v1063
          %v1563 = vpop.f32.mrb[0].mxu0
          %v1564 = vadd.f32 %v1355, %v1563
          %v1565 = vpop.f32.mrb[0].mxu0
          %v1566 = vpop.f32.mrb[0].mxu0
          %v1567 = vadd.f32 %v1358, %v1566
          %v1568 = vpop.f32.mrb[0].mxu0
          %1569 = vmatprep.mubr.bf16.mxu0 0
          %1570 = vmatmul.mubr.bf16.gmra.mrb[0].mxu0 %v1064
          %v1571 = vpop.f32.mrb[0].mxu0
          %v1572 = vadd.f32 %v1363, %v1571
          %v1573 = vpop.f32.mrb[0].mxu0
          %v1574 = vpop.f32.mrb[0].mxu0
          %v1575 = vadd.f32 %v1366, %v1574
          %v1576 = vpop.f32.mrb[0].mxu0
          %1577 = vmatprep.mubr.bf16.mxu0 0
          %1578 = vmatmul.mubr.bf16.gmra.mrb[0].mxu0 %v1065
          %v1579 = vpop.f32.mrb[0].mxu0
          %v1580 = vadd.f32 %v1371, %v1579
          %v1581 = vpop.f32.mrb[0].mxu0
          %v1582 = vpop.f32.mrb[0].mxu0
          %v1583 = vadd.f32 %v1374, %v1582
          %v1584 = vpop.f32.mrb[0].mxu0
          %1585 = vmatprep.mubr.bf16.mxu0 0
          %1586 = vmatmul.mubr.bf16.gmra.mrb[0].mxu0 %v1066
          %v1587 = vpop.f32.mrb[0].mxu0
          %v1588 = vadd.f32 %v1379, %v1587
          %v1589 = vpop.f32.mrb[0].mxu0
          %v1590 = vpop.f32.mrb[0].mxu0
          %v1591 = vadd.f32 %v1382, %v1590
          %v1592 = vpop.f32.mrb[0].mxu0
          %1593 = vmatprep.mubr.bf16.mxu0 0
          %1594 = vmatmul.mubr.bf16.gmra.mrb[0].mxu0 %v1067
          %v1595 = vpop.f32.mrb[0].mxu0
          %v1596 = vadd.f32 %v1387, %v1595
          %v1597 = vpop.f32.mrb[0].mxu0
          %v1598 = vpop.f32.mrb[0].mxu0
          %v1599 = vadd.f32 %v1390, %v1598
          %v1600 = vpop.f32.mrb[0].mxu0
          %1601 = vmatprep.mubr.bf16.mxu0 0
          %1602 = vmatmul.mubr.bf16.gmra.mrb[0].mxu0 %v1068
          %v1603 = vpop.f32.mrb[0].mxu0
          %v1604 = vadd.f32 %v1395, %v1603
          %v1605 = vpop.f32.mrb[0].mxu0
          %v1606 = vpop.f32.mrb[0].mxu0
          %v1607 = vadd.f32 %v1398, %v1606
          %v1608 = vpop.f32.mrb[0].mxu0
          %1609 = vmatprep.mubr.bf16.mxu0 0
          %1610 = vmatmul.mubr.bf16.gmra.mrb[0].mxu0 %v1069
          %v1611 = vpop.f32.mrb[0].mxu0
          %v1612 = vadd.f32 %v1403, %v1611
          %v1613 = vpop.f32.mrb[0].mxu0
          %v1614 = vpop.f32.mrb[0].mxu0
          %v1615 = vadd.f32 %v1406, %v1614
          %v1616 = vpop.f32.mrb[0].mxu0
          %1617 = vmatprep.mubr.bf16.mxu0 0
          %1618 = vmatmul.mubr.bf16.gmra.mrb[0].mxu0 %v1070
          %v1619 = vpop.f32.mrb[0].mxu0
          %v1620 = vadd.f32 %v1411, %v1619
          %v1621 = vpop.f32.mrb[0].mxu0
          %v1622 = vpop.f32.mrb[0].mxu0
          %v1623 = vadd.f32 %v1414, %v1622
          %v1624 = vpop.f32.mrb[0].mxu0
          %1625 = vmatprep.mubr.bf16.mxu0 0
          %1626 = vmatmul.mubr.bf16.gmra.mrb[0].mxu0 %v1071
          %v1627 = vpop.f32.mrb[0].mxu0
          %v1628 = vadd.f32 %v1419, %v1627
          %v1629 = vpop.f32.mrb[0].mxu0
          %v1630 = vpop.f32.mrb[0].mxu0
          %v1631 = vadd.f32 %v1422, %v1630
          %v1632 = vpop.f32.mrb[0].mxu0
          %1633 = vmatprep.mubr.bf16.mxu0 0
          %1634 = vmatmul.mubr.bf16.gmra.mrb[0].mxu0 %v1072
          %v1635 = vpop.f32.mrb[0].mxu0
          %v1636 = vadd.f32 %v1427, %v1635
          %v1637 = vpop.f32.mrb[0].mxu0
          %v1638 = vpop.f32.mrb[0].mxu0
          %v1639 = vadd.f32 %v1430, %v1638
          %v1640 = vpop.f32.mrb[0].mxu0
          %1641 = vmatprep.mubr.bf16.mxu0 0
          %1642 = vmatmul.mubr.bf16.gmra.mrb[0].mxu0 %v1073
          %v1643 = vpop.f32.mrb[0].mxu0
          %v1644 = vadd.f32 %v1435, %v1643
          %v1645 = vpop.f32.mrb[0].mxu0
          %v1646 = vpop.f32.mrb[0].mxu0
          %v1647 = vadd.f32 %v1438, %v1646
          %v1648 = vpop.f32.mrb[0].mxu0
          %1649 = vmatprep.mubr.bf16.mxu0 0
          %1650 = vmatmul.mubr.bf16.gmra.mrb[0].mxu0 %v1074
          %v1651 = vpop.f32.mrb[0].mxu0
          %v1652 = vadd.f32 %v1443, %v1651
          %v1653 = vpop.f32.mrb[0].mxu0
          %v1654 = vpop.f32.mrb[0].mxu0
          %v1655 = vadd.f32 %v1446, %v1654
          %v1656 = vpop.f32.mrb[0].mxu0
          %1657 = vdwg.mxu0
          %v1658 = vld [vmem:[%s4] sm:$0x1]
          %v1660 = vlaneseq
          %v1661 = vshrl.u32 %v1660, 7
          %v1662 = vsub.s32 0, %v1661
          %v1663 = vrot.slane %v1658, %v1662
          %v1665 = vadd.f32 %v1532, %v1663
          %v1666 = vadd.f32 %v1535, %v1663
          %v1667 = vadd.f32 %v1540, %v1663
          %v1668 = vadd.f32 %v1543, %v1663
          %v1669 = vadd.f32 %v1548, %v1663
          %v1670 = vadd.f32 %v1551, %v1663
          %v1671 = vadd.f32 %v1556, %v1663
          %v1672 = vadd.f32 %v1559, %v1663
          %v1673 = vadd.f32 %v1564, %v1663
          %v1674 = vadd.f32 %v1567, %v1663
          %v1675 = vadd.f32 %v1572, %v1663
          %v1676 = vadd.f32 %v1575, %v1663
          %v1677 = vadd.f32 %v1580, %v1663
          %v1678 = vadd.f32 %v1583, %v1663
          %v1679 = vadd.f32 %v1588, %v1663
          %v1680 = vadd.f32 %v1591, %v1663
          %v1681 = vadd.f32 %v1596, %v1663
          %v1682 = vadd.f32 %v1599, %v1663
          %v1683 = vadd.f32 %v1604, %v1663
          %v1684 = vadd.f32 %v1607, %v1663
          %v1685 = vadd.f32 %v1612, %v1663
          %v1686 = vadd.f32 %v1615, %v1663
          %v1687 = vadd.f32 %v1620, %v1663
          %v1688 = vadd.f32 %v1623, %v1663
          %v1689 = vadd.f32 %v1628, %v1663
          %v1690 = vadd.f32 %v1631, %v1663
          %v1691 = vadd.f32 %v1636, %v1663
          %v1692 = vadd.f32 %v1639, %v1663
          %v1693 = vadd.f32 %v1644, %v1663
          %v1694 = vadd.f32 %v1647, %v1663
          %v1695 = vadd.f32 %v1652, %v1663
          %v1696 = vadd.f32 %v1655, %v1663
          %v1697 = vlaneseq
          %v1698 = vand.u32 %v1697, 127
          %vm1699 = vcmp.lt.s32.totalorder %v1698, 4
          %v1700 = vsel %vm1699, %v1665, -1e+30
          %v1701 = vsel %vm1699, %v1666, -1e+30
          %v1702 = vsel %vm1699, %v1667, -1e+30
          %v1703 = vsel %vm1699, %v1668, -1e+30
          %v1704 = vsel %vm1699, %v1669, -1e+30
          %v1705 = vsel %vm1699, %v1670, -1e+30
          %v1706 = vsel %vm1699, %v1671, -1e+30
          %v1707 = vsel %vm1699, %v1672, -1e+30
          %v1708 = vsel %vm1699, %v1673, -1e+30
          %v1709 = vsel %vm1699, %v1674, -1e+30
          %v1710 = vsel %vm1699, %v1675, -1e+30
          %v1711 = vsel %vm1699, %v1676, -1e+30
          %v1712 = vsel %vm1699, %v1677, -1e+30
          %v1713 = vsel %vm1699, %v1678, -1e+30
          %v1714 = vsel %vm1699, %v1679, -1e+30
          %v1715 = vsel %vm1699, %v1680, -1e+30
          %v1716 = vsel %vm1699, %v1681, -1e+30
          %v1717 = vsel %vm1699, %v1682, -1e+30
          %v1718 = vsel %vm1699, %v1683, -1e+30
          %v1719 = vsel %vm1699, %v1684, -1e+30
          %v1720 = vsel %vm1699, %v1685, -1e+30
          %v1721 = vsel %vm1699, %v1686, -1e+30
          %v1722 = vsel %vm1699, %v1687, -1e+30
          %v1723 = vsel %vm1699, %v1688, -1e+30
          %v1724 = vsel %vm1699, %v1689, -1e+30
          %v1725 = vsel %vm1699, %v1690, -1e+30
          %v1726 = vsel %vm1699, %v1691, -1e+30
          %v1727 = vsel %vm1699, %v1692, -1e+30
          %v1728 = vsel %vm1699, %v1693, -1e+30
          %v1729 = vsel %vm1699, %v1694, -1e+30
          %v1730 = vsel %vm1699, %v1695, -1e+30
          %v1731 = vsel %vm1699, %v1696, -1e+30
          %1732 = vmax.xlane.f32.xlu0 %v1700
          %v1733 = vpop.xlane.xlu0 %1732
          %1734 = vmax.xlane.f32.xlu0 %v1701
          %v1735 = vpop.xlane.xlu0 %1734
          %1736 = vmax.xlane.f32.xlu0 %v1702
          %v1737 = vpop.xlane.xlu0 %1736
          %1738 = vmax.xlane.f32.xlu0 %v1703
          %v1739 = vpop.xlane.xlu0 %1738
          %1740 = vmax.xlane.f32.xlu0 %v1704
          %v1741 = vpop.xlane.xlu0 %1740
          %1742 = vmax.xlane.f32.xlu0 %v1705
          %v1743 = vpop.xlane.xlu0 %1742
          %1744 = vmax.xlane.f32.xlu0 %v1706
          %v1745 = vpop.xlane.xlu0 %1744
          %1746 = vmax.xlane.f32.xlu0 %v1707
          %v1747 = vpop.xlane.xlu0 %1746
          %1748 = vmax.xlane.f32.xlu0 %v1708
          %v1749 = vpop.xlane.xlu0 %1748
          %1750 = vmax.xlane.f32.xlu0 %v1709
          %v1751 = vpop.xlane.xlu0 %1750
          %1752 = vmax.xlane.f32.xlu0 %v1710
          %v1753 = vpop.xlane.xlu0 %1752
          %1754 = vmax.xlane.f32.xlu0 %v1711
          %v1755 = vpop.xlane.xlu0 %1754
          %1756 = vmax.xlane.f32.xlu0 %v1712
          %v1757 = vpop.xlane.xlu0 %1756
          %1758 = vmax.xlane.f32.xlu0 %v1713
          %v1759 = vpop.xlane.xlu0 %1758
          %1760 = vmax.xlane.f32.xlu0 %v1714
          %v1761 = vpop.xlane.xlu0 %1760
          %1762 = vmax.xlane.f32.xlu0 %v1715
          %v1763 = vpop.xlane.xlu0 %1762
          %1764 = vmax.xlane.f32.xlu0 %v1716
          %v1765 = vpop.xlane.xlu0 %1764
          %1766 = vmax.xlane.f32.xlu0 %v1717
          %v1767 = vpop.xlane.xlu0 %1766
          %1768 = vmax.xlane.f32.xlu0 %v1718
          %v1769 = vpop.xlane.xlu0 %1768
          %1770 = vmax.xlane.f32.xlu0 %v1719
          %v1771 = vpop.xlane.xlu0 %1770
          %1772 = vmax.xlane.f32.xlu0 %v1720
          %v1773 = vpop.xlane.xlu0 %1772
          %1774 = vmax.xlane.f32.xlu0 %v1721
          %v1775 = vpop.xlane.xlu0 %1774
          %1776 = vmax.xlane.f32.xlu0 %v1722
          %v1777 = vpop.xlane.xlu0 %1776
          %1778 = vmax.xlane.f32.xlu0 %v1723
          %v1779 = vpop.xlane.xlu0 %1778
          %1780 = vmax.xlane.f32.xlu0 %v1724
          %v1781 = vpop.xlane.xlu0 %1780
          %1782 = vmax.xlane.f32.xlu0 %v1725
          %v1783 = vpop.xlane.xlu0 %1782
          %1784 = vmax.xlane.f32.xlu0 %v1726
          %v1785 = vpop.xlane.xlu0 %1784
          %1786 = vmax.xlane.f32.xlu0 %v1727
          %v1787 = vpop.xlane.xlu0 %1786
          %1788 = vmax.xlane.f32.xlu0 %v1728
          %v1789 = vpop.xlane.xlu0 %1788
          %1790 = vmax.xlane.f32.xlu0 %v1729
          %v1791 = vpop.xlane.xlu0 %1790
          %1792 = vmax.xlane.f32.xlu0 %v1730
          %v1793 = vpop.xlane.xlu0 %1792
          %1794 = vmax.xlane.f32.xlu0 %v1731
          %v1795 = vpop.xlane.xlu0 %1794
          %v1796 = vsub.f32 %v1700, %v1733
          %v1797 = vsub.f32 %v1701, %v1735
          %v1798 = vsub.f32 %v1702, %v1737
          %v1799 = vsub.f32 %v1703, %v1739
          %v1800 = vsub.f32 %v1704, %v1741
          %v1801 = vsub.f32 %v1705, %v1743
          %v1802 = vsub.f32 %v1706, %v1745
          %v1803 = vsub.f32 %v1707, %v1747
          %v1804 = vsub.f32 %v1708, %v1749
          %v1805 = vsub.f32 %v1709, %v1751
          %v1806 = vsub.f32 %v1710, %v1753
          %v1807 = vsub.f32 %v1711, %v1755
          %v1808 = vsub.f32 %v1712, %v1757
          %v1809 = vsub.f32 %v1713, %v1759
          %v1810 = vsub.f32 %v1714, %v1761
          %v1811 = vsub.f32 %v1715, %v1763
          %v1812 = vsub.f32 %v1716, %v1765
          %v1813 = vsub.f32 %v1717, %v1767
          %v1814 = vsub.f32 %v1718, %v1769
          %v1815 = vsub.f32 %v1719, %v1771
          %v1816 = vsub.f32 %v1720, %v1773
          %v1817 = vsub.f32 %v1721, %v1775
          %v1818 = vsub.f32 %v1722, %v1777
          %v1819 = vsub.f32 %v1723, %v1779
          %v1820 = vsub.f32 %v1724, %v1781
          %v1821 = vsub.f32 %v1725, %v1783
          %v1822 = vsub.f32 %v1726, %v1785
          %v1823 = vsub.f32 %v1727, %v1787
          %v1824 = vsub.f32 %v1728, %v1789
          %v1825 = vsub.f32 %v1729, %v1791
          %v1826 = vsub.f32 %v1730, %v1793
          %v1827 = vsub.f32 %v1731, %v1795
          %v1828 = vmul.f32 %v1796, 1.442695
          %v1829 = vpow.pop %v1828
          %v1830 = vmul.f32 %v1797, 1.442695
          %v1831 = vpow.pop %v1830
          %v1832 = vmul.f32 %v1798, 1.442695
          %v1833 = vpow.pop %v1832
          %v1834 = vmul.f32 %v1799, 1.442695
          %v1835 = vpow.pop %v1834
          %v1836 = vmul.f32 %v1800, 1.442695
          %v1837 = vpow.pop %v1836
          %v1838 = vmul.f32 %v1801, 1.442695
          %v1839 = vpow.pop %v1838
          %v1840 = vmul.f32 %v1802, 1.442695
          %v1841 = vpow.pop %v1840
          %v1842 = vmul.f32 %v1803, 1.442695
          %v1843 = vpow.pop %v1842
          %v1844 = vmul.f32 %v1804, 1.442695
          %v1845 = vpow.pop %v1844
          %v1846 = vmul.f32 %v1805, 1.442695
          %v1847 = vpow.pop %v1846
          %v1848 = vmul.f32 %v1806, 1.442695
          %v1849 = vpow.pop %v1848
          %v1850 = vmul.f32 %v1807, 1.442695
          %v1851 = vpow.pop %v1850
          %v1852 = vmul.f32 %v1808, 1.442695
          %v1853 = vpow.pop %v1852
          %v1854 = vmul.f32 %v1809, 1.442695
          %v1855 = vpow.pop %v1854
          %v1856 = vmul.f32 %v1810, 1.442695
          %v1857 = vpow.pop %v1856
          %v1858 = vmul.f32 %v1811, 1.442695
          %v1859 = vpow.pop %v1858
          %v1860 = vmul.f32 %v1812, 1.442695
          %v1861 = vpow.pop %v1860
          %v1862 = vmul.f32 %v1813, 1.442695
          %v1863 = vpow.pop %v1862
          %v1864 = vmul.f32 %v1814, 1.442695
          %v1865 = vpow.pop %v1864
          %v1866 = vmul.f32 %v1815, 1.442695
          %v1867 = vpow.pop %v1866
          %v1868 = vmul.f32 %v1816, 1.442695
          %v1869 = vpow.pop %v1868
          %v1870 = vmul.f32 %v1817, 1.442695
          %v1871 = vpow.pop %v1870
          %v1872 = vmul.f32 %v1818, 1.442695
          %v1873 = vpow.pop %v1872
          %v1874 = vmul.f32 %v1819, 1.442695
          %v1875 = vpow.pop %v1874
          %v1876 = vmul.f32 %v1820, 1.442695
          %v1877 = vpow.pop %v1876
          %v1878 = vmul.f32 %v1821, 1.442695
          %v1879 = vpow.pop %v1878
          %v1880 = vmul.f32 %v1822, 1.442695
          %v1881 = vpow.pop %v1880
          %v1882 = vmul.f32 %v1823, 1.442695
          %v1883 = vpow.pop %v1882
          %v1884 = vmul.f32 %v1824, 1.442695
          %v1885 = vpow.pop %v1884
          %v1886 = vmul.f32 %v1825, 1.442695
          %v1887 = vpow.pop %v1886
          %v1888 = vmul.f32 %v1826, 1.442695
          %v1889 = vpow.pop %v1888
          %v1890 = vmul.f32 %v1827, 1.442695
          %v1891 = vpow.pop %v1890
          %1892 = vadd.xlane.f32.xlu0 %v1829
          %v1893 = vpop.xlane.xlu0 %1892
          %1894 = vadd.xlane.f32.xlu0 %v1831
          %v1895 = vpop.xlane.xlu0 %1894
          %1896 = vadd.xlane.f32.xlu0 %v1833
          %v1897 = vpop.xlane.xlu0 %1896
          %1898 = vadd.xlane.f32.xlu0 %v1835
          %v1899 = vpop.xlane.xlu0 %1898
          %1900 = vadd.xlane.f32.xlu0 %v1837
          %v1901 = vpop.xlane.xlu0 %1900
          %1902 = vadd.xlane.f32.xlu0 %v1839
          %v1903 = vpop.xlane.xlu0 %1902
          %1904 = vadd.xlane.f32.xlu0 %v1841
          %v1905 = vpop.xlane.xlu0 %1904
          %1906 = vadd.xlane.f32.xlu0 %v1843
          %v1907 = vpop.xlane.xlu0 %1906
          %1908 = vadd.xlane.f32.xlu0 %v1845
          %v1909 = vpop.xlane.xlu0 %1908
          %1910 = vadd.xlane.f32.xlu0 %v1847
          %v1911 = vpop.xlane.xlu0 %1910
          %1912 = vadd.xlane.f32.xlu0 %v1849
          %v1913 = vpop.xlane.xlu0 %1912
          %1914 = vadd.xlane.f32.xlu0 %v1851
          %v1915 = vpop.xlane.xlu0 %1914
          %1916 = vadd.xlane.f32.xlu0 %v1853
          %v1917 = vpop.xlane.xlu0 %1916
          %1918 = vadd.xlane.f32.xlu0 %v1855
          %v1919 = vpop.xlane.xlu0 %1918
          %1920 = vadd.xlane.f32.xlu0 %v1857
          %v1921 = vpop.xlane.xlu0 %1920
          %1922 = vadd.xlane.f32.xlu0 %v1859
          %v1923 = vpop.xlane.xlu0 %1922
          %1924 = vadd.xlane.f32.xlu0 %v1861
          %v1925 = vpop.xlane.xlu0 %1924
          %1926 = vadd.xlane.f32.xlu0 %v1863
          %v1927 = vpop.xlane.xlu0 %1926
          %1928 = vadd.xlane.f32.xlu0 %v1865
          %v1929 = vpop.xlane.xlu0 %1928
          %1930 = vadd.xlane.f32.xlu0 %v1867
          %v1931 = vpop.xlane.xlu0 %1930
          %1932 = vadd.xlane.f32.xlu0 %v1869
          %v1933 = vpop.xlane.xlu0 %1932
          %1934 = vadd.xlane.f32.xlu0 %v1871
          %v1935 = vpop.xlane.xlu0 %1934
          %1936 = vadd.xlane.f32.xlu0 %v1873
          %v1937 = vpop.xlane.xlu0 %1936
          %1938 = vadd.xlane.f32.xlu0 %v1875
          %v1939 = vpop.xlane.xlu0 %1938
          %1940 = vadd.xlane.f32.xlu0 %v1877
          %v1941 = vpop.xlane.xlu0 %1940
          %1942 = vadd.xlane.f32.xlu0 %v1879
          %v1943 = vpop.xlane.xlu0 %1942
          %1944 = vadd.xlane.f32.xlu0 %v1881
          %v1945 = vpop.xlane.xlu0 %1944
          %1946 = vadd.xlane.f32.xlu0 %v1883
          %v1947 = vpop.xlane.xlu0 %1946
          %1948 = vadd.xlane.f32.xlu0 %v1885
          %v1949 = vpop.xlane.xlu0 %1948
          %1950 = vadd.xlane.f32.xlu0 %v1887
          %v1951 = vpop.xlane.xlu0 %1950
          %1952 = vadd.xlane.f32.xlu0 %v1889
          %v1953 = vpop.xlane.xlu0 %1952
          %1954 = vadd.xlane.f32.xlu0 %v1891
          %v1955 = vpop.xlane.xlu0 %1954
          %v1956 = vlog2.pop %v1893
          %v1957 = vmul.f32 %v1956, 0.6931472
          %v1958 = vlog2.pop %v1895
          %v1959 = vmul.f32 %v1958, 0.6931472
          %v1960 = vlog2.pop %v1897
          %v1961 = vmul.f32 %v1960, 0.6931472
          %v1962 = vlog2.pop %v1899
          %v1963 = vmul.f32 %v1962, 0.6931472
          %v1964 = vlog2.pop %v1901
          %v1965 = vmul.f32 %v1964, 0.6931472
          %v1966 = vlog2.pop %v1903
          %v1967 = vmul.f32 %v1966, 0.6931472
          %v1968 = vlog2.pop %v1905
          %v1969 = vmul.f32 %v1968, 0.6931472
          %v1970 = vlog2.pop %v1907
          %v1971 = vmul.f32 %v1970, 0.6931472
          %v1972 = vlog2.pop %v1909
          %v1973 = vmul.f32 %v1972, 0.6931472
          %v1974 = vlog2.pop %v1911
          %v1975 = vmul.f32 %v1974, 0.6931472
          %v1976 = vlog2.pop %v1913
          %v1977 = vmul.f32 %v1976, 0.6931472
          %v1978 = vlog2.pop %v1915
          %v1979 = vmul.f32 %v1978, 0.6931472
          %v1980 = vlog2.pop %v1917
          %v1981 = vmul.f32 %v1980, 0.6931472
          %v1982 = vlog2.pop %v1919
          %v1983 = vmul.f32 %v1982, 0.6931472
          %v1984 = vlog2.pop %v1921
          %v1985 = vmul.f32 %v1984, 0.6931472
          %v1986 = vlog2.pop %v1923
          %v1987 = vmul.f32 %v1986, 0.6931472
          %v1988 = vlog2.pop %v1925
          %v1989 = vmul.f32 %v1988, 0.6931472
          %v1990 = vlog2.pop %v1927
          %v1991 = vmul.f32 %v1990, 0.6931472
          %v1992 = vlog2.pop %v1929
          %v1993 = vmul.f32 %v1992, 0.6931472
          %v1994 = vlog2.pop %v1931
          %v1995 = vmul.f32 %v1994, 0.6931472
          %v1996 = vlog2.pop %v1933
          %v1997 = vmul.f32 %v1996, 0.6931472
          %v1998 = vlog2.pop %v1935
          %v1999 = vmul.f32 %v1998, 0.6931472
          %v2000 = vlog2.pop %v1937
          %v2001 = vmul.f32 %v2000, 0.6931472
          %v2002 = vlog2.pop %v1939
          %v2003 = vmul.f32 %v2002, 0.6931472
          %v2004 = vlog2.pop %v1941
          %v2005 = vmul.f32 %v2004, 0.6931472
          %v2006 = vlog2.pop %v1943
          %v2007 = vmul.f32 %v2006, 0.6931472
          %v2008 = vlog2.pop %v1945
          %v2009 = vmul.f32 %v2008, 0.6931472
          %v2010 = vlog2.pop %v1947
          %v2011 = vmul.f32 %v2010, 0.6931472
          %v2012 = vlog2.pop %v1949
          %v2013 = vmul.f32 %v2012, 0.6931472
          %v2014 = vlog2.pop %v1951
          %v2015 = vmul.f32 %v2014, 0.6931472
          %v2016 = vlog2.pop %v1953
          %v2017 = vmul.f32 %v2016, 0.6931472
          %v2018 = vlog2.pop %v1955
          %v2019 = vmul.f32 %v2018, 0.6931472
          %v2020 = vsub.f32 %v1796, %v1957
          %v2021 = vsub.f32 %v1797, %v1959
          %v2022 = vsub.f32 %v1798, %v1961
          %v2023 = vsub.f32 %v1799, %v1963
          %v2024 = vsub.f32 %v1800, %v1965
          %v2025 = vsub.f32 %v1801, %v1967
          %v2026 = vsub.f32 %v1802, %v1969
          %v2027 = vsub.f32 %v1803, %v1971
          %v2028 = vsub.f32 %v1804, %v1973
          %v2029 = vsub.f32 %v1805, %v1975
          %v2030 = vsub.f32 %v1806, %v1977
          %v2031 = vsub.f32 %v1807, %v1979
          %v2032 = vsub.f32 %v1808, %v1981
          %v2033 = vsub.f32 %v1809, %v1983
          %v2034 = vsub.f32 %v1810, %v1985
          %v2035 = vsub.f32 %v1811, %v1987
          %v2036 = vsub.f32 %v1812, %v1989
          %v2037 = vsub.f32 %v1813, %v1991
          %v2038 = vsub.f32 %v1814, %v1993
          %v2039 = vsub.f32 %v1815, %v1995
          %v2040 = vsub.f32 %v1816, %v1997
          %v2041 = vsub.f32 %v1817, %v1999
          %v2042 = vsub.f32 %v1818, %v2001
          %v2043 = vsub.f32 %v1819, %v2003
          %v2044 = vsub.f32 %v1820, %v2005
          %v2045 = vsub.f32 %v1821, %v2007
          %v2046 = vsub.f32 %v1822, %v2009
          %v2047 = vsub.f32 %v1823, %v2011
          %v2048 = vsub.f32 %v1824, %v2013
          %v2049 = vsub.f32 %v1825, %v2015
          %v2050 = vsub.f32 %v1826, %v2017
          %v2051 = vsub.f32 %v1827, %v2019
          %v2052 = vsel %vm1699, %v2020, 0.0
          %v2053 = vsel %vm1699, %v2021, 0.0
          %v2054 = vsel %vm1699, %v2022, 0.0
          %v2055 = vsel %vm1699, %v2023, 0.0
          %v2056 = vsel %vm1699, %v2024, 0.0
          %v2057 = vsel %vm1699, %v2025, 0.0
          %v2058 = vsel %vm1699, %v2026, 0.0
          %v2059 = vsel %vm1699, %v2027, 0.0
          %v2060 = vsel %vm1699, %v2028, 0.0
          %v2061 = vsel %vm1699, %v2029, 0.0
          %v2062 = vsel %vm1699, %v2030, 0.0
          %v2063 = vsel %vm1699, %v2031, 0.0
          %v2064 = vsel %vm1699, %v2032, 0.0
          %v2065 = vsel %vm1699, %v2033, 0.0
          %v2066 = vsel %vm1699, %v2034, 0.0
          %v2067 = vsel %vm1699, %v2035, 0.0
          %v2068 = vsel %vm1699, %v2036, 0.0
          %v2069 = vsel %vm1699, %v2037, 0.0
          %v2070 = vsel %vm1699, %v2038, 0.0
          %v2071 = vsel %vm1699, %v2039, 0.0
          %v2072 = vsel %vm1699, %v2040, 0.0
          %v2073 = vsel %vm1699, %v2041, 0.0
          %v2074 = vsel %vm1699, %v2042, 0.0
          %v2075 = vsel %vm1699, %v2043, 0.0
          %v2076 = vsel %vm1699, %v2044, 0.0
          %v2077 = vsel %vm1699, %v2045, 0.0
          %v2078 = vsel %vm1699, %v2046, 0.0
          %v2079 = vsel %vm1699, %v2047, 0.0
          %v2080 = vsel %vm1699, %v2048, 0.0
          %v2081 = vsel %vm1699, %v2049, 0.0
          %v2082 = vsel %vm1699, %v2050, 0.0
          %v2083 = vsel %vm1699, %v2051, 0.0
          %2084 = vst [vmem:[%s402] sm:$0xff] %v2052
          %2085 = vst [vmem:[%s402 + $0x8] sm:$0xff] %v2053
          %2086 = vst [vmem:[%s402 + $0x10] sm:$0xff] %v2054
          %2087 = vst [vmem:[%s402 + $0x18] sm:$0xff] %v2055
          %2088 = vst [vmem:[%s402 + $0x20] sm:$0xff] %v2056
          %2089 = vst [vmem:[%s402 + $0x28] sm:$0xff] %v2057
          %2090 = vst [vmem:[%s402 + $0x30] sm:$0xff] %v2058
          %2091 = vst [vmem:[%s402 + $0x38] sm:$0xff] %v2059
          %2092 = vst [vmem:[%s402 + $0x40] sm:$0xff] %v2060
          %2093 = vst [vmem:[%s402 + $0x48] sm:$0xff] %v2061
          %2094 = vst [vmem:[%s402 + $0x50] sm:$0xff] %v2062
          %2095 = vst [vmem:[%s402 + $0x58] sm:$0xff] %v2063
          %2096 = vst [vmem:[%s402 + $0x60] sm:$0xff] %v2064
          %2097 = vst [vmem:[%s402 + $0x68] sm:$0xff] %v2065
          %2098 = vst [vmem:[%s402 + $0x70] sm:$0xff] %v2066
          %2099 = vst [vmem:[%s402 + $0x78] sm:$0xff] %v2067
          %2100 = vst [vmem:[%s402 + $0x80] sm:$0xff] %v2068
          %2101 = vst [vmem:[%s402 + $0x88] sm:$0xff] %v2069
          %2102 = vst [vmem:[%s402 + $0x90] sm:$0xff] %v2070
          %2103 = vst [vmem:[%s402 + $0x98] sm:$0xff] %v2071
          %2104 = vst [vmem:[%s402 + $0xa0] sm:$0xff] %v2072
          %2105 = vst [vmem:[%s402 + $0xa8] sm:$0xff] %v2073
          %2106 = vst [vmem:[%s402 + $0xb0] sm:$0xff] %v2074
          %2107 = vst [vmem:[%s402 + $0xb8] sm:$0xff] %v2075
          %2108 = vst [vmem:[%s402 + $0xc0] sm:$0xff] %v2076
          %2109 = vst [vmem:[%s402 + $0xc8] sm:$0xff] %v2077
          %2110 = vst [vmem:[%s402 + $0xd0] sm:$0xff] %v2078
          %2111 = vst [vmem:[%s402 + $0xd8] sm:$0xff] %v2079
          %2112 = vst [vmem:[%s402 + $0xe0] sm:$0xff] %v2080
          %2113 = vst [vmem:[%s402 + $0xe8] sm:$0xff] %v2081
          %2114 = vst [vmem:[%s402 + $0xf0] sm:$0xff] %v2082
          %2115 = vst [vmem:[%s402 + $0xf8] sm:$0xff] %v2083
        $region86: #{_lambda_.3} parent=73 // pred_fallthru
          _
        %s2116 = smul.u32 32, %s20
        %p2117 = scmp.lt.s32.totalorder %s2116, 63
        %s2118 = scalar_select %p2117, %s2116, 63
        %s2119 = smul.addr %s2118, 8
        %s2120 = scalar_lea.vmem %s5, %s2119
        // Predicated region
        $region87: #{_lambda_.3} parent=73 // pred_check
          %p2121 = pneg %p158
        $region88: #{_lambda_.3} parent=73 // pred_check_branch
          %2123 = sbr.rel (%p2121) target = $region90
        $region89: #{_lambda_.3} parent=73 // pred_region
          %s2124 = smul.u32 32, %s20
        $region90: #{_lambda_.3} parent=73 // pred_fallthru
          _
      $region74: #{_lambda_.3} parent=5 // pred_fallthru
        _
      %p2125 = scmp.le.s32.totalorder 2, %s11
      // Predicated region
      $region91: #{_lambda_.3} parent=5 // pred_check
        %p2126 = pneg %p2125
      $region92: #{_lambda_.3} parent=5 // pred_check_branch
        %2128 = sbr.rel (%p2126) target = $region94
      $region93: #{_lambda_.3} parent=5 // pred_region
        %s2129 = ssub.s32 %s11, 2
        // Predicated region
        $region95: #{_lambda_.3} parent=93 // pred_check
          %p2130 = pneg %p164
        $region96: #{_lambda_.3} parent=93 // pred_check_branch
          %2132 = sbr.rel (%p2130) target = $region98
        $region97: #{_lambda_.3} parent=93 // pred_region
          %s2133 = smul.u32 32, %s22
          %p2134 = scmp.lt.s32.totalorder %s2133, 63
          %s2135 = scalar_select %p2134, %s2133, 63
          %s2136 = smul.addr %s2135, 8
          %s2137 = scalar_lea.vmem %s5, %s2136
        $region98: #{_lambda_.3} parent=93 // pred_fallthru
          _
      $region94: #{_lambda_.3} parent=5 // pred_fallthru
        _
    $region6: #{_lambda_.3} parent=1 // loop_footer
      %s15 = sadd.s32 1, %s11
    $region7: #{_lambda_.3} parent=1 // loop_footer_branch
      %10 = sbr.rel target = $region3
    $region8: #{_lambda_.3} parent=1 // loop_exit
      _

// kernel: _lambda_.2
$region0: #{_lambda_.2}
  #allocation0 [shape = 'u32[]', space=smem, size = 0x4, offset = 0x4, fixed_abs, tag = 'smem constant byte address 0x4 - core index']
  #allocation1 [shape = 'u32[144,128]{1,0:T(1,128)}', space=vmem, size = 0x12000, scoped, tag = 'internal scratch']
  #allocation2 [shape = 'f32[256,128]{1,0:T(8,128)}', space=vmem, size = 0x20000, scoped, tag = 'scratch operand']
  %s0 = inlined_call_operand.vmem [shape: bf16[512,512], index: 0, kind: input, shape index: {}]
  %s1 = inlined_call_operand.vmem [shape: bf16[512,128], index: 1, kind: input, shape index: {}]
  %s2 = inlined_call_operand.vmem [shape: bf16[128,128], index: 2, kind: input, shape index: {}]
  %s3 = inlined_call_operand.vmem [shape: bf16[128,128], index: 3, kind: input, shape index: {}]
  %s4 = inlined_call_operand.vmem [shape: f32[1,128], index: 4, kind: input, shape index: {}]
  %s5 = inlined_call_operand.vmem [shape: bf16[512,128], index: 5, kind: output, shape index: {}]
  %s6 = sld [smem:[#allocation0]]
  $region99: #{_lambda_.2} parent=0
    _
  %s8 = ssub.s32 1, %s6
  %s9 = scalar_select 0, %s8, %s6
  $region1: #{_lambda_.2} parent=0
    #allocation3 [shape = 'u8[262144]{0}', space=vmem, size = 0x40000, scoped, tag = 'input window, operand 0']
    loop: start=0, step=1, limit=6
    $region2: #{_lambda_.2} parent=1 // loop_pre_header
      _
    $region3: #{_lambda_.2} parent=1 // loop_header
      %s11 = sphi 0, %s15
      %p12 = scmp.ge.s32.totalorder %s11, 6
      %s18 = sphi 0, %s30
      %s19 = sphi 0, %s26
      %s20 = sphi 0, %s18
      %s21 = sphi 0, %s19
      %s22 = sphi 0, %s20
      %s23 = sphi 0, %s21
      %s35 = sphi 0, %s37
      %s38 = sphi 0, %s35
      %s39 = sphi 0, %s38
      %s55 = sphi 0, %s39
      %s59 = sphi 0, %s59
      %s61 = sphi 0, %s59
      %s62 = sphi 0, %s61
      %s76 = sphi 0, %s62
      %s80 = sphi 0, %s80
      %s82 = sphi 0, %s80
      %s83 = sphi 0, %s82
      %s97 = sphi 0, %s83
      %s101 = sphi 0, %s101
      %s103 = sphi 0, %s101
      %s104 = sphi 0, %s103
      %s118 = sphi 0, %s104
      %s122 = sphi 0, %s122
      %s124 = sphi 0, %s122
      %s125 = sphi 0, %s124
      %s139 = sphi 0, %s125
      %s145 = sphi 0, %s147
      %s148 = sphi 0, %s145
      %s149 = sphi 0, %s148
      %s165 = sphi 0, %s149
    $region4: #{_lambda_.2} parent=1 // loop_header_branch
      %14 = sbr.rel (%p12) target = $region8
    $region5: #{_lambda_.2} parent=1 // loop_body
      %s16 = ssub.s32 %s11, 1
      %s17 = ssub.s32 %s11, 2
      %s24 = sadd.s32 1, %s19
      %p25 = scmp.ge.s32.totalorder %s24, 2
      %s26 = scalar_select %p25, 0, %s24
      %s27 = sadd.s32 1, %s18
      %s28 = scalar_select %p25, %s27, %s18
      %p29 = scmp.ge.s32.totalorder %s28, 2
      %s30 = scalar_select %p29, 0, %s28
      %s31 = ssub.s32 %s18, %s30
      %s32 = ssub.s32 %s19, %s26
      %s33 = sor.u32 %s31, %s32
      %p34 = scmp.eq.s32.totalorder %s33, 0
      %s36 = sadd.s32 %s35, 1
      %s37 = scalar_select %p34, %s35, %s36
      %p40 = pneg %p34
      %p41 = scmp.eq.s32.totalorder %s11, 3
      %p42 = por %p40, %p41
      %p43 = scmp.ne.s32.totalorder %s35, %s38
      %p44 = scmp.eq.s32.totalorder %s11, 0
      %p45 = por %p43, %p44
      %p46 = scmp.ne.s32.totalorder %s35, %s38
      %p47 = scmp.eq.s32.totalorder %s16, 3
      %p48 = por %p46, %p47
      %p49 = scmp.ne.s32.totalorder %s38, %s39
      %p50 = scmp.eq.s32.totalorder %s16, 0
      %p51 = por %p49, %p50
      %p52 = scmp.ne.s32.totalorder %s38, %s39
      %p53 = scmp.eq.s32.totalorder %s17, 3
      %p54 = por %p52, %p53
      %p56 = scmp.ne.s32.totalorder %s39, %s55
      %p57 = scmp.eq.s32.totalorder %s17, 0
      %p58 = por %p56, %p57
      %s60 = sadd.s32 %s59, 1
      %p63 = scmp.eq.s32.totalorder %s11, 3
      %p64 = scmp.ne.s32.totalorder %s59, %s61
      %p65 = scmp.eq.s32.totalorder %s11, 0
      %p66 = por %p64, %p65
      %p67 = scmp.ne.s32.totalorder %s59, %s61
      %p68 = scmp.eq.s32.totalorder %s16, 3
      %p69 = por %p67, %p68
      %p70 = scmp.ne.s32.totalorder %s61, %s62
      %p71 = scmp.eq.s32.totalorder %s16, 0
      %p72 = por %p70, %p71
      %p73 = scmp.ne.s32.totalorder %s61, %s62
      %p74 = scmp.eq.s32.totalorder %s17, 3
      %p75 = por %p73, %p74
      %p77 = scmp.ne.s32.totalorder %s62, %s76
      %p78 = scmp.eq.s32.totalorder %s17, 0
      %p79 = por %p77, %p78
      %s81 = sadd.s32 %s80, 1
      %p84 = scmp.eq.s32.totalorder %s11, 3
      %p85 = scmp.ne.s32.totalorder %s80, %s82
      %p86 = scmp.eq.s32.totalorder %s11, 0
      %p87 = por %p85, %p86
      %p88 = scmp.ne.s32.totalorder %s80, %s82
      %p89 = scmp.eq.s32.totalorder %s16, 3
      %p90 = por %p88, %p89
      %p91 = scmp.ne.s32.totalorder %s82, %s83
      %p92 = scmp.eq.s32.totalorder %s16, 0
      %p93 = por %p91, %p92
      %p94 = scmp.ne.s32.totalorder %s82, %s83
      %p95 = scmp.eq.s32.totalorder %s17, 3
      %p96 = por %p94, %p95
      %p98 = scmp.ne.s32.totalorder %s83, %s97
      %p99 = scmp.eq.s32.totalorder %s17, 0
      %p100 = por %p98, %p99
      %s102 = sadd.s32 %s101, 1
      %p105 = scmp.eq.s32.totalorder %s11, 3
      %p106 = scmp.ne.s32.totalorder %s101, %s103
      %p107 = scmp.eq.s32.totalorder %s11, 0
      %p108 = por %p106, %p107
      %p109 = scmp.ne.s32.totalorder %s101, %s103
      %p110 = scmp.eq.s32.totalorder %s16, 3
      %p111 = por %p109, %p110
      %p112 = scmp.ne.s32.totalorder %s103, %s104
      %p113 = scmp.eq.s32.totalorder %s16, 0
      %p114 = por %p112, %p113
      %p115 = scmp.ne.s32.totalorder %s103, %s104
      %p116 = scmp.eq.s32.totalorder %s17, 3
      %p117 = por %p115, %p116
      %p119 = scmp.ne.s32.totalorder %s104, %s118
      %p120 = scmp.eq.s32.totalorder %s17, 0
      %p121 = por %p119, %p120
      %s123 = sadd.s32 %s122, 1
      %p126 = scmp.eq.s32.totalorder %s11, 3
      %p127 = scmp.ne.s32.totalorder %s122, %s124
      %p128 = scmp.eq.s32.totalorder %s11, 0
      %p129 = por %p127, %p128
      %p130 = scmp.ne.s32.totalorder %s122, %s124
      %p131 = scmp.eq.s32.totalorder %s16, 3
      %p132 = por %p130, %p131
      %p133 = scmp.ne.s32.totalorder %s124, %s125
      %p134 = scmp.eq.s32.totalorder %s16, 0
      %p135 = por %p133, %p134
      %p136 = scmp.ne.s32.totalorder %s124, %s125
      %p137 = scmp.eq.s32.totalorder %s17, 3
      %p138 = por %p136, %p137
      %p140 = scmp.ne.s32.totalorder %s125, %s139
      %p141 = scmp.eq.s32.totalorder %s17, 0
      %p142 = por %p140, %p141
      %s143 = ssub.s32 %s18, %s30
      %p144 = scmp.eq.s32.totalorder %s143, 0
      %s146 = sadd.s32 %s145, 1
      %s147 = scalar_select %p144, %s145, %s146
      %p150 = pneg %p144
      %p151 = scmp.eq.s32.totalorder %s11, 3
      %p152 = por %p150, %p151
      %p153 = scmp.ne.s32.totalorder %s145, %s148
      %p154 = scmp.eq.s32.totalorder %s11, 0
      %p155 = por %p153, %p154
      %p156 = scmp.ne.s32.totalorder %s145, %s148
      %p157 = scmp.eq.s32.totalorder %s16, 3
      %p158 = por %p156, %p157
      %p159 = scmp.ne.s32.totalorder %s148, %s149
      %p160 = scmp.eq.s32.totalorder %s16, 0
      %p161 = por %p159, %p160
      %p162 = scmp.ne.s32.totalorder %s148, %s149
      %p163 = scmp.eq.s32.totalorder %s17, 3
      %p164 = por %p162, %p163
      %p166 = scmp.ne.s32.totalorder %s149, %s165
      %p167 = scmp.eq.s32.totalorder %s17, 0
      %p168 = por %p166, %p167
      %p169 = scmp.le.s32.totalorder 1, %s11
      %p170 = scmp.lt.s32.totalorder %s11, 5
      %p171 = pnand %p169, %p170
      %p172 = pneg %p171
      // Predicated region
      $region9: #{_lambda_.2} parent=5 // pred_check
        _
      $region10: #{_lambda_.2} parent=5 // pred_check_branch
        %174 = sbr.rel (%p171) target = $region12
      $region11: #{_lambda_.2} parent=5 // pred_region
        %s175 = ssub.s32 %s11, 1
        // Predicated region
        $region13: #{_lambda_.2} parent=11 // pred_check
          %p176 = pneg %p72
        $region14: #{_lambda_.2} parent=11 // pred_check_branch
          %178 = sbr.rel (%p176) target = $region16
        $region15: #{_lambda_.2} parent=11 // pred_region
          _
        $region16: #{_lambda_.2} parent=11 // pred_fallthru
          _
        // Predicated region
        $region17: #{_lambda_.2} parent=11 // pred_check
          %p179 = pneg %p93
        $region18: #{_lambda_.2} parent=11 // pred_check_branch
          %181 = sbr.rel (%p179) target = $region20
        $region19: #{_lambda_.2} parent=11 // pred_region
          _
        $region20: #{_lambda_.2} parent=11 // pred_fallthru
          _
        // Predicated region
        $region21: #{_lambda_.2} parent=11 // pred_check
          %p182 = pneg %p114
        $region22: #{_lambda_.2} parent=11 // pred_check_branch
          %184 = sbr.rel (%p182) target = $region24
        $region23: #{_lambda_.2} parent=11 // pred_region
          _
        $region24: #{_lambda_.2} parent=11 // pred_fallthru
          _
        // Predicated region
        $region25: #{_lambda_.2} parent=11 // pred_check
          %p185 = pneg %p135
        $region26: #{_lambda_.2} parent=11 // pred_check_branch
          %187 = sbr.rel (%p185) target = $region28
        $region27: #{_lambda_.2} parent=11 // pred_region
          _
        $region28: #{_lambda_.2} parent=11 // pred_fallthru
          _
      $region12: #{_lambda_.2} parent=5 // pred_fallthru
        _
      %p188 = scmp.lt.s32.totalorder %s11, 4
      // Predicated region
      $region29: #{_lambda_.2} parent=5 // pred_check
        %p189 = pneg %p188
      $region30: #{_lambda_.2} parent=5 // pred_check_branch
        %191 = sbr.rel (%p189) target = $region32
      $region31: #{_lambda_.2} parent=5 // pred_region
        // Predicated region
        $region33: #{_lambda_.2} parent=31 // pred_check
          %p192 = pneg %p45
        $region34: #{_lambda_.2} parent=31 // pred_check_branch
          %194 = sbr.rel (%p192) target = $region36
        $region35: #{_lambda_.2} parent=31 // pred_region
          %s195 = sand.u32 %s35, 1
          %s196 = sand.u32 %s35, 1
          %s197 = smul.addr %s196, 256
          %s198 = scalar_lea.vmem [#allocation3], %s197
          %s199 = smul.u32 32, %s18
          %s200 = smul.u32 2, %s19
          %s201 = smul.addr %s199, 4
          %s202 = sadd.s32 %s200, %s201
          %s203 = smul.addr %s202, 4
          %s204 = scalar_lea.vmem %s0, %s203
          // Predicated region
          $region37: #{_lambda_.2} parent=35 // pred_check
            _
          $region38: #{_lambda_.2} parent=35 // pred_check_branch
            %206 = sbr.rel (0) target = $region40
          $region39: #{_lambda_.2} parent=35 // pred_region
            // Predicated region
            $region41: #{_lambda_.2} parent=39 // pred_check
              _
            $region42: #{_lambda_.2} parent=39 // pred_check_branch
              %208 = sbr.rel (0) target = $region44
            $region43: #{_lambda_.2} parent=39 // pred_region
              // Predicated region
              $region56: #{_lambda_.2} parent=43 // pred_check
                _
              $region57: #{_lambda_.2} parent=43 // pred_check_branch
                %285 = sbr.rel (0) target = $region59
              $region58: #{_lambda_.2} parent=43 // pred_region
                loop: start=0, step=1, limit=1
                $region60: #{_lambda_.2} parent=58 // loop_pre_header
                  _
                $region61: #{_lambda_.2} parent=58 // loop_header
                  %s287 = sphi 0, %s291
                  %p288 = scmp.ge.s32.totalorder %s287, 1
                  %s292 = sphi %s204, %s204
                  %s293 = sphi %s198, %s198
                $region62: #{_lambda_.2} parent=58 // loop_header_branch
                  %290 = sbr.rel (%p288) target = $region66
                $region63: #{_lambda_.2} parent=58 // loop_body
                  %v294 = vld [vmem:[%s292] sm:$0xff]
                  %295 = vst [vmem:[%s293] sm:$0xff] %v294
                  %v296 = vld [vmem:[%s292 + $0x10] sm:$0xff]
                  %297 = vst [vmem:[%s293 + $0x8] sm:$0xff] %v296
                  %v298 = vld [vmem:[%s292 + $0x20] sm:$0xff]
                  %299 = vst [vmem:[%s293 + $0x10] sm:$0xff] %v298
                  %v300 = vld [vmem:[%s292 + $0x30] sm:$0xff]
                  %301 = vst [vmem:[%s293 + $0x18] sm:$0xff] %v300
                  %v302 = vld [vmem:[%s292 + $0x40] sm:$0xff]
                  %303 = vst [vmem:[%s293 + $0x20] sm:$0xff] %v302
                  %v304 = vld [vmem:[%s292 + $0x50] sm:$0xff]
                  %305 = vst [vmem:[%s293 + $0x28] sm:$0xff] %v304
                  %v306 = vld [vmem:[%s292 + $0x60] sm:$0xff]
                  %307 = vst [vmem:[%s293 + $0x30] sm:$0xff] %v306
                  %v308 = vld [vmem:[%s292 + $0x70] sm:$0xff]
                  %309 = vst [vmem:[%s293 + $0x38] sm:$0xff] %v308
                  %v310 = vld [vmem:[%s292 + $0x80] sm:$0xff]
                  %311 = vst [vmem:[%s293 + $0x40] sm:$0xff] %v310
                  %v312 = vld [vmem:[%s292 + $0x90] sm:$0xff]
                  %313 = vst [vmem:[%s293 + $0x48] sm:$0xff] %v312
                  %v314 = vld [vmem:[%s292 + $0xa0] sm:$0xff]
                  %315 = vst [vmem:[%s293 + $0x50] sm:$0xff] %v314
                  %v316 = vld [vmem:[%s292 + $0xb0] sm:$0xff]
                  %317 = vst [vmem:[%s293 + $0x58] sm:$0xff] %v316
                  %v318 = vld [vmem:[%s292 + $0xc0] sm:$0xff]
                  %319 = vst [vmem:[%s293 + $0x60] sm:$0xff] %v318
                  %v320 = vld [vmem:[%s292 + $0xd0] sm:$0xff]
                  %321 = vst [vmem:[%s293 + $0x68] sm:$0xff] %v320
                  %v322 = vld [vmem:[%s292 + $0xe0] sm:$0xff]
                  %323 = vst [vmem:[%s293 + $0x70] sm:$0xff] %v322
                  %v324 = vld [vmem:[%s292 + $0xf0] sm:$0xff]
                  %325 = vst [vmem:[%s293 + $0x78] sm:$0xff] %v324
                  %v326 = vld [vmem:[%s292 + $0x100] sm:$0xff]
                  %327 = vst [vmem:[%s293 + $0x80] sm:$0xff] %v326
                  %v328 = vld [vmem:[%s292 + $0x110] sm:$0xff]
                  %329 = vst [vmem:[%s293 + $0x88] sm:$0xff] %v328
                  %v330 = vld [vmem:[%s292 + $0x120] sm:$0xff]
                  %331 = vst [vmem:[%s293 + $0x90] sm:$0xff] %v330
                  %v332 = vld [vmem:[%s292 + $0x130] sm:$0xff]
                  %333 = vst [vmem:[%s293 + $0x98] sm:$0xff] %v332
                  %v334 = vld [vmem:[%s292 + $0x140] sm:$0xff]
                  %335 = vst [vmem:[%s293 + $0xa0] sm:$0xff] %v334
                  %v336 = vld [vmem:[%s292 + $0x150] sm:$0xff]
                  %337 = vst [vmem:[%s293 + $0xa8] sm:$0xff] %v336
                  %v338 = vld [vmem:[%s292 + $0x160] sm:$0xff]
                  %339 = vst [vmem:[%s293 + $0xb0] sm:$0xff] %v338
                  %v340 = vld [vmem:[%s292 + $0x170] sm:$0xff]
                  %341 = vst [vmem:[%s293 + $0xb8] sm:$0xff] %v340
                  %v342 = vld [vmem:[%s292 + $0x180] sm:$0xff]
                  %343 = vst [vmem:[%s293 + $0xc0] sm:$0xff] %v342
                  %v344 = vld [vmem:[%s292 + $0x190] sm:$0xff]
                  %345 = vst [vmem:[%s293 + $0xc8] sm:$0xff] %v344
                  %v346 = vld [vmem:[%s292 + $0x1a0] sm:$0xff]
                  %347 = vst [vmem:[%s293 + $0xd0] sm:$0xff] %v346
                  %v348 = vld [vmem:[%s292 + $0x1b0] sm:$0xff]
                  %349 = vst [vmem:[%s293 + $0xd8] sm:$0xff] %v348
                  %v350 = vld [vmem:[%s292 + $0x1c0] sm:$0xff]
                  %351 = vst [vmem:[%s293 + $0xe0] sm:$0xff] %v350
                  %v352 = vld [vmem:[%s292 + $0x1d0] sm:$0xff]
                  %353 = vst [vmem:[%s293 + $0xe8] sm:$0xff] %v352
                  %v354 = vld [vmem:[%s292 + $0x1e0] sm:$0xff]
                  %355 = vst [vmem:[%s293 + $0xf0] sm:$0xff] %v354
                  %v356 = vld [vmem:[%s292 + $0x1f0] sm:$0xff]
                  %357 = vst [vmem:[%s293 + $0xf8] sm:$0xff] %v356
                $region64: #{_lambda_.2} parent=58 // loop_footer
                  %s291 = sadd.s32 1, %s287
                $region65: #{_lambda_.2} parent=58 // loop_footer_branch
                  %286 = sbr.rel target = $region61
                $region66: #{_lambda_.2} parent=58 // loop_exit
                  _
              $region59: #{_lambda_.2} parent=43 // pred_fallthru
                _
              // Predicated region
              $region67: #{_lambda_.2} parent=43 // pred_check
                _
              $region68: #{_lambda_.2} parent=43 // pred_check_branch
                %359 = sbr.rel target = $region70
              $region69: #{_lambda_.2} parent=43 // pred_region
                _
              $region70: #{_lambda_.2} parent=43 // pred_fallthru
                _
            $region44: #{_lambda_.2} parent=39 // pred_fallthru
              _
            // Predicated region
            $region45: #{_lambda_.2} parent=39 // pred_check
              _
            $region46: #{_lambda_.2} parent=39 // pred_check_branch
              %210 = sbr.rel target = $region48
            $region47: #{_lambda_.2} parent=39 // pred_region
              loop: start=0, step=1, limit=1
              $region49: #{_lambda_.2} parent=47 // loop_pre_header
                _
              $region50: #{_lambda_.2} parent=47 // loop_header
                %s213 = sphi 0, %s217
                %p214 = scmp.ge.s32.totalorder %s213, 1
                %s218 = sphi %s204, %s204
                %s219 = sphi %s198, %s198
              $region51: #{_lambda_.2} parent=47 // loop_header_branch
                %216 = sbr.rel (%p214) target = $region55
              $region52: #{_lambda_.2} parent=47 // loop_body
                %v220 = vld [vmem:[%s218] sm:$0xff]
                %221 = vst [vmem:[%s219] sm:$0xff] %v220
                %v222 = vld [vmem:[%s218 + $0x10] sm:$0xff]
                %223 = vst [vmem:[%s219 + $0x8] sm:$0xff] %v222
                %v224 = vld [vmem:[%s218 + $0x20] sm:$0xff]
                %225 = vst [vmem:[%s219 + $0x10] sm:$0xff] %v224
                %v226 = vld [vmem:[%s218 + $0x30] sm:$0xff]
                %227 = vst [vmem:[%s219 + $0x18] sm:$0xff] %v226
                %v228 = vld [vmem:[%s218 + $0x40] sm:$0xff]
                %229 = vst [vmem:[%s219 + $0x20] sm:$0xff] %v228
                %v230 = vld [vmem:[%s218 + $0x50] sm:$0xff]
                %231 = vst [vmem:[%s219 + $0x28] sm:$0xff] %v230
                %v232 = vld [vmem:[%s218 + $0x60] sm:$0xff]
                %233 = vst [vmem:[%s219 + $0x30] sm:$0xff] %v232
                %v234 = vld [vmem:[%s218 + $0x70] sm:$0xff]
                %235 = vst [vmem:[%s219 + $0x38] sm:$0xff] %v234
                %v236 = vld [vmem:[%s218 + $0x80] sm:$0xff]
                %237 = vst [vmem:[%s219 + $0x40] sm:$0xff] %v236
                %v238 = vld [vmem:[%s218 + $0x90] sm:$0xff]
                %239 = vst [vmem:[%s219 + $0x48] sm:$0xff] %v238
                %v240 = vld [vmem:[%s218 + $0xa0] sm:$0xff]
                %241 = vst [vmem:[%s219 + $0x50] sm:$0xff] %v240
                %v242 = vld [vmem:[%s218 + $0xb0] sm:$0xff]
                %243 = vst [vmem:[%s219 + $0x58] sm:$0xff] %v242
                %v244 = vld [vmem:[%s218 + $0xc0] sm:$0xff]
                %245 = vst [vmem:[%s219 + $0x60] sm:$0xff] %v244
                %v246 = vld [vmem:[%s218 + $0xd0] sm:$0xff]
                %247 = vst [vmem:[%s219 + $0x68] sm:$0xff] %v246
                %v248 = vld [vmem:[%s218 + $0xe0] sm:$0xff]
                %249 = vst [vmem:[%s219 + $0x70] sm:$0xff] %v248
                %v250 = vld [vmem:[%s218 + $0xf0] sm:$0xff]
                %251 = vst [vmem:[%s219 + $0x78] sm:$0xff] %v250
                %v252 = vld [vmem:[%s218 + $0x100] sm:$0xff]
                %253 = vst [vmem:[%s219 + $0x80] sm:$0xff] %v252
                %v254 = vld [vmem:[%s218 + $0x110] sm:$0xff]
                %255 = vst [vmem:[%s219 + $0x88] sm:$0xff] %v254
                %v256 = vld [vmem:[%s218 + $0x120] sm:$0xff]
                %257 = vst [vmem:[%s219 + $0x90] sm:$0xff] %v256
                %v258 = vld [vmem:[%s218 + $0x130] sm:$0xff]
                %259 = vst [vmem:[%s219 + $0x98] sm:$0xff] %v258
                %v260 = vld [vmem:[%s218 + $0x140] sm:$0xff]
                %261 = vst [vmem:[%s219 + $0xa0] sm:$0xff] %v260
                %v262 = vld [vmem:[%s218 + $0x150] sm:$0xff]
                %263 = vst [vmem:[%s219 + $0xa8] sm:$0xff] %v262
                %v264 = vld [vmem:[%s218 + $0x160] sm:$0xff]
                %265 = vst [vmem:[%s219 + $0xb0] sm:$0xff] %v264
                %v266 = vld [vmem:[%s218 + $0x170] sm:$0xff]
                %267 = vst [vmem:[%s219 + $0xb8] sm:$0xff] %v266
                %v268 = vld [vmem:[%s218 + $0x180] sm:$0xff]
                %269 = vst [vmem:[%s219 + $0xc0] sm:$0xff] %v268
                %v270 = vld [vmem:[%s218 + $0x190] sm:$0xff]
                %271 = vst [vmem:[%s219 + $0xc8] sm:$0xff] %v270
                %v272 = vld [vmem:[%s218 + $0x1a0] sm:$0xff]
                %273 = vst [vmem:[%s219 + $0xd0] sm:$0xff] %v272
                %v274 = vld [vmem:[%s218 + $0x1b0] sm:$0xff]
                %275 = vst [vmem:[%s219 + $0xd8] sm:$0xff] %v274
                %v276 = vld [vmem:[%s218 + $0x1c0] sm:$0xff]
                %277 = vst [vmem:[%s219 + $0xe0] sm:$0xff] %v276
                %v278 = vld [vmem:[%s218 + $0x1d0] sm:$0xff]
                %279 = vst [vmem:[%s219 + $0xe8] sm:$0xff] %v278
                %v280 = vld [vmem:[%s218 + $0x1e0] sm:$0xff]
                %281 = vst [vmem:[%s219 + $0xf0] sm:$0xff] %v280
                %v282 = vld [vmem:[%s218 + $0x1f0] sm:$0xff]
                %283 = vst [vmem:[%s219 + $0xf8] sm:$0xff] %v282
              $region53: #{_lambda_.2} parent=47 // loop_footer
                %s217 = sadd.s32 1, %s213
              $region54: #{_lambda_.2} parent=47 // loop_footer_branch
                %212 = sbr.rel target = $region50
              $region55: #{_lambda_.2} parent=47 // loop_exit
                _
            $region48: #{_lambda_.2} parent=39 // pred_fallthru
              _
          $region40: #{_lambda_.2} parent=35 // pred_fallthru
            _
          %360 = vnop
        $region36: #{_lambda_.2} parent=31 // pred_fallthru
          _
      $region32: #{_lambda_.2} parent=5 // pred_fallthru
        _
      %p361 = scmp.le.s32.totalorder 1, %s11
      %p362 = scmp.lt.s32.totalorder %s11, 5
      %p363 = pnand %p361, %p362
      %p364 = pneg %p363
      // Predicated region
      $region71: #{_lambda_.2} parent=5 // pred_check
        _
      $region72: #{_lambda_.2} parent=5 // pred_check_branch
        %366 = sbr.rel (%p363) target = $region74
      $region73: #{_lambda_.2} parent=5 // pred_region
        %s367 = ssub.s32 %s11, 1
        %s368 = sand.u32 %s38, 1
        %s369 = sand.u32 %s38, 1
        %s370 = smul.addr %s369, 256
        %s371 = scalar_lea.vmem [#allocation3], %s370
        // Predicated region
        $region75: #{_lambda_.2} parent=73 // pred_check
          %p372 = pneg %p51
        $region76: #{_lambda_.2} parent=73 // pred_check_branch
          %374 = sbr.rel (%p372) target = $region78
        $region77: #{_lambda_.2} parent=73 // pred_region
          _
        $region78: #{_lambda_.2} parent=73 // pred_fallthru
          _
        %s375 = sand.u32 %s38, 1
        %s376 = sand.u32 %s38, 1
        %s377 = smul.addr %s376, 256
        %s378 = scalar_lea.vmem [#allocation3], %s377
        %p379 = pneg %p51
        %p380 = pneg %p48
        %p381 = pneg %p72
        %p382 = pneg %p69
        %p383 = pneg %p93
        %p384 = pneg %p90
        %p385 = pneg %p114
        %p386 = pneg %p111
        %p387 = pneg %p135
        %p388 = pneg %p132
        %p389 = pneg %p161
        %p390 = pneg %p158
        %s391 = smul.u32 32, %s20
        %p392 = scmp.lt.s32.totalorder %s391, 63
        %s393 = scalar_select %p392, %s391, 63
        %s394 = smul.addr %s393, 4
        %s395 = scalar_lea.vmem %s5, %s394
        %s396 = smul.u32 32, %s20
        %s397 = smul.u32 2, %s21
        %s398 = smul.u32 32, %s20
        %p399 = scmp.lt.s32.totalorder %s398, 63
        %s400 = scalar_select %p399, %s398, 63
        %s401 = smul.addr %s400, 4
        %s402 = scalar_lea.vmem %s5, %s401
        %s403 = smul.u32 32, %s20
        %p405 = scmp.eq.s32.totalorder %s21, 0
        // Predicated region
        $region79: #{_lambda_.2} parent=73 // pred_check
          %p406 = pneg %p405
        $region80: #{_lambda_.2} parent=73 // pred_check_branch
          %408 = sbr.rel (%p406) target = $region82
        $region81: #{_lambda_.2} parent=73 // pred_region
          %409 = vst [vmem:[#allocation2] sm:$0xff] 0.0
          %410 = vst [vmem:[#allocation2 + $0x8] sm:$0xff] 0.0
          %411 = vst [vmem:[#allocation2 + $0x10] sm:$0xff] 0.0
          %412 = vst [vmem:[#allocation2 + $0x18] sm:$0xff] 0.0
          %413 = vst [vmem:[#allocation2 + $0x20] sm:$0xff] 0.0
          %414 = vst [vmem:[#allocation2 + $0x28] sm:$0xff] 0.0
          %415 = vst [vmem:[#allocation2 + $0x30] sm:$0xff] 0.0
          %416 = vst [vmem:[#allocation2 + $0x38] sm:$0xff] 0.0
          %417 = vst [vmem:[#allocation2 + $0x40] sm:$0xff] 0.0
          %418 = vst [vmem:[#allocation2 + $0x48] sm:$0xff] 0.0
          %419 = vst [vmem:[#allocation2 + $0x50] sm:$0xff] 0.0
          %420 = vst [vmem:[#allocation2 + $0x58] sm:$0xff] 0.0
          %421 = vst [vmem:[#allocation2 + $0x60] sm:$0xff] 0.0
          %422 = vst [vmem:[#allocation2 + $0x68] sm:$0xff] 0.0
          %423 = vst [vmem:[#allocation2 + $0x70] sm:$0xff] 0.0
          %424 = vst [vmem:[#allocation2 + $0x78] sm:$0xff] 0.0
          %425 = vst [vmem:[#allocation2 + $0x80] sm:$0xff] 0.0
          %426 = vst [vmem:[#allocation2 + $0x88] sm:$0xff] 0.0
          %427 = vst [vmem:[#allocation2 + $0x90] sm:$0xff] 0.0
          %428 = vst [vmem:[#allocation2 + $0x98] sm:$0xff] 0.0
          %429 = vst [vmem:[#allocation2 + $0xa0] sm:$0xff] 0.0
          %430 = vst [vmem:[#allocation2 + $0xa8] sm:$0xff] 0.0
          %431 = vst [vmem:[#allocation2 + $0xb0] sm:$0xff] 0.0
          %432 = vst [vmem:[#allocation2 + $0xb8] sm:$0xff] 0.0
          %433 = vst [vmem:[#allocation2 + $0xc0] sm:$0xff] 0.0
          %434 = vst [vmem:[#allocation2 + $0xc8] sm:$0xff] 0.0
          %435 = vst [vmem:[#allocation2 + $0xd0] sm:$0xff] 0.0
          %436 = vst [vmem:[#allocation2 + $0xd8] sm:$0xff] 0.0
          %437 = vst [vmem:[#allocation2 + $0xe0] sm:$0xff] 0.0
          %438 = vst [vmem:[#allocation2 + $0xe8] sm:$0xff] 0.0
          %439 = vst [vmem:[#allocation2 + $0xf0] sm:$0xff] 0.0
          %440 = vst [vmem:[#allocation2 + $0xf8] sm:$0xff] 0.0
        $region82: #{_lambda_.2} parent=73 // pred_fallthru
          _
        %s441 = smul.u32 %s21, 256
        %s442 = sshra.s32 %s441, 3
        %s443 = sand.u32 %s441, 7
        %s444 = smul.addr %s442, 4
        %s445 = scalar_lea.vmem %s1, %s444
        %v446 = vld [vmem:[%s445] sm:$0xf]
        %v447 = vld [vmem:[%s445 + $0x4] sm:$0xf]
        %v448 = vld [vmem:[%s445 + $0x8] sm:$0xf]
        %v449 = vld [vmem:[%s445 + $0xc] sm:$0xf]
        %v450 = vld [vmem:[%s445 + $0x10] sm:$0xf]
        %v451 = vld [vmem:[%s445 + $0x14] sm:$0xf]
        %v452 = vld [vmem:[%s445 + $0x18] sm:$0xf]
        %v453 = vld [vmem:[%s445 + $0x1c] sm:$0xf]
        %v454 = vld [vmem:[%s445 + $0x20] sm:$0xf]
        %v455 = vld [vmem:[%s445 + $0x24] sm:$0xf]
        %v456 = vld [vmem:[%s445 + $0x28] sm:$0xf]
        %v457 = vld [vmem:[%s445 + $0x2c] sm:$0xf]
        %v458 = vld [vmem:[%s445 + $0x30] sm:$0xf]
        %v459 = vld [vmem:[%s445 + $0x34] sm:$0xf]
        %v460 = vld [vmem:[%s445 + $0x38] sm:$0xf]
        %v461 = vld [vmem:[%s445 + $0x3c] sm:$0xf]
        %v462 = vld [vmem:[%s445 + $0x40] sm:$0xf]
        %v463 = vld [vmem:[%s445 + $0x44] sm:$0xf]
        %v464 = vld [vmem:[%s445 + $0x48] sm:$0xf]
        %v465 = vld [vmem:[%s445 + $0x4c] sm:$0xf]
        %v466 = vld [vmem:[%s445 + $0x50] sm:$0xf]
        %v467 = vld [vmem:[%s445 + $0x54] sm:$0xf]
        %v468 = vld [vmem:[%s445 + $0x58] sm:$0xf]
        %v469 = vld [vmem:[%s445 + $0x5c] sm:$0xf]
        %v470 = vld [vmem:[%s445 + $0x60] sm:$0xf]
        %v471 = vld [vmem:[%s445 + $0x64] sm:$0xf]
        %v472 = vld [vmem:[%s445 + $0x68] sm:$0xf]
        %v473 = vld [vmem:[%s445 + $0x6c] sm:$0xf]
        %v474 = vld [vmem:[%s445 + $0x70] sm:$0xf]
        %v475 = vld [vmem:[%s445 + $0x74] sm:$0xf]
        %v476 = vld [vmem:[%s445 + $0x78] sm:$0xf]
        %v477 = vld [vmem:[%s445 + $0x7c] sm:$0xf]
        %v478 = vld [vmem:[#allocation2] sm:$0xff]
        %v479 = vld [vmem:[#allocation2 + $0x8] sm:$0xff]
        %v480 = vld [vmem:[#allocation2 + $0x10] sm:$0xff]
        %v481 = vld [vmem:[#allocation2 + $0x18] sm:$0xff]
        %v482 = vld [vmem:[#allocation2 + $0x20] sm:$0xff]
        %v483 = vld [vmem:[#allocation2 + $0x28] sm:$0xff]
        %v484 = vld [vmem:[#allocation2 + $0x30] sm:$0xff]
        %v485 = vld [vmem:[#allocation2 + $0x38] sm:$0xff]
        %v486 = vld [vmem:[#allocation2 + $0x40] sm:$0xff]
        %v487 = vld [vmem:[#allocation2 + $0x48] sm:$0xff]
        %v488 = vld [vmem:[#allocation2 + $0x50] sm:$0xff]
        %v489 = vld [vmem:[#allocation2 + $0x58] sm:$0xff]
        %v490 = vld [vmem:[#allocation2 + $0x60] sm:$0xff]
        %v491 = vld [vmem:[#allocation2 + $0x68] sm:$0xff]
        %v492 = vld [vmem:[#allocation2 + $0x70] sm:$0xff]
        %v493 = vld [vmem:[#allocation2 + $0x78] sm:$0xff]
        %v494 = vld [vmem:[#allocation2 + $0x80] sm:$0xff]
        %v495 = vld [vmem:[#allocation2 + $0x88] sm:$0xff]
        %v496 = vld [vmem:[#allocation2 + $0x90] sm:$0xff]
        %v497 = vld [vmem:[#allocation2 + $0x98] sm:$0xff]
        %v498 = vld [vmem:[#allocation2 + $0xa0] sm:$0xff]
        %v499 = vld [vmem:[#allocation2 + $0xa8] sm:$0xff]
        %v500 = vld [vmem:[#allocation2 + $0xb0] sm:$0xff]
        %v501 = vld [vmem:[#allocation2 + $0xb8] sm:$0xff]
        %v502 = vld [vmem:[#allocation2 + $0xc0] sm:$0xff]
        %v503 = vld [vmem:[#allocation2 + $0xc8] sm:$0xff]
        %v504 = vld [vmem:[#allocation2 + $0xd0] sm:$0xff]
        %v505 = vld [vmem:[#allocation2 + $0xd8] sm:$0xff]
        %v506 = vld [vmem:[#allocation2 + $0xe0] sm:$0xff]
        %v507 = vld [vmem:[#allocation2 + $0xe8] sm:$0xff]
        %v508 = vld [vmem:[#allocation2 + $0xf0] sm:$0xff]
        %v509 = vld [vmem:[#allocation2 + $0xf8] sm:$0xff]
        %v510 = vld [vmem:[%s371] sm:$0xff]
        %v511 = vld [vmem:[%s371 + $0x8] sm:$0xff]
        %v512 = vld [vmem:[%s371 + $0x10] sm:$0xff]
        %v513 = vld [vmem:[%s371 + $0x18] sm:$0xff]
        %v514 = vld [vmem:[%s371 + $0x20] sm:$0xff]
        %v515 = vld [vmem:[%s371 + $0x28] sm:$0xff]
        %v516 = vld [vmem:[%s371 + $0x30] sm:$0xff]
        %v517 = vld [vmem:[%s371 + $0x38] sm:$0xff]
        %v518 = vld [vmem:[%s371 + $0x40] sm:$0xff]
        %v519 = vld [vmem:[%s371 + $0x48] sm:$0xff]
        %v520 = vld [vmem:[%s371 + $0x50] sm:$0xff]
        %v521 = vld [vmem:[%s371 + $0x58] sm:$0xff]
        %v522 = vld [vmem:[%s371 + $0x60] sm:$0xff]
        %v523 = vld [vmem:[%s371 + $0x68] sm:$0xff]
        %v524 = vld [vmem:[%s371 + $0x70] sm:$0xff]
        %v525 = vld [vmem:[%s371 + $0x78] sm:$0xff]
        %v526 = vld [vmem:[%s371 + $0x80] sm:$0xff]
        %v527 = vld [vmem:[%s371 + $0x88] sm:$0xff]
        %v528 = vld [vmem:[%s371 + $0x90] sm:$0xff]
        %v529 = vld [vmem:[%s371 + $0x98] sm:$0xff]
        %v530 = vld [vmem:[%s371 + $0xa0] sm:$0xff]
        %v531 = vld [vmem:[%s371 + $0xa8] sm:$0xff]
        %v532 = vld [vmem:[%s371 + $0xb0] sm:$0xff]
        %v533 = vld [vmem:[%s371 + $0xb8] sm:$0xff]
        %v534 = vld [vmem:[%s371 + $0xc0] sm:$0xff]
        %v535 = vld [vmem:[%s371 + $0xc8] sm:$0xff]
        %v536 = vld [vmem:[%s371 + $0xd0] sm:$0xff]
        %v537 = vld [vmem:[%s371 + $0xd8] sm:$0xff]
        %v538 = vld [vmem:[%s371 + $0xe0] sm:$0xff]
        %v539 = vld [vmem:[%s371 + $0xe8] sm:$0xff]
        %v540 = vld [vmem:[%s371 + $0xf0] sm:$0xff]
        %v541 = vld [vmem:[%s371 + $0xf8] sm:$0xff]
        %v574 = vunpack.c.l.b16 %v510
        %v575 = vunpack.c.h.b16 %v510
        %v576 = vunpack.c.l.b16 %v511
        %v577 = vunpack.c.h.b16 %v511
        %v578 = vunpack.c.l.b16 %v512
        %v579 = vunpack.c.h.b16 %v512
        %v580 = vunpack.c.l.b16 %v513
        %v581 = vunpack.c.h.b16 %v513
        %v582 = vunpack.c.l.b16 %v514
        %v583 = vunpack.c.h.b16 %v514
        %v584 = vunpack.c.l.b16 %v515
        %v585 = vunpack.c.h.b16 %v515
        %v586 = vunpack.c.l.b16 %v516
        %v587 = vunpack.c.h.b16 %v516
        %v588 = vunpack.c.l.b16 %v517
        %v589 = vunpack.c.h.b16 %v517
        %v590 = vunpack.c.l.b16 %v518
        %v591 = vunpack.c.h.b16 %v518
        %v592 = vunpack.c.l.b16 %v519
        %v593 = vunpack.c.h.b16 %v519
        %v594 = vunpack.c.l.b16 %v520
        %v595 = vunpack.c.h.b16 %v520
        %v596 = vunpack.c.l.b16 %v521
        %v597 = vunpack.c.h.b16 %v521
        %v598 = vunpack.c.l.b16 %v522
        %v599 = vunpack.c.h.b16 %v522
        %v600 = vunpack.c.l.b16 %v523
        %v601 = vunpack.c.h.b16 %v523
        %v602 = vunpack.c.l.b16 %v524
        %v603 = vunpack.c.h.b16 %v524
        %v604 = vunpack.c.l.b16 %v525
        %v605 = vunpack.c.h.b16 %v525
        %v606 = vunpack.c.l.b16 %v526
        %v607 = vunpack.c.h.b16 %v526
        %v608 = vunpack.c.l.b16 %v527
        %v609 = vunpack.c.h.b16 %v527
        %v610 = vunpack.c.l.b16 %v528
        %v611 = vunpack.c.h.b16 %v528
        %v612 = vunpack.c.l.b16 %v529
        %v613 = vunpack.c.h.b16 %v529
        %v614 = vunpack.c.l.b16 %v530
        %v615 = vunpack.c.h.b16 %v530
        %v616 = vunpack.c.l.b16 %v531
        %v617 = vunpack.c.h.b16 %v531
        %v618 = vunpack.c.l.b16 %v532
        %v619 = vunpack.c.h.b16 %v532
        %v620 = vunpack.c.l.b16 %v533
        %v621 = vunpack.c.h.b16 %v533
        %v622 = vunpack.c.l.b16 %v534
        %v623 = vunpack.c.h.b16 %v534
        %v624 = vunpack.c.l.b16 %v535
        %v625 = vunpack.c.h.b16 %v535
        %v626 = vunpack.c.l.b16 %v536
        %v627 = vunpack.c.h.b16 %v536
        %v628 = vunpack.c.l.b16 %v537
        %v629 = vunpack.c.h.b16 %v537
        %v630 = vunpack.c.l.b16 %v538
        %v631 = vunpack.c.h.b16 %v538
        %v632 = vunpack.c.l.b16 %v539
        %v633 = vunpack.c.h.b16 %v539
        %v634 = vunpack.c.l.b16 %v540
        %v635 = vunpack.c.h.b16 %v540
        %v636 = vunpack.c.l.b16 %v541
        %v637 = vunpack.c.h.b16 %v541
        %v638 = vpack.c.b16 %v576, %v574
        %v639 = vpack.c.b16 %v577, %v575
        %v640 = vpack.c.b16 %v580, %v578
        %v641 = vpack.c.b16 %v581, %v579
        %v642 = vpack.c.b16 %v584, %v582
        %v643 = vpack.c.b16 %v585, %v583
        %v644 = vpack.c.b16 %v588, %v586
        %v645 = vpack.c.b16 %v589, %v587
        %v646 = vpack.c.b16 %v592, %v590
        %v647 = vpack.c.b16 %v593, %v591
        %v648 = vpack.c.b16 %v596, %v594
        %v649 = vpack.c.b16 %v597, %v595
        %v650 = vpack.c.b16 %v600, %v598
        %v651 = vpack.c.b16 %v601, %v599
        %v652 = vpack.c.b16 %v604, %v602
        %v653 = vpack.c.b16 %v605, %v603
        %v654 = vpack.c.b16 %v608, %v606
        %v655 = vpack.c.b16 %v609, %v607
        %v656 = vpack.c.b16 %v612, %v610
        %v657 = vpack.c.b16 %v613, %v611
        %v658 = vpack.c.b16 %v616, %v614
        %v659 = vpack.c.b16 %v617, %v615
        %v660 = vpack.c.b16 %v620, %v618
        %v661 = vpack.c.b16 %v621, %v619
        %v662 = vpack.c.b16 %v624, %v622
        %v663 = vpack.c.b16 %v625, %v623
        %v664 = vpack.c.b16 %v628, %v626
        %v665 = vpack.c.b16 %v629, %v627
        %v666 = vpack.c.b16 %v632, %v630
        %v667 = vpack.c.b16 %v633, %v631
        %v668 = vpack.c.b16 %v636, %v634
        %v669 = vpack.c.b16 %v637, %v635
        %v734 = vunpack.c.l.b16 %v446
        %v735 = vunpack.c.l.b16 %v447
        %v736 = vunpack.c.l.b16 %v448
        %v737 = vunpack.c.l.b16 %v449
        %v738 = vunpack.c.l.b16 %v450
        %v739 = vunpack.c.l.b16 %v451
        %v740 = vunpack.c.l.b16 %v452
        %v741 = vunpack.c.l.b16 %v453
        %v742 = vunpack.c.l.b16 %v454
        %v743 = vunpack.c.l.b16 %v455
        %v744 = vunpack.c.l.b16 %v456
        %v745 = vunpack.c.l.b16 %v457
        %v746 = vunpack.c.l.b16 %v458
        %v747 = vunpack.c.l.b16 %v459
        %v748 = vunpack.c.l.b16 %v460
        %v749 = vunpack.c.l.b16 %v461
        %v750 = vunpack.c.l.b16 %v462
        %v751 = vunpack.c.l.b16 %v463
        %v752 = vunpack.c.l.b16 %v464
        %v753 = vunpack.c.l.b16 %v465
        %v754 = vunpack.c.l.b16 %v466
        %v755 = vunpack.c.l.b16 %v467
        %v756 = vunpack.c.l.b16 %v468
        %v757 = vunpack.c.l.b16 %v469
        %v758 = vunpack.c.l.b16 %v470
        %v759 = vunpack.c.l.b16 %v471
        %v760 = vunpack.c.l.b16 %v472
        %v761 = vunpack.c.l.b16 %v473
        %v762 = vunpack.c.l.b16 %v474
        %v763 = vunpack.c.l.b16 %v475
        %v764 = vunpack.c.l.b16 %v476
        %v765 = vunpack.c.l.b16 %v477
        %v766 = vpack.c.b16 %v735, %v734
        %v767 = vpack.c.b16 %v737, %v736
        %v768 = vpack.c.b16 %v739, %v738
        %v769 = vpack.c.b16 %v741, %v740
        %v770 = vpack.c.b16 %v743, %v742
        %v771 = vpack.c.b16 %v745, %v744
        %v772 = vpack.c.b16 %v747, %v746
        %v773 = vpack.c.b16 %v749, %v748
        %v774 = vpack.c.b16 %v751, %v750
        %v775 = vpack.c.b16 %v753, %v752
        %v776 = vpack.c.b16 %v755, %v754
        %v777 = vpack.c.b16 %v757, %v756
        %v778 = vpack.c.b16 %v759, %v758
        %v779 = vpack.c.b16 %v761, %v760
        %v780 = vpack.c.b16 %v763, %v762
        %v781 = vpack.c.b16 %v765, %v764
        %798 = vmatprep.subr.bf16.mxu0 0
        %799 = vmatpush1.bf16.msra.mxu0 %v766
        %800 = vmatprep.subr.bf16.mxu0 0
        %801 = vmatpush1.bf16.msra.mxu0 %v767
        %802 = vmatprep.subr.bf16.mxu0 0
        %803 = vmatpush1.bf16.msra.mxu0 %v768
        %804 = vmatprep.subr.bf16.mxu0 0
        %805 = vmatpush1.bf16.msra.mxu0 %v769
        %806 = vmatprep.subr.bf16.mxu0 0
        %807 = vmatpush1.bf16.msra.mxu0 %v770
        %808 = vmatprep.subr.bf16.mxu0 0
        %809 = vmatpush1.bf16.msra.mxu0 %v771
        %810 = vmatprep.subr.bf16.mxu0 0
        %811 = vmatpush1.bf16.msra.mxu0 %v772
        %812 = vmatprep.subr.bf16.mxu0 0
        %813 = vmatpush1.bf16.msra.mxu0 %v773
        %814 = vmatprep.subr.bf16.mxu0 0
        %815 = vmatpush1.bf16.msra.mxu0 %v774
        %816 = vmatprep.subr.bf16.mxu0 0
        %817 = vmatpush1.bf16.msra.mxu0 %v775
        %818 = vmatprep.subr.bf16.mxu0 0
        %819 = vmatpush1.bf16.msra.mxu0 %v776
        %820 = vmatprep.subr.bf16.mxu0 0
        %821 = vmatpush1.bf16.msra.mxu0 %v777
        %822 = vmatprep.subr.bf16.mxu0 0
        %823 = vmatpush1.bf16.msra.mxu0 %v778
        %824 = vmatprep.subr.bf16.mxu0 0
        %825 = vmatpush1.bf16.msra.mxu0 %v779
        %826 = vmatprep.subr.bf16.mxu0 0
        %827 = vmatpush1.bf16.msra.mxu0 %v780
        %828 = vmatprep.subr.bf16.mxu0 0
        %829 = vmatpush1.bf16.msra.mxu0 %v781
        %830 = vmatprep.mubr.bf16.mxu0 %v639
        %831 = vmatmul.mubr.bf16.gmra.mrb[0].mxu0 %v638
        %v832 = vpop.f32.mrb[0].mxu0
        %v833 = vadd.f32 0.0, %v832
        %v834 = vpop.f32.mrb[0].mxu0
        %v835 = vpop.f32.mrb[0].mxu0
        %v836 = vadd.f32 0.0, %v835
        %v837 = vpop.f32.mrb[0].mxu0
        %838 = vmatprep.mubr.bf16.mxu0 %v641
        %839 = vmatmul.mubr.bf16.gmra.mrb[0].mxu0 %v640
        %v840 = vpop.f32.mrb[0].mxu0
        %v841 = vadd.f32 0.0, %v840
        %v842 = vpop.f32.mrb[0].mxu0
        %v843 = vpop.f32.mrb[0].mxu0
        %v844 = vadd.f32 0.0, %v843
        %v845 = vpop.f32.mrb[0].mxu0
        %846 = vmatprep.mubr.bf16.mxu0 %v643
        %847 = vmatmul.mubr.bf16.gmra.mrb[0].mxu0 %v642
        %v848 = vpop.f32.mrb[0].mxu0
        %v849 = vadd.f32 0.0, %v848
        %v850 = vpop.f32.mrb[0].mxu0
        %v851 = vpop.f32.mrb[0].mxu0
        %v852 = vadd.f32 0.0, %v851
        %v853 = vpop.f32.mrb[0].mxu0
        %854 = vmatprep.mubr.bf16.mxu0 %v645
        %855 = vmatmul.mubr.bf16.gmra.mrb[0].mxu0 %v644
        %v856 = vpop.f32.mrb[0].mxu0
        %v857 = vadd.f32 0.0, %v856
        %v858 = vpop.f32.mrb[0].mxu0
        %v859 = vpop.f32.mrb[0].mxu0
        %v860 = vadd.f32 0.0, %v859
        %v861 = vpop.f32.mrb[0].mxu0
        %862 = vmatprep.mubr.bf16.mxu0 %v647
        %863 = vmatmul.mubr.bf16.gmra.mrb[0].mxu0 %v646
        %v864 = vpop.f32.mrb[0].mxu0
        %v865 = vadd.f32 0.0, %v864
        %v866 = vpop.f32.mrb[0].mxu0
        %v867 = vpop.f32.mrb[0].mxu0
        %v868 = vadd.f32 0.0, %v867
        %v869 = vpop.f32.mrb[0].mxu0
        %870 = vmatprep.mubr.bf16.mxu0 %v649
        %871 = vmatmul.mubr.bf16.gmra.mrb[0].mxu0 %v648
        %v872 = vpop.f32.mrb[0].mxu0
        %v873 = vadd.f32 0.0, %v872
        %v874 = vpop.f32.mrb[0].mxu0
        %v875 = vpop.f32.mrb[0].mxu0
        %v876 = vadd.f32 0.0, %v875
        %v877 = vpop.f32.mrb[0].mxu0
        %878 = vmatprep.mubr.bf16.mxu0 %v651
        %879 = vmatmul.mubr.bf16.gmra.mrb[0].mxu0 %v650
        %v880 = vpop.f32.mrb[0].mxu0
        %v881 = vadd.f32 0.0, %v880
        %v882 = vpop.f32.mrb[0].mxu0
        %v883 = vpop.f32.mrb[0].mxu0
        %v884 = vadd.f32 0.0, %v883
        %v885 = vpop.f32.mrb[0].mxu0
        %886 = vmatprep.mubr.bf16.mxu0 %v653
        %887 = vmatmul.mubr.bf16.gmra.mrb[0].mxu0 %v652
        %v888 = vpop.f32.mrb[0].mxu0
        %v889 = vadd.f32 0.0, %v888
        %v890 = vpop.f32.mrb[0].mxu0
        %v891 = vpop.f32.mrb[0].mxu0
        %v892 = vadd.f32 0.0, %v891
        %v893 = vpop.f32.mrb[0].mxu0
        %894 = vmatprep.mubr.bf16.mxu0 %v655
        %895 = vmatmul.mubr.bf16.gmra.mrb[0].mxu0 %v654
        %v896 = vpop.f32.mrb[0].mxu0
        %v897 = vadd.f32 0.0, %v896
        %v898 = vpop.f32.mrb[0].mxu0
        %v899 = vpop.f32.mrb[0].mxu0
        %v900 = vadd.f32 0.0, %v899
        %v901 = vpop.f32.mrb[0].mxu0
        %902 = vmatprep.mubr.bf16.mxu0 %v657
        %903 = vmatmul.mubr.bf16.gmra.mrb[0].mxu0 %v656
        %v904 = vpop.f32.mrb[0].mxu0
        %v905 = vadd.f32 0.0, %v904
        %v906 = vpop.f32.mrb[0].mxu0
        %v907 = vpop.f32.mrb[0].mxu0
        %v908 = vadd.f32 0.0, %v907
        %v909 = vpop.f32.mrb[0].mxu0
        %910 = vmatprep.mubr.bf16.mxu0 %v659
        %911 = vmatmul.mubr.bf16.gmra.mrb[0].mxu0 %v658
        %v912 = vpop.f32.mrb[0].mxu0
        %v913 = vadd.f32 0.0, %v912
        %v914 = vpop.f32.mrb[0].mxu0
        %v915 = vpop.f32.mrb[0].mxu0
        %v916 = vadd.f32 0.0, %v915
        %v917 = vpop.f32.mrb[0].mxu0
        %918 = vmatprep.mubr.bf16.mxu0 %v661
        %919 = vmatmul.mubr.bf16.gmra.mrb[0].mxu0 %v660
        %v920 = vpop.f32.mrb[0].mxu0
        %v921 = vadd.f32 0.0, %v920
        %v922 = vpop.f32.mrb[0].mxu0
        %v923 = vpop.f32.mrb[0].mxu0
        %v924 = vadd.f32 0.0, %v923
        %v925 = vpop.f32.mrb[0].mxu0
        %926 = vmatprep.mubr.bf16.mxu0 %v663
        %927 = vmatmul.mubr.bf16.gmra.mrb[0].mxu0 %v662
        %v928 = vpop.f32.mrb[0].mxu0
        %v929 = vadd.f32 0.0, %v928
        %v930 = vpop.f32.mrb[0].mxu0
        %v931 = vpop.f32.mrb[0].mxu0
        %v932 = vadd.f32 0.0, %v931
        %v933 = vpop.f32.mrb[0].mxu0
        %934 = vmatprep.mubr.bf16.mxu0 %v665
        %935 = vmatmul.mubr.bf16.gmra.mrb[0].mxu0 %v664
        %v936 = vpop.f32.mrb[0].mxu0
        %v937 = vadd.f32 0.0, %v936
        %v938 = vpop.f32.mrb[0].mxu0
        %v939 = vpop.f32.mrb[0].mxu0
        %v940 = vadd.f32 0.0, %v939
        %v941 = vpop.f32.mrb[0].mxu0
        %942 = vmatprep.mubr.bf16.mxu0 %v667
        %943 = vmatmul.mubr.bf16.gmra.mrb[0].mxu0 %v666
        %v944 = vpop.f32.mrb[0].mxu0
        %v945 = vadd.f32 0.0, %v944
        %v946 = vpop.f32.mrb[0].mxu0
        %v947 = vpop.f32.mrb[0].mxu0
        %v948 = vadd.f32 0.0, %v947
        %v949 = vpop.f32.mrb[0].mxu0
        %950 = vmatprep.mubr.bf16.mxu0 %v669
        %951 = vmatmul.mubr.bf16.gmra.mrb[0].mxu0 %v668
        %v952 = vpop.f32.mrb[0].mxu0
        %v953 = vadd.f32 0.0, %v952
        %v954 = vpop.f32.mrb[0].mxu0
        %v955 = vpop.f32.mrb[0].mxu0
        %v956 = vadd.f32 0.0, %v955
        %v957 = vpop.f32.mrb[0].mxu0
        %958 = vdwg.mxu0
        %v959 = vadd.f32 %v478, %v833
        %v960 = vadd.f32 %v479, %v836
        %v961 = vadd.f32 %v480, %v841
        %v962 = vadd.f32 %v481, %v844
        %v963 = vadd.f32 %v482, %v849
        %v964 = vadd.f32 %v483, %v852
        %v965 = vadd.f32 %v484, %v857
        %v966 = vadd.f32 %v485, %v860
        %v967 = vadd.f32 %v486, %v865
        %v968 = vadd.f32 %v487, %v868
        %v969 = vadd.f32 %v488, %v873
        %v970 = vadd.f32 %v489, %v876
        %v971 = vadd.f32 %v490, %v881
        %v972 = vadd.f32 %v491, %v884
        %v973 = vadd.f32 %v492, %v889
        %v974 = vadd.f32 %v493, %v892
        %v975 = vadd.f32 %v494, %v897
        %v976 = vadd.f32 %v495, %v900
        %v977 = vadd.f32 %v496, %v905
        %v978 = vadd.f32 %v497, %v908
        %v979 = vadd.f32 %v498, %v913
        %v980 = vadd.f32 %v499, %v916
        %v981 = vadd.f32 %v500, %v921
        %v982 = vadd.f32 %v501, %v924
        %v983 = vadd.f32 %v502, %v929
        %v984 = vadd.f32 %v503, %v932
        %v985 = vadd.f32 %v504, %v937
        %v986 = vadd.f32 %v505, %v940
        %v987 = vadd.f32 %v506, %v945
        %v988 = vadd.f32 %v507, %v948
        %v989 = vadd.f32 %v508, %v953
        %v990 = vadd.f32 %v509, %v956
        %991 = vst [vmem:[#allocation2] sm:$0xff] %v959
        %992 = vst [vmem:[#allocation2 + $0x8] sm:$0xff] %v960
        %993 = vst [vmem:[#allocation2 + $0x10] sm:$0xff] %v961
        %994 = vst [vmem:[#allocation2 + $0x18] sm:$0xff] %v962
        %995 = vst [vmem:[#allocation2 + $0x20] sm:$0xff] %v963
        %996 = vst [vmem:[#allocation2 + $0x28] sm:$0xff] %v964
        %997 = vst [vmem:[#allocation2 + $0x30] sm:$0xff] %v965
        %998 = vst [vmem:[#allocation2 + $0x38] sm:$0xff] %v966
        %999 = vst [vmem:[#allocation2 + $0x40] sm:$0xff] %v967
        %1000 = vst [vmem:[#allocation2 + $0x48] sm:$0xff] %v968
        %1001 = vst [vmem:[#allocation2 + $0x50] sm:$0xff] %v969
        %1002 = vst [vmem:[#allocation2 + $0x58] sm:$0xff] %v970
        %1003 = vst [vmem:[#allocation2 + $0x60] sm:$0xff] %v971
        %1004 = vst [vmem:[#allocation2 + $0x68] sm:$0xff] %v972
        %1005 = vst [vmem:[#allocation2 + $0x70] sm:$0xff] %v973
        %1006 = vst [vmem:[#allocation2 + $0x78] sm:$0xff] %v974
        %1007 = vst [vmem:[#allocation2 + $0x80] sm:$0xff] %v975
        %1008 = vst [vmem:[#allocation2 + $0x88] sm:$0xff] %v976
        %1009 = vst [vmem:[#allocation2 + $0x90] sm:$0xff] %v977
        %1010 = vst [vmem:[#allocation2 + $0x98] sm:$0xff] %v978
        %1011 = vst [vmem:[#allocation2 + $0xa0] sm:$0xff] %v979
        %1012 = vst [vmem:[#allocation2 + $0xa8] sm:$0xff] %v980
        %1013 = vst [vmem:[#allocation2 + $0xb0] sm:$0xff] %v981
        %1014 = vst [vmem:[#allocation2 + $0xb8] sm:$0xff] %v982
        %1015 = vst [vmem:[#allocation2 + $0xc0] sm:$0xff] %v983
        %1016 = vst [vmem:[#allocation2 + $0xc8] sm:$0xff] %v984
        %1017 = vst [vmem:[#allocation2 + $0xd0] sm:$0xff] %v985
        %1018 = vst [vmem:[#allocation2 + $0xd8] sm:$0xff] %v986
        %1019 = vst [vmem:[#allocation2 + $0xe0] sm:$0xff] %v987
        %1020 = vst [vmem:[#allocation2 + $0xe8] sm:$0xff] %v988
        %1021 = vst [vmem:[#allocation2 + $0xf0] sm:$0xff] %v989
        %1022 = vst [vmem:[#allocation2 + $0xf8] sm:$0xff] %v990
        %p1023 = scmp.eq.s32.totalorder %s21, 1
        // Predicated region
        $region83: #{_lambda_.2} parent=73 // pred_check
          %p1024 = pneg %p1023
        $region84: #{_lambda_.2} parent=73 // pred_check_branch
          %1026 = sbr.rel (%p1024) target = $region86
        $region85: #{_lambda_.2} parent=73 // pred_region
          %v1027 = vld [vmem:[#allocation2] sm:$0xff]
          %v1028 = vld [vmem:[#allocation2 + $0x8] sm:$0xff]
          %v1029 = vld [vmem:[#allocation2 + $0x10] sm:$0xff]
          %v1030 = vld [vmem:[#allocation2 + $0x18] sm:$0xff]
          %v1031 = vld [vmem:[#allocation2 + $0x20] sm:$0xff]
          %v1032 = vld [vmem:[#allocation2 + $0x28] sm:$0xff]
          %v1033 = vld [vmem:[#allocation2 + $0x30] sm:$0xff]
          %v1034 = vld [vmem:[#allocation2 + $0x38] sm:$0xff]
          %v1035 = vld [vmem:[#allocation2 + $0x40] sm:$0xff]
          %v1036 = vld [vmem:[#allocation2 + $0x48] sm:$0xff]
          %v1037 = vld [vmem:[#allocation2 + $0x50] sm:$0xff]
          %v1038 = vld [vmem:[#allocation2 + $0x58] sm:$0xff]
          %v1039 = vld [vmem:[#allocation2 + $0x60] sm:$0xff]
          %v1040 = vld [vmem:[#allocation2 + $0x68] sm:$0xff]
          %v1041 = vld [vmem:[#allocation2 + $0x70] sm:$0xff]
          %v1042 = vld [vmem:[#allocation2 + $0x78] sm:$0xff]
          %v1043 = vld [vmem:[#allocation2 + $0x80] sm:$0xff]
          %v1044 = vld [vmem:[#allocation2 + $0x88] sm:$0xff]
          %v1045 = vld [vmem:[#allocation2 + $0x90] sm:$0xff]
          %v1046 = vld [vmem:[#allocation2 + $0x98] sm:$0xff]
          %v1047 = vld [vmem:[#allocation2 + $0xa0] sm:$0xff]
          %v1048 = vld [vmem:[#allocation2 + $0xa8] sm:$0xff]
          %v1049 = vld [vmem:[#allocation2 + $0xb0] sm:$0xff]
          %v1050 = vld [vmem:[#allocation2 + $0xb8] sm:$0xff]
          %v1051 = vld [vmem:[#allocation2 + $0xc0] sm:$0xff]
          %v1052 = vld [vmem:[#allocation2 + $0xc8] sm:$0xff]
          %v1053 = vld [vmem:[#allocation2 + $0xd0] sm:$0xff]
          %v1054 = vld [vmem:[#allocation2 + $0xd8] sm:$0xff]
          %v1055 = vld [vmem:[#allocation2 + $0xe0] sm:$0xff]
          %v1056 = vld [vmem:[#allocation2 + $0xe8] sm:$0xff]
          %v1057 = vld [vmem:[#allocation2 + $0xf0] sm:$0xff]
          %v1058 = vld [vmem:[#allocation2 + $0xf8] sm:$0xff]
          %v1059 = vpack.c.bf16 %v1028, %v1027
          %v1060 = vpack.c.bf16 %v1030, %v1029
          %v1061 = vpack.c.bf16 %v1032, %v1031
          %v1062 = vpack.c.bf16 %v1034, %v1033
          %v1063 = vpack.c.bf16 %v1036, %v1035
          %v1064 = vpack.c.bf16 %v1038, %v1037
          %v1065 = vpack.c.bf16 %v1040, %v1039
          %v1066 = vpack.c.bf16 %v1042, %v1041
          %v1067 = vpack.c.bf16 %v1044, %v1043
          %v1068 = vpack.c.bf16 %v1046, %v1045
          %v1069 = vpack.c.bf16 %v1048, %v1047
          %v1070 = vpack.c.bf16 %v1050, %v1049
          %v1071 = vpack.c.bf16 %v1052, %v1051
          %v1072 = vpack.c.bf16 %v1054, %v1053
          %v1073 = vpack.c.bf16 %v1056, %v1055
          %v1074 = vpack.c.bf16 %v1058, %v1057
          %s1075 = smul.u32 %s20, 256
          %s1076 = sshra.s32 %s1075, 3
          %s1077 = sand.u32 %s1075, 7
          %s1078 = smul.addr %s1076, 4
          %s1079 = scalar_lea.vmem %s1, %s1078
          %v1080 = vld [vmem:[%s1079] sm:$0xf]
          %v1081 = vld [vmem:[%s1079 + $0x4] sm:$0xf]
          %v1082 = vld [vmem:[%s1079 + $0x8] sm:$0xf]
          %v1083 = vld [vmem:[%s1079 + $0xc] sm:$0xf]
          %v1084 = vld [vmem:[%s1079 + $0x10] sm:$0xf]
          %v1085 = vld [vmem:[%s1079 + $0x14] sm:$0xf]
          %v1086 = vld [vmem:[%s1079 + $0x18] sm:$0xf]
          %v1087 = vld [vmem:[%s1079 + $0x1c] sm:$0xf]
          %v1088 = vld [vmem:[%s1079 + $0x20] sm:$0xf]
          %v1089 = vld [vmem:[%s1079 + $0x24] sm:$0xf]
          %v1090 = vld [vmem:[%s1079 + $0x28] sm:$0xf]
          %v1091 = vld [vmem:[%s1079 + $0x2c] sm:$0xf]
          %v1092 = vld [vmem:[%s1079 + $0x30] sm:$0xf]
          %v1093 = vld [vmem:[%s1079 + $0x34] sm:$0xf]
          %v1094 = vld [vmem:[%s1079 + $0x38] sm:$0xf]
          %v1095 = vld [vmem:[%s1079 + $0x3c] sm:$0xf]
          %v1096 = vld [vmem:[%s1079 + $0x40] sm:$0xf]
          %v1097 = vld [vmem:[%s1079 + $0x44] sm:$0xf]
          %v1098 = vld [vmem:[%s1079 + $0x48] sm:$0xf]
          %v1099 = vld [vmem:[%s1079 + $0x4c] sm:$0xf]
          %v1100 = vld [vmem:[%s1079 + $0x50] sm:$0xf]
          %v1101 = vld [vmem:[%s1079 + $0x54] sm:$0xf]
          %v1102 = vld [vmem:[%s1079 + $0x58] sm:$0xf]
          %v1103 = vld [vmem:[%s1079 + $0x5c] sm:$0xf]
          %v1104 = vld [vmem:[%s1079 + $0x60] sm:$0xf]
          %v1105 = vld [vmem:[%s1079 + $0x64] sm:$0xf]
          %v1106 = vld [vmem:[%s1079 + $0x68] sm:$0xf]
          %v1107 = vld [vmem:[%s1079 + $0x6c] sm:$0xf]
          %v1108 = vld [vmem:[%s1079 + $0x70] sm:$0xf]
          %v1109 = vld [vmem:[%s1079 + $0x74] sm:$0xf]
          %v1110 = vld [vmem:[%s1079 + $0x78] sm:$0xf]
          %v1111 = vld [vmem:[%s1079 + $0x7c] sm:$0xf]
          %v1112 = vld [vmem:[%s2] sm:$0xf]
          %v1113 = vld [vmem:[%s2 + $0x4] sm:$0xf]
          %v1114 = vld [vmem:[%s2 + $0x8] sm:$0xf]
          %v1115 = vld [vmem:[%s2 + $0xc] sm:$0xf]
          %v1116 = vld [vmem:[%s2 + $0x10] sm:$0xf]
          %v1117 = vld [vmem:[%s2 + $0x14] sm:$0xf]
          %v1118 = vld [vmem:[%s2 + $0x18] sm:$0xf]
          %v1119 = vld [vmem:[%s2 + $0x1c] sm:$0xf]
          %v1120 = vld [vmem:[%s2 + $0x20] sm:$0xf]
          %v1121 = vld [vmem:[%s2 + $0x24] sm:$0xf]
          %v1122 = vld [vmem:[%s2 + $0x28] sm:$0xf]
          %v1123 = vld [vmem:[%s2 + $0x2c] sm:$0xf]
          %v1124 = vld [vmem:[%s2 + $0x30] sm:$0xf]
          %v1125 = vld [vmem:[%s2 + $0x34] sm:$0xf]
          %v1126 = vld [vmem:[%s2 + $0x38] sm:$0xf]
          %v1127 = vld [vmem:[%s2 + $0x3c] sm:$0xf]
          %v1128 = vld [vmem:[%s3] sm:$0xf]
          %v1129 = vld [vmem:[%s3 + $0x4] sm:$0xf]
          %v1130 = vld [vmem:[%s3 + $0x8] sm:$0xf]
          %v1131 = vld [vmem:[%s3 + $0xc] sm:$0xf]
          %v1132 = vld [vmem:[%s3 + $0x10] sm:$0xf]
          %v1133 = vld [vmem:[%s3 + $0x14] sm:$0xf]
          %v1134 = vld [vmem:[%s3 + $0x18] sm:$0xf]
          %v1135 = vld [vmem:[%s3 + $0x1c] sm:$0xf]
          %v1136 = vld [vmem:[%s3 + $0x20] sm:$0xf]
          %v1137 = vld [vmem:[%s3 + $0x24] sm:$0xf]
          %v1138 = vld [vmem:[%s3 + $0x28] sm:$0xf]
          %v1139 = vld [vmem:[%s3 + $0x2c] sm:$0xf]
          %v1140 = vld [vmem:[%s3 + $0x30] sm:$0xf]
          %v1141 = vld [vmem:[%s3 + $0x34] sm:$0xf]
          %v1142 = vld [vmem:[%s3 + $0x38] sm:$0xf]
          %v1143 = vld [vmem:[%s3 + $0x3c] sm:$0xf]
          %v1176 = vunpack.c.l.b16 %v1080
          %v1177 = vunpack.c.l.b16 %v1081
          %v1178 = vunpack.c.l.b16 %v1082
          %v1179 = vunpack.c.l.b16 %v1083
          %v1180 = vunpack.c.l.b16 %v1084
          %v1181 = vunpack.c.l.b16 %v1085
          %v1182 = vunpack.c.l.b16 %v1086
          %v1183 = vunpack.c.l.b16 %v1087
          %v1184 = vunpack.c.l.b16 %v1088
          %v1185 = vunpack.c.l.b16 %v1089
          %v1186 = vunpack.c.l.b16 %v1090
          %v1187 = vunpack.c.l.b16 %v1091
          %v1188 = vunpack.c.l.b16 %v1092
          %v1189 = vunpack.c.l.b16 %v1093
          %v1190 = vunpack.c.l.b16 %v1094
          %v1191 = vunpack.c.l.b16 %v1095
          %v1192 = vunpack.c.l.b16 %v1096
          %v1193 = vunpack.c.l.b16 %v1097
          %v1194 = vunpack.c.l.b16 %v1098
          %v1195 = vunpack.c.l.b16 %v1099
          %v1196 = vunpack.c.l.b16 %v1100
          %v1197 = vunpack.c.l.b16 %v1101
          %v1198 = vunpack.c.l.b16 %v1102
          %v1199 = vunpack.c.l.b16 %v1103
          %v1200 = vunpack.c.l.b16 %v1104
          %v1201 = vunpack.c.l.b16 %v1105
          %v1202 = vunpack.c.l.b16 %v1106
          %v1203 = vunpack.c.l.b16 %v1107
          %v1204 = vunpack.c.l.b16 %v1108
          %v1205 = vunpack.c.l.b16 %v1109
          %v1206 = vunpack.c.l.b16 %v1110
          %v1207 = vunpack.c.l.b16 %v1111
          %v1208 = vpack.c.b16 %v1177, %v1176
          %v1209 = vpack.c.b16 %v1179, %v1178
          %v1210 = vpack.c.b16 %v1181, %v1180
          %v1211 = vpack.c.b16 %v1183, %v1182
          %v1212 = vpack.c.b16 %v1185, %v1184
          %v1213 = vpack.c.b16 %v1187, %v1186
          %v1214 = vpack.c.b16 %v1189, %v1188
          %v1215 = vpack.c.b16 %v1191, %v1190
          %v1216 = vpack.c.b16 %v1193, %v1192
          %v1217 = vpack.c.b16 %v1195, %v1194
          %v1218 = vpack.c.b16 %v1197, %v1196
          %v1219 = vpack.c.b16 %v1199, %v1198
          %v1220 = vpack.c.b16 %v1201, %v1200
          %v1221 = vpack.c.b16 %v1203, %v1202
          %v1222 = vpack.c.b16 %v1205, %v1204
          %v1223 = vpack.c.b16 %v1207, %v1206
          %v1256 = vunpack.c.l.b16 %v1128
          %v1257 = vunpack.c.l.b16 %v1129
          %v1258 = vunpack.c.l.b16 %v1130
          %v1259 = vunpack.c.l.b16 %v1131
          %v1260 = vunpack.c.l.b16 %v1132
          %v1261 = vunpack.c.l.b16 %v1133
          %v1262 = vunpack.c.l.b16 %v1134
          %v1263 = vunpack.c.l.b16 %v1135
          %v1264 = vunpack.c.l.b16 %v1136
          %v1265 = vunpack.c.l.b16 %v1137
          %v1266 = vunpack.c.l.b16 %v1138
          %v1267 = vunpack.c.l.b16 %v1139
          %v1268 = vunpack.c.l.b16 %v1140
          %v1269 = vunpack.c.l.b16 %v1141
          %v1270 = vunpack.c.l.b16 %v1142
          %v1271 = vunpack.c.l.b16 %v1143
          %v1272 = vpack.c.b16 %v1257, %v1256
          %v1273 = vpack.c.b16 %v1259, %v1258
          %v1274 = vpack.c.b16 %v1261, %v1260
          %v1275 = vpack.c.b16 %v1263, %v1262
          %v1276 = vpack.c.b16 %v1265, %v1264
          %v1277 = vpack.c.b16 %v1267, %v1266
          %v1278 = vpack.c.b16 %v1269, %v1268
          %v1279 = vpack.c.b16 %v1271, %v1270
          %1288 = vmatprep.subr.bf16.mxu0 0
          %1289 = vmatpush1.bf16.msra.mxu0 %v1272
          %1290 = vmatprep.subr.bf16.mxu0 0
          %1291 = vmatpush1.bf16.msra.mxu0 %v1273
          %1292 = vmatprep.subr.bf16.mxu0 0
          %1293 = vmatpush1.bf16.msra.mxu0 %v1274
          %1294 = vmatprep.subr.bf16.mxu0 0
          %1295 = vmatpush1.bf16.msra.mxu0 %v1275
          %1296 = vmatprep.subr.bf16.mxu0 0
          %1297 = vmatpush1.bf16.msra.mxu0 %v1276
          %1298 = vmatprep.subr.bf16.mxu0 0
          %1299 = vmatpush1.bf16.msra.mxu0 %v1277
          %1300 = vmatprep.subr.bf16.mxu0 0
          %1301 = vmatpush1.bf16.msra.mxu0 %v1278
          %1302 = vmatprep.subr.bf16.mxu0 0
          %1303 = vmatpush1.bf16.msra.mxu0 %v1279
          %1304 = vmatprep.subr.bf16.mxu0 0
          %1305 = vmatpush1.bf16.msra.mxu0 0
          %1306 = vmatprep.subr.bf16.mxu0 0
          %1307 = vmatpush1.bf16.msra.mxu0 0
          %1308 = vmatprep.subr.bf16.mxu0 0
          %1309 = vmatpush1.bf16.msra.mxu0 0
          %1310 = vmatprep.subr.bf16.mxu0 0
          %1311 = vmatpush1.bf16.msra.mxu0 0
          %1312 = vmatprep.subr.bf16.mxu0 0
          %1313 = vmatpush1.bf16.msra.mxu0 0
          %1314 = vmatprep.subr.bf16.mxu0 0
          %1315 = vmatpush1.bf16.msra.mxu0 0
          %1316 = vmatprep.subr.bf16.mxu0 0
          %1317 = vmatpush1.bf16.msra.mxu0 0
          %1318 = vmatprep.subr.bf16.mxu0 0
          %1319 = vmatpush1.bf16.msra.mxu0 0
          %1320 = vmatprep.mubr.bf16.mxu0 0
          %1321 = vmatmul.mubr.bf16.gmra.mrb[0].mxu0 %v1208
          %v1322 = vpop.f32.mrb[0].mxu0
          %v1323 = vadd.f32 0.0, %v1322
          %v1324 = vpop.f32.mrb[0].mxu0
          %v1325 = vpop.f32.mrb[0].mxu0
          %v1326 = vadd.f32 0.0, %v1325
          %v1327 = vpop.f32.mrb[0].mxu0
          %1328 = vmatprep.mubr.bf16.mxu0 0
          %1329 = vmatmul.mubr.bf16.gmra.mrb[0].mxu0 %v1209
          %v1330 = vpop.f32.mrb[0].mxu0
          %v1331 = vadd.f32 0.0, %v1330
          %v1332 = vpop.f32.mrb[0].mxu0
          %v1333 = vpop.f32.mrb[0].mxu0
          %v1334 = vadd.f32 0.0, %v1333
          %v1335 = vpop.f32.mrb[0].mxu0
          %1336 = vmatprep.mubr.bf16.mxu0 0
          %1337 = vmatmul.mubr.bf16.gmra.mrb[0].mxu0 %v1210
          %v1338 = vpop.f32.mrb[0].mxu0
          %v1339 = vadd.f32 0.0, %v1338
          %v1340 = vpop.f32.mrb[0].mxu0
          %v1341 = vpop.f32.mrb[0].mxu0
          %v1342 = vadd.f32 0.0, %v1341
          %v1343 = vpop.f32.mrb[0].mxu0
          %1344 = vmatprep.mubr.bf16.mxu0 0
          %1345 = vmatmul.mubr.bf16.gmra.mrb[0].mxu0 %v1211
          %v1346 = vpop.f32.mrb[0].mxu0
          %v1347 = vadd.f32 0.0, %v1346
          %v1348 = vpop.f32.mrb[0].mxu0
          %v1349 = vpop.f32.mrb[0].mxu0
          %v1350 = vadd.f32 0.0, %v1349
          %v1351 = vpop.f32.mrb[0].mxu0
          %1352 = vmatprep.mubr.bf16.mxu0 0
          %1353 = vmatmul.mubr.bf16.gmra.mrb[0].mxu0 %v1212
          %v1354 = vpop.f32.mrb[0].mxu0
          %v1355 = vadd.f32 0.0, %v1354
          %v1356 = vpop.f32.mrb[0].mxu0
          %v1357 = vpop.f32.mrb[0].mxu0
          %v1358 = vadd.f32 0.0, %v1357
          %v1359 = vpop.f32.mrb[0].mxu0
          %1360 = vmatprep.mubr.bf16.mxu0 0
          %1361 = vmatmul.mubr.bf16.gmra.mrb[0].mxu0 %v1213
          %v1362 = vpop.f32.mrb[0].mxu0
          %v1363 = vadd.f32 0.0, %v1362
          %v1364 = vpop.f32.mrb[0].mxu0
          %v1365 = vpop.f32.mrb[0].mxu0
          %v1366 = vadd.f32 0.0, %v1365
          %v1367 = vpop.f32.mrb[0].mxu0
          %1368 = vmatprep.mubr.bf16.mxu0 0
          %1369 = vmatmul.mubr.bf16.gmra.mrb[0].mxu0 %v1214
          %v1370 = vpop.f32.mrb[0].mxu0
          %v1371 = vadd.f32 0.0, %v1370
          %v1372 = vpop.f32.mrb[0].mxu0
          %v1373 = vpop.f32.mrb[0].mxu0
          %v1374 = vadd.f32 0.0, %v1373
          %v1375 = vpop.f32.mrb[0].mxu0
          %1376 = vmatprep.mubr.bf16.mxu0 0
          %1377 = vmatmul.mubr.bf16.gmra.mrb[0].mxu0 %v1215
          %v1378 = vpop.f32.mrb[0].mxu0
          %v1379 = vadd.f32 0.0, %v1378
          %v1380 = vpop.f32.mrb[0].mxu0
          %v1381 = vpop.f32.mrb[0].mxu0
          %v1382 = vadd.f32 0.0, %v1381
          %v1383 = vpop.f32.mrb[0].mxu0
          %1384 = vmatprep.mubr.bf16.mxu0 0
          %1385 = vmatmul.mubr.bf16.gmra.mrb[0].mxu0 %v1216
          %v1386 = vpop.f32.mrb[0].mxu0
          %v1387 = vadd.f32 0.0, %v1386
          %v1388 = vpop.f32.mrb[0].mxu0
          %v1389 = vpop.f32.mrb[0].mxu0
          %v1390 = vadd.f32 0.0, %v1389
          %v1391 = vpop.f32.mrb[0].mxu0
          %1392 = vmatprep.mubr.bf16.mxu0 0
          %1393 = vmatmul.mubr.bf16.gmra.mrb[0].mxu0 %v1217
          %v1394 = vpop.f32.mrb[0].mxu0
          %v1395 = vadd.f32 0.0, %v1394
          %v1396 = vpop.f32.mrb[0].mxu0
          %v1397 = vpop.f32.mrb[0].mxu0
          %v1398 = vadd.f32 0.0, %v1397
          %v1399 = vpop.f32.mrb[0].mxu0
          %1400 = vmatprep.mubr.bf16.mxu0 0
          %1401 = vmatmul.mubr.bf16.gmra.mrb[0].mxu0 %v1218
          %v1402 = vpop.f32.mrb[0].mxu0
          %v1403 = vadd.f32 0.0, %v1402
          %v1404 = vpop.f32.mrb[0].mxu0
          %v1405 = vpop.f32.mrb[0].mxu0
          %v1406 = vadd.f32 0.0, %v1405
          %v1407 = vpop.f32.mrb[0].mxu0
          %1408 = vmatprep.mubr.bf16.mxu0 0
          %1409 = vmatmul.mubr.bf16.gmra.mrb[0].mxu0 %v1219
          %v1410 = vpop.f32.mrb[0].mxu0
          %v1411 = vadd.f32 0.0, %v1410
          %v1412 = vpop.f32.mrb[0].mxu0
          %v1413 = vpop.f32.mrb[0].mxu0
          %v1414 = vadd.f32 0.0, %v1413
          %v1415 = vpop.f32.mrb[0].mxu0
          %1416 = vmatprep.mubr.bf16.mxu0 0
          %1417 = vmatmul.mubr.bf16.gmra.mrb[0].mxu0 %v1220
          %v1418 = vpop.f32.mrb[0].mxu0
          %v1419 = vadd.f32 0.0, %v1418
          %v1420 = vpop.f32.mrb[0].mxu0
          %v1421 = vpop.f32.mrb[0].mxu0
          %v1422 = vadd.f32 0.0, %v1421
          %v1423 = vpop.f32.mrb[0].mxu0
          %1424 = vmatprep.mubr.bf16.mxu0 0
          %1425 = vmatmul.mubr.bf16.gmra.mrb[0].mxu0 %v1221
          %v1426 = vpop.f32.mrb[0].mxu0
          %v1427 = vadd.f32 0.0, %v1426
          %v1428 = vpop.f32.mrb[0].mxu0
          %v1429 = vpop.f32.mrb[0].mxu0
          %v1430 = vadd.f32 0.0, %v1429
          %v1431 = vpop.f32.mrb[0].mxu0
          %1432 = vmatprep.mubr.bf16.mxu0 0
          %1433 = vmatmul.mubr.bf16.gmra.mrb[0].mxu0 %v1222
          %v1434 = vpop.f32.mrb[0].mxu0
          %v1435 = vadd.f32 0.0, %v1434
          %v1436 = vpop.f32.mrb[0].mxu0
          %v1437 = vpop.f32.mrb[0].mxu0
          %v1438 = vadd.f32 0.0, %v1437
          %v1439 = vpop.f32.mrb[0].mxu0
          %1440 = vmatprep.mubr.bf16.mxu0 0
          %1441 = vmatmul.mubr.bf16.gmra.mrb[0].mxu0 %v1223
          %v1442 = vpop.f32.mrb[0].mxu0
          %v1443 = vadd.f32 0.0, %v1442
          %v1444 = vpop.f32.mrb[0].mxu0
          %v1445 = vpop.f32.mrb[0].mxu0
          %v1446 = vadd.f32 0.0, %v1445
          %v1447 = vpop.f32.mrb[0].mxu0
          %1448 = vdwg.mxu0
          %v1465 = vunpack.c.l.b16 %v1112
          %v1466 = vunpack.c.l.b16 %v1113
          %v1467 = vunpack.c.l.b16 %v1114
          %v1468 = vunpack.c.l.b16 %v1115
          %v1469 = vunpack.c.l.b16 %v1116
          %v1470 = vunpack.c.l.b16 %v1117
          %v1471 = vunpack.c.l.b16 %v1118
          %v1472 = vunpack.c.l.b16 %v1119
          %v1473 = vunpack.c.l.b16 %v1120
          %v1474 = vunpack.c.l.b16 %v1121
          %v1475 = vunpack.c.l.b16 %v1122
          %v1476 = vunpack.c.l.b16 %v1123
          %v1477 = vunpack.c.l.b16 %v1124
          %v1478 = vunpack.c.l.b16 %v1125
          %v1479 = vunpack.c.l.b16 %v1126
          %v1480 = vunpack.c.l.b16 %v1127
          %v1481 = vpack.c.b16 %v1466, %v1465
          %v1482 = vpack.c.b16 %v1468, %v1467
          %v1483 = vpack.c.b16 %v1470, %v1469
          %v1484 = vpack.c.b16 %v1472, %v1471
          %v1485 = vpack.c.b16 %v1474, %v1473
          %v1486 = vpack.c.b16 %v1476, %v1475
          %v1487 = vpack.c.b16 %v1478, %v1477
          %v1488 = vpack.c.b16 %v1480, %v1479
          %1497 = vmatprep.subr.bf16.mxu0 0
          %1498 = vmatpush1.bf16.msra.mxu0 %v1481
          %1499 = vmatprep.subr.bf16.mxu0 0
          %1500 = vmatpush1.bf16.msra.mxu0 %v1482
          %1501 = vmatprep.subr.bf16.mxu0 0
          %1502 = vmatpush1.bf16.msra.mxu0 %v1483
          %1503 = vmatprep.subr.bf16.mxu0 0
          %1504 = vmatpush1.bf16.msra.mxu0 %v1484
          %1505 = vmatprep.subr.bf16.mxu0 0
          %1506 = vmatpush1.bf16.msra.mxu0 %v1485
          %1507 = vmatprep.subr.bf16.mxu0 0
          %1508 = vmatpush1.bf16.msra.mxu0 %v1486
          %1509 = vmatprep.subr.bf16.mxu0 0
          %1510 = vmatpush1.bf16.msra.mxu0 %v1487
          %1511 = vmatprep.subr.bf16.mxu0 0
          %1512 = vmatpush1.bf16.msra.mxu0 %v1488
          %1513 = vmatprep.subr.bf16.mxu0 0
          %1514 = vmatpush1.bf16.msra.mxu0 0
          %1515 = vmatprep.subr.bf16.mxu0 0
          %1516 = vmatpush1.bf16.msra.mxu0 0
          %1517 = vmatprep.subr.bf16.mxu0 0
          %1518 = vmatpush1.bf16.msra.mxu0 0
          %1519 = vmatprep.subr.bf16.mxu0 0
          %1520 = vmatpush1.bf16.msra.mxu0 0
          %1521 = vmatprep.subr.bf16.mxu0 0
          %1522 = vmatpush1.bf16.msra.mxu0 0
          %1523 = vmatprep.subr.bf16.mxu0 0
          %1524 = vmatpush1.bf16.msra.mxu0 0
          %1525 = vmatprep.subr.bf16.mxu0 0
          %1526 = vmatpush1.bf16.msra.mxu0 0
          %1527 = vmatprep.subr.bf16.mxu0 0
          %1528 = vmatpush1.bf16.msra.mxu0 0
          %1529 = vmatprep.mubr.bf16.mxu0 0
          %1530 = vmatmul.mubr.bf16.gmra.mrb[0].mxu0 %v1059
          %v1531 = vpop.f32.mrb[0].mxu0
          %v1532 = vadd.f32 %v1323, %v1531
          %v1533 = vpop.f32.mrb[0].mxu0
          %v1534 = vpop.f32.mrb[0].mxu0
          %v1535 = vadd.f32 %v1326, %v1534
          %v1536 = vpop.f32.mrb[0].mxu0
          %1537 = vmatprep.mubr.bf16.mxu0 0
          %1538 = vmatmul.mubr.bf16.gmra.mrb[0].mxu0 %v1060
          %v1539 = vpop.f32.mrb[0].mxu0
          %v1540 = vadd.f32 %v1331, %v1539
          %v1541 = vpop.f32.mrb[0].mxu0
          %v1542 = vpop.f32.mrb[0].mxu0
          %v1543 = vadd.f32 %v1334, %v1542
          %v1544 = vpop.f32.mrb[0].mxu0
          %1545 = vmatprep.mubr.bf16.mxu0 0
          %1546 = vmatmul.mubr.bf16.gmra.mrb[0].mxu0 %v1061
          %v1547 = vpop.f32.mrb[0].mxu0
          %v1548 = vadd.f32 %v1339, %v1547
          %v1549 = vpop.f32.mrb[0].mxu0
          %v1550 = vpop.f32.mrb[0].mxu0
          %v1551 = vadd.f32 %v1342, %v1550
          %v1552 = vpop.f32.mrb[0].mxu0
          %1553 = vmatprep.mubr.bf16.mxu0 0
          %1554 = vmatmul.mubr.bf16.gmra.mrb[0].mxu0 %v1062
          %v1555 = vpop.f32.mrb[0].mxu0
          %v1556 = vadd.f32 %v1347, %v1555
          %v1557 = vpop.f32.mrb[0].mxu0
          %v1558 = vpop.f32.mrb[0].mxu0
          %v1559 = vadd.f32 %v1350, %v1558
          %v1560 = vpop.f32.mrb[0].mxu0
          %1561 = vmatprep.mubr.bf16.mxu0 0
          %1562 = vmatmul.mubr.bf16.gmra.mrb[0].mxu0 %v1063
          %v1563 = vpop.f32.mrb[0].mxu0
          %v1564 = vadd.f32 %v1355, %v1563
          %v1565 = vpop.f32.mrb[0].mxu0
          %v1566 = vpop.f32.mrb[0].mxu0
          %v1567 = vadd.f32 %v1358, %v1566
          %v1568 = vpop.f32.mrb[0].mxu0
          %1569 = vmatprep.mubr.bf16.mxu0 0
          %1570 = vmatmul.mubr.bf16.gmra.mrb[0].mxu0 %v1064
          %v1571 = vpop.f32.mrb[0].mxu0
          %v1572 = vadd.f32 %v1363, %v1571
          %v1573 = vpop.f32.mrb[0].mxu0
          %v1574 = vpop.f32.mrb[0].mxu0
          %v1575 = vadd.f32 %v1366, %v1574
          %v1576 = vpop.f32.mrb[0].mxu0
          %1577 = vmatprep.mubr.bf16.mxu0 0
          %1578 = vmatmul.mubr.bf16.gmra.mrb[0].mxu0 %v1065
          %v1579 = vpop.f32.mrb[0].mxu0
          %v1580 = vadd.f32 %v1371, %v1579
          %v1581 = vpop.f32.mrb[0].mxu0
          %v1582 = vpop.f32.mrb[0].mxu0
          %v1583 = vadd.f32 %v1374, %v1582
          %v1584 = vpop.f32.mrb[0].mxu0
          %1585 = vmatprep.mubr.bf16.mxu0 0
          %1586 = vmatmul.mubr.bf16.gmra.mrb[0].mxu0 %v1066
          %v1587 = vpop.f32.mrb[0].mxu0
          %v1588 = vadd.f32 %v1379, %v1587
          %v1589 = vpop.f32.mrb[0].mxu0
          %v1590 = vpop.f32.mrb[0].mxu0
          %v1591 = vadd.f32 %v1382, %v1590
          %v1592 = vpop.f32.mrb[0].mxu0
          %1593 = vmatprep.mubr.bf16.mxu0 0
          %1594 = vmatmul.mubr.bf16.gmra.mrb[0].mxu0 %v1067
          %v1595 = vpop.f32.mrb[0].mxu0
          %v1596 = vadd.f32 %v1387, %v1595
          %v1597 = vpop.f32.mrb[0].mxu0
          %v1598 = vpop.f32.mrb[0].mxu0
          %v1599 = vadd.f32 %v1390, %v1598
          %v1600 = vpop.f32.mrb[0].mxu0
          %1601 = vmatprep.mubr.bf16.mxu0 0
          %1602 = vmatmul.mubr.bf16.gmra.mrb[0].mxu0 %v1068
          %v1603 = vpop.f32.mrb[0].mxu0
          %v1604 = vadd.f32 %v1395, %v1603
          %v1605 = vpop.f32.mrb[0].mxu0
          %v1606 = vpop.f32.mrb[0].mxu0
          %v1607 = vadd.f32 %v1398, %v1606
          %v1608 = vpop.f32.mrb[0].mxu0
          %1609 = vmatprep.mubr.bf16.mxu0 0
          %1610 = vmatmul.mubr.bf16.gmra.mrb[0].mxu0 %v1069
          %v1611 = vpop.f32.mrb[0].mxu0
          %v1612 = vadd.f32 %v1403, %v1611
          %v1613 = vpop.f32.mrb[0].mxu0
          %v1614 = vpop.f32.mrb[0].mxu0
          %v1615 = vadd.f32 %v1406, %v1614
          %v1616 = vpop.f32.mrb[0].mxu0
          %1617 = vmatprep.mubr.bf16.mxu0 0
          %1618 = vmatmul.mubr.bf16.gmra.mrb[0].mxu0 %v1070
          %v1619 = vpop.f32.mrb[0].mxu0
          %v1620 = vadd.f32 %v1411, %v1619
          %v1621 = vpop.f32.mrb[0].mxu0
          %v1622 = vpop.f32.mrb[0].mxu0
          %v1623 = vadd.f32 %v1414, %v1622
          %v1624 = vpop.f32.mrb[0].mxu0
          %1625 = vmatprep.mubr.bf16.mxu0 0
          %1626 = vmatmul.mubr.bf16.gmra.mrb[0].mxu0 %v1071
          %v1627 = vpop.f32.mrb[0].mxu0
          %v1628 = vadd.f32 %v1419, %v1627
          %v1629 = vpop.f32.mrb[0].mxu0
          %v1630 = vpop.f32.mrb[0].mxu0
          %v1631 = vadd.f32 %v1422, %v1630
          %v1632 = vpop.f32.mrb[0].mxu0
          %1633 = vmatprep.mubr.bf16.mxu0 0
          %1634 = vmatmul.mubr.bf16.gmra.mrb[0].mxu0 %v1072
          %v1635 = vpop.f32.mrb[0].mxu0
          %v1636 = vadd.f32 %v1427, %v1635
          %v1637 = vpop.f32.mrb[0].mxu0
          %v1638 = vpop.f32.mrb[0].mxu0
          %v1639 = vadd.f32 %v1430, %v1638
          %v1640 = vpop.f32.mrb[0].mxu0
          %1641 = vmatprep.mubr.bf16.mxu0 0
          %1642 = vmatmul.mubr.bf16.gmra.mrb[0].mxu0 %v1073
          %v1643 = vpop.f32.mrb[0].mxu0
          %v1644 = vadd.f32 %v1435, %v1643
          %v1645 = vpop.f32.mrb[0].mxu0
          %v1646 = vpop.f32.mrb[0].mxu0
          %v1647 = vadd.f32 %v1438, %v1646
          %v1648 = vpop.f32.mrb[0].mxu0
          %1649 = vmatprep.mubr.bf16.mxu0 0
          %1650 = vmatmul.mubr.bf16.gmra.mrb[0].mxu0 %v1074
          %v1651 = vpop.f32.mrb[0].mxu0
          %v1652 = vadd.f32 %v1443, %v1651
          %v1653 = vpop.f32.mrb[0].mxu0
          %v1654 = vpop.f32.mrb[0].mxu0
          %v1655 = vadd.f32 %v1446, %v1654
          %v1656 = vpop.f32.mrb[0].mxu0
          %1657 = vdwg.mxu0
          %v1658 = vld [vmem:[%s4] sm:$0x1]
          %v1660 = vlaneseq
          %v1661 = vshrl.u32 %v1660, 7
          %v1662 = vsub.s32 0, %v1661
          %v1663 = vrot.slane %v1658, %v1662
          %v1665 = vadd.f32 %v1532, %v1663
          %v1666 = vadd.f32 %v1535, %v1663
          %v1667 = vadd.f32 %v1540, %v1663
          %v1668 = vadd.f32 %v1543, %v1663
          %v1669 = vadd.f32 %v1548, %v1663
          %v1670 = vadd.f32 %v1551, %v1663
          %v1671 = vadd.f32 %v1556, %v1663
          %v1672 = vadd.f32 %v1559, %v1663
          %v1673 = vadd.f32 %v1564, %v1663
          %v1674 = vadd.f32 %v1567, %v1663
          %v1675 = vadd.f32 %v1572, %v1663
          %v1676 = vadd.f32 %v1575, %v1663
          %v1677 = vadd.f32 %v1580, %v1663
          %v1678 = vadd.f32 %v1583, %v1663
          %v1679 = vadd.f32 %v1588, %v1663
          %v1680 = vadd.f32 %v1591, %v1663
          %v1681 = vadd.f32 %v1596, %v1663
          %v1682 = vadd.f32 %v1599, %v1663
          %v1683 = vadd.f32 %v1604, %v1663
          %v1684 = vadd.f32 %v1607, %v1663
          %v1685 = vadd.f32 %v1612, %v1663
          %v1686 = vadd.f32 %v1615, %v1663
          %v1687 = vadd.f32 %v1620, %v1663
          %v1688 = vadd.f32 %v1623, %v1663
          %v1689 = vadd.f32 %v1628, %v1663
          %v1690 = vadd.f32 %v1631, %v1663
          %v1691 = vadd.f32 %v1636, %v1663
          %v1692 = vadd.f32 %v1639, %v1663
          %v1693 = vadd.f32 %v1644, %v1663
          %v1694 = vadd.f32 %v1647, %v1663
          %v1695 = vadd.f32 %v1652, %v1663
          %v1696 = vadd.f32 %v1655, %v1663
          %v1697 = vlaneseq
          %v1698 = vshrl.u32 %v1697, 7
          %v1699 = vadd.s32 %v1698, 8
          %v1700 = vadd.s32 %v1698, 16
          %v1701 = vadd.s32 %v1698, 24
          %v1702 = vadd.s32 %v1698, 32
          %v1703 = vadd.s32 %v1698, 40
          %v1704 = vadd.s32 %v1698, 48
          %v1705 = vadd.s32 %v1698, 56
          %v1706 = vadd.s32 %v1698, 64
          %v1707 = vadd.s32 %v1698, 72
          %v1708 = vadd.s32 %v1698, 80
          %v1709 = vadd.s32 %v1698, 88
          %v1710 = vadd.s32 %v1698, 96
          %v1711 = vadd.s32 %v1698, 104
          %v1712 = vadd.s32 %v1698, 112
          %v1713 = vadd.s32 %v1698, 120
          %v1714 = vadd.s32 %v1698, 128
          %v1715 = vadd.s32 %v1698, 136
          %v1716 = vadd.s32 %v1698, 144
          %v1717 = vadd.s32 %v1698, 152
          %v1718 = vadd.s32 %v1698, 160
          %v1719 = vadd.s32 %v1698, 168
          %v1720 = vadd.s32 %v1698, 176
          %v1721 = vadd.s32 %v1698, 184
          %v1722 = vadd.s32 %v1698, 192
          %v1723 = vadd.s32 %v1698, 200
          %v1724 = vadd.s32 %v1698, 208
          %v1725 = vadd.s32 %v1698, 216
          %v1726 = vadd.s32 %v1698, 224
          %v1727 = vadd.s32 %v1698, 232
          %v1728 = vadd.s32 %v1698, 240
          %v1729 = vadd.s32 %v1698, 248
          %v1730 = vstv %s1075
          %v1731 = vadd.s32 %v1698, %v1730
          %v1732 = vadd.s32 %v1699, %v1730
          %v1733 = vadd.s32 %v1700, %v1730
          %v1734 = vadd.s32 %v1701, %v1730
          %v1735 = vadd.s32 %v1702, %v1730
          %v1736 = vadd.s32 %v1703, %v1730
          %v1737 = vadd.s32 %v1704, %v1730
          %v1738 = vadd.s32 %v1705, %v1730
          %v1739 = vadd.s32 %v1706, %v1730
          %v1740 = vadd.s32 %v1707, %v1730
          %v1741 = vadd.s32 %v1708, %v1730
          %v1742 = vadd.s32 %v1709, %v1730
          %v1743 = vadd.s32 %v1710, %v1730
          %v1744 = vadd.s32 %v1711, %v1730
          %v1745 = vadd.s32 %v1712, %v1730
          %v1746 = vadd.s32 %v1713, %v1730
          %v1747 = vadd.s32 %v1714, %v1730
          %v1748 = vadd.s32 %v1715, %v1730
          %v1749 = vadd.s32 %v1716, %v1730
          %v1750 = vadd.s32 %v1717, %v1730
          %v1751 = vadd.s32 %v1718, %v1730
          %v1752 = vadd.s32 %v1719, %v1730
          %v1753 = vadd.s32 %v1720, %v1730
          %v1754 = vadd.s32 %v1721, %v1730
          %v1755 = vadd.s32 %v1722, %v1730
          %v1756 = vadd.s32 %v1723, %v1730
          %v1757 = vadd.s32 %v1724, %v1730
          %v1758 = vadd.s32 %v1725, %v1730
          %v1759 = vadd.s32 %v1726, %v1730
          %v1760 = vadd.s32 %v1727, %v1730
          %v1761 = vadd.s32 %v1728, %v1730
          %v1762 = vadd.s32 %v1729, %v1730
          %v1763 = vmax.f32 %v1665, 0.0
          %v1764 = vmax.f32 %v1666, 0.0
          %v1765 = vmax.f32 %v1667, 0.0
          %v1766 = vmax.f32 %v1668, 0.0
          %v1767 = vmax.f32 %v1669, 0.0
          %v1768 = vmax.f32 %v1670, 0.0
          %v1769 = vmax.f32 %v1671, 0.0
          %v1770 = vmax.f32 %v1672, 0.0
          %v1771 = vmax.f32 %v1673, 0.0
          %v1772 = vmax.f32 %v1674, 0.0
          %v1773 = vmax.f32 %v1675, 0.0
          %v1774 = vmax.f32 %v1676, 0.0
          %v1775 = vmax.f32 %v1677, 0.0
          %v1776 = vmax.f32 %v1678, 0.0
          %v1777 = vmax.f32 %v1679, 0.0
          %v1778 = vmax.f32 %v1680, 0.0
          %v1779 = vmax.f32 %v1681, 0.0
          %v1780 = vmax.f32 %v1682, 0.0
          %v1781 = vmax.f32 %v1683, 0.0
          %v1782 = vmax.f32 %v1684, 0.0
          %v1783 = vmax.f32 %v1685, 0.0
          %v1784 = vmax.f32 %v1686, 0.0
          %v1785 = vmax.f32 %v1687, 0.0
          %v1786 = vmax.f32 %v1688, 0.0
          %v1787 = vmax.f32 %v1689, 0.0
          %v1788 = vmax.f32 %v1690, 0.0
          %v1789 = vmax.f32 %v1691, 0.0
          %v1790 = vmax.f32 %v1692, 0.0
          %v1791 = vmax.f32 %v1693, 0.0
          %v1792 = vmax.f32 %v1694, 0.0
          %v1793 = vmax.f32 %v1695, 0.0
          %v1794 = vmax.f32 %v1696, 0.0
          %vm1795 = vcmp.lt.s32.totalorder %v1731, 512
          %vm1796 = vcmp.lt.s32.totalorder %v1732, 512
          %vm1797 = vcmp.lt.s32.totalorder %v1733, 512
          %vm1798 = vcmp.lt.s32.totalorder %v1734, 512
          %vm1799 = vcmp.lt.s32.totalorder %v1735, 512
          %vm1800 = vcmp.lt.s32.totalorder %v1736, 512
          %vm1801 = vcmp.lt.s32.totalorder %v1737, 512
          %vm1802 = vcmp.lt.s32.totalorder %v1738, 512
          %vm1803 = vcmp.lt.s32.totalorder %v1739, 512
          %vm1804 = vcmp.lt.s32.totalorder %v1740, 512
          %vm1805 = vcmp.lt.s32.totalorder %v1741, 512
          %vm1806 = vcmp.lt.s32.totalorder %v1742, 512
          %vm1807 = vcmp.lt.s32.totalorder %v1743, 512
          %vm1808 = vcmp.lt.s32.totalorder %v1744, 512
          %vm1809 = vcmp.lt.s32.totalorder %v1745, 512
          %vm1810 = vcmp.lt.s32.totalorder %v1746, 512
          %vm1811 = vcmp.lt.s32.totalorder %v1747, 512
          %vm1812 = vcmp.lt.s32.totalorder %v1748, 512
          %vm1813 = vcmp.lt.s32.totalorder %v1749, 512
          %vm1814 = vcmp.lt.s32.totalorder %v1750, 512
          %vm1815 = vcmp.lt.s32.totalorder %v1751, 512
          %vm1816 = vcmp.lt.s32.totalorder %v1752, 512
          %vm1817 = vcmp.lt.s32.totalorder %v1753, 512
          %vm1818 = vcmp.lt.s32.totalorder %v1754, 512
          %vm1819 = vcmp.lt.s32.totalorder %v1755, 512
          %vm1820 = vcmp.lt.s32.totalorder %v1756, 512
          %vm1821 = vcmp.lt.s32.totalorder %v1757, 512
          %vm1822 = vcmp.lt.s32.totalorder %v1758, 512
          %vm1823 = vcmp.lt.s32.totalorder %v1759, 512
          %vm1824 = vcmp.lt.s32.totalorder %v1760, 512
          %vm1825 = vcmp.lt.s32.totalorder %v1761, 512
          %vm1826 = vcmp.lt.s32.totalorder %v1762, 512
          %v1827 = vsel %vm1795, %v1763, 0.0
          %v1828 = vsel %vm1796, %v1764, 0.0
          %v1829 = vsel %vm1797, %v1765, 0.0
          %v1830 = vsel %vm1798, %v1766, 0.0
          %v1831 = vsel %vm1799, %v1767, 0.0
          %v1832 = vsel %vm1800, %v1768, 0.0
          %v1833 = vsel %vm1801, %v1769, 0.0
          %v1834 = vsel %vm1802, %v1770, 0.0
          %v1835 = vsel %vm1803, %v1771, 0.0
          %v1836 = vsel %vm1804, %v1772, 0.0
          %v1837 = vsel %vm1805, %v1773, 0.0
          %v1838 = vsel %vm1806, %v1774, 0.0
          %v1839 = vsel %vm1807, %v1775, 0.0
          %v1840 = vsel %vm1808, %v1776, 0.0
          %v1841 = vsel %vm1809, %v1777, 0.0
          %v1842 = vsel %vm1810, %v1778, 0.0
          %v1843 = vsel %vm1811, %v1779, 0.0
          %v1844 = vsel %vm1812, %v1780, 0.0
          %v1845 = vsel %vm1813, %v1781, 0.0
          %v1846 = vsel %vm1814, %v1782, 0.0
          %v1847 = vsel %vm1815, %v1783, 0.0
          %v1848 = vsel %vm1816, %v1784, 0.0
          %v1849 = vsel %vm1817, %v1785, 0.0
          %v1850 = vsel %vm1818, %v1786, 0.0
          %v1851 = vsel %vm1819, %v1787, 0.0
          %v1852 = vsel %vm1820, %v1788, 0.0
          %v1853 = vsel %vm1821, %v1789, 0.0
          %v1854 = vsel %vm1822, %v1790, 0.0
          %v1855 = vsel %vm1823, %v1791, 0.0
          %v1856 = vsel %vm1824, %v1792, 0.0
          %v1857 = vsel %vm1825, %v1793, 0.0
          %v1858 = vsel %vm1826, %v1794, 0.0
          %v1859 = vpack.c.bf16 %v1828, %v1827
          %v1860 = vpack.c.bf16 %v1830, %v1829
          %v1861 = vpack.c.bf16 %v1832, %v1831
          %v1862 = vpack.c.bf16 %v1834, %v1833
          %v1863 = vpack.c.bf16 %v1836, %v1835
          %v1864 = vpack.c.bf16 %v1838, %v1837
          %v1865 = vpack.c.bf16 %v1840, %v1839
          %v1866 = vpack.c.bf16 %v1842, %v1841
          %v1867 = vpack.c.bf16 %v1844, %v1843
          %v1868 = vpack.c.bf16 %v1846, %v1845
          %v1869 = vpack.c.bf16 %v1848, %v1847
          %v1870 = vpack.c.bf16 %v1850, %v1849
          %v1871 = vpack.c.bf16 %v1852, %v1851
          %v1872 = vpack.c.bf16 %v1854, %v1853
          %v1873 = vpack.c.bf16 %v1856, %v1855
          %v1874 = vpack.c.bf16 %v1858, %v1857
          %v1891 = vunpack.c.l.b16 %v1859
          %v1892 = vunpack.c.h.b16 %v1859
          %v1893 = vunpack.c.l.b16 %v1860
          %v1894 = vunpack.c.h.b16 %v1860
          %v1895 = vunpack.c.l.b16 %v1861
          %v1896 = vunpack.c.h.b16 %v1861
          %v1897 = vunpack.c.l.b16 %v1862
          %v1898 = vunpack.c.h.b16 %v1862
          %v1899 = vunpack.c.l.b16 %v1863
          %v1900 = vunpack.c.h.b16 %v1863
          %v1901 = vunpack.c.l.b16 %v1864
          %v1902 = vunpack.c.h.b16 %v1864
          %v1903 = vunpack.c.l.b16 %v1865
          %v1904 = vunpack.c.h.b16 %v1865
          %v1905 = vunpack.c.l.b16 %v1866
          %v1906 = vunpack.c.h.b16 %v1866
          %v1907 = vunpack.c.l.b16 %v1867
          %v1908 = vunpack.c.h.b16 %v1867
          %v1909 = vunpack.c.l.b16 %v1868
          %v1910 = vunpack.c.h.b16 %v1868
          %v1911 = vunpack.c.l.b16 %v1869
          %v1912 = vunpack.c.h.b16 %v1869
          %v1913 = vunpack.c.l.b16 %v1870
          %v1914 = vunpack.c.h.b16 %v1870
          %v1915 = vunpack.c.l.b16 %v1871
          %v1916 = vunpack.c.h.b16 %v1871
          %v1917 = vunpack.c.l.b16 %v1872
          %v1918 = vunpack.c.h.b16 %v1872
          %v1919 = vunpack.c.l.b16 %v1873
          %v1920 = vunpack.c.h.b16 %v1873
          %v1921 = vunpack.c.l.b16 %v1874
          %v1922 = vunpack.c.h.b16 %v1874
          %v1923 = vpack.c.b16 %v1891, %v1891
          %v1924 = vpack.c.b16 %v1892, %v1892
          %v1925 = vpack.c.b16 %v1893, %v1893
          %v1926 = vpack.c.b16 %v1894, %v1894
          %v1927 = vpack.c.b16 %v1895, %v1895
          %v1928 = vpack.c.b16 %v1896, %v1896
          %v1929 = vpack.c.b16 %v1897, %v1897
          %v1930 = vpack.c.b16 %v1898, %v1898
          %v1931 = vpack.c.b16 %v1899, %v1899
          %v1932 = vpack.c.b16 %v1900, %v1900
          %v1933 = vpack.c.b16 %v1901, %v1901
          %v1934 = vpack.c.b16 %v1902, %v1902
          %v1935 = vpack.c.b16 %v1903, %v1903
          %v1936 = vpack.c.b16 %v1904, %v1904
          %v1937 = vpack.c.b16 %v1905, %v1905
          %v1938 = vpack.c.b16 %v1906, %v1906
          %v1939 = vpack.c.b16 %v1907, %v1907
          %v1940 = vpack.c.b16 %v1908, %v1908
          %v1941 = vpack.c.b16 %v1909, %v1909
          %v1942 = vpack.c.b16 %v1910, %v1910
          %v1943 = vpack.c.b16 %v1911, %v1911
          %v1944 = vpack.c.b16 %v1912, %v1912
          %v1945 = vpack.c.b16 %v1913, %v1913
          %v1946 = vpack.c.b16 %v1914, %v1914
          %v1947 = vpack.c.b16 %v1915, %v1915
          %v1948 = vpack.c.b16 %v1916, %v1916
          %v1949 = vpack.c.b16 %v1917, %v1917
          %v1950 = vpack.c.b16 %v1918, %v1918
          %v1951 = vpack.c.b16 %v1919, %v1919
          %v1952 = vpack.c.b16 %v1920, %v1920
          %v1953 = vpack.c.b16 %v1921, %v1921
          %v1954 = vpack.c.b16 %v1922, %v1922
          %1987 = vst [vmem:[%s402] sm:$0xf] %v1923
          %1988 = vst [vmem:[%s402 + $0x4] sm:$0xf] %v1924
          %1989 = vst [vmem:[%s402 + $0x8] sm:$0xf] %v1925
          %1990 = vst [vmem:[%s402 + $0xc] sm:$0xf] %v1926
          %1991 = vst [vmem:[%s402 + $0x10] sm:$0xf] %v1927
          %1992 = vst [vmem:[%s402 + $0x14] sm:$0xf] %v1928
          %1993 = vst [vmem:[%s402 + $0x18] sm:$0xf] %v1929
          %1994 = vst [vmem:[%s402 + $0x1c] sm:$0xf] %v1930
          %1995 = vst [vmem:[%s402 + $0x20] sm:$0xf] %v1931
          %1996 = vst [vmem:[%s402 + $0x24] sm:$0xf] %v1932
          %1997 = vst [vmem:[%s402 + $0x28] sm:$0xf] %v1933
          %1998 = vst [vmem:[%s402 + $0x2c] sm:$0xf] %v1934
          %1999 = vst [vmem:[%s402 + $0x30] sm:$0xf] %v1935
          %2000 = vst [vmem:[%s402 + $0x34] sm:$0xf] %v1936
          %2001 = vst [vmem:[%s402 + $0x38] sm:$0xf] %v1937
          %2002 = vst [vmem:[%s402 + $0x3c] sm:$0xf] %v1938
          %2003 = vst [vmem:[%s402 + $0x40] sm:$0xf] %v1939
          %2004 = vst [vmem:[%s402 + $0x44] sm:$0xf] %v1940
          %2005 = vst [vmem:[%s402 + $0x48] sm:$0xf] %v1941
          %2006 = vst [vmem:[%s402 + $0x4c] sm:$0xf] %v1942
          %2007 = vst [vmem:[%s402 + $0x50] sm:$0xf] %v1943
          %2008 = vst [vmem:[%s402 + $0x54] sm:$0xf] %v1944
          %2009 = vst [vmem:[%s402 + $0x58] sm:$0xf] %v1945
          %2010 = vst [vmem:[%s402 + $0x5c] sm:$0xf] %v1946
          %2011 = vst [vmem:[%s402 + $0x60] sm:$0xf] %v1947
          %2012 = vst [vmem:[%s402 + $0x64] sm:$0xf] %v1948
          %2013 = vst [vmem:[%s402 + $0x68] sm:$0xf] %v1949
          %2014 = vst [vmem:[%s402 + $0x6c] sm:$0xf] %v1950
          %2015 = vst [vmem:[%s402 + $0x70] sm:$0xf] %v1951
          %2016 = vst [vmem:[%s402 + $0x74] sm:$0xf] %v1952
          %2017 = vst [vmem:[%s402 + $0x78] sm:$0xf] %v1953
          %2018 = vst [vmem:[%s402 + $0x7c] sm:$0xf] %v1954
        $region86: #{_lambda_.2} parent=73 // pred_fallthru
          _
        %s2019 = smul.u32 32, %s20
        %p2020 = scmp.lt.s32.totalorder %s2019, 63
        %s2021 = scalar_select %p2020, %s2019, 63
        %s2022 = smul.addr %s2021, 4
        %s2023 = scalar_lea.vmem %s5, %s2022
        // Predicated region
        $region87: #{_lambda_.2} parent=73 // pred_check
          %p2024 = pneg %p158
        $region88: #{_lambda_.2} parent=73 // pred_check_branch
          %2026 = sbr.rel (%p2024) target = $region90
        $region89: #{_lambda_.2} parent=73 // pred_region
          %s2027 = smul.u32 32, %s20
        $region90: #{_lambda_.2} parent=73 // pred_fallthru
          _
      $region74: #{_lambda_.2} parent=5 // pred_fallthru
        _
      %p2028 = scmp.le.s32.totalorder 2, %s11
      // Predicated region
      $region91: #{_lambda_.2} parent=5 // pred_check
        %p2029 = pneg %p2028
      $region92: #{_lambda_.2} parent=5 // pred_check_branch
        %2031 = sbr.rel (%p2029) target = $region94
      $region93: #{_lambda_.2} parent=5 // pred_region
        %s2032 = ssub.s32 %s11, 2
        // Predicated region
        $region95: #{_lambda_.2} parent=93 // pred_check
          %p2033 = pneg %p164
        $region96: #{_lambda_.2} parent=93 // pred_check_branch
          %2035 = sbr.rel (%p2033) target = $region98
        $region97: #{_lambda_.2} parent=93 // pred_region
          %s2036 = smul.u32 32, %s22
          %p2037 = scmp.lt.s32.totalorder %s2036, 63
          %s2038 = scalar_select %p2037, %s2036, 63
          %s2039 = smul.addr %s2038, 4
          %s2040 = scalar_lea.vmem %s5, %s2039
        $region98: #{_lambda_.2} parent=93 // pred_fallthru
          _
      $region94: #{_lambda_.2} parent=5 // pred_fallthru
        _
    $region6: #{_lambda_.2} parent=1 // loop_footer
      %s15 = sadd.s32 1, %s11
    $region7: #{_lambda_.2} parent=1 // loop_footer_branch
      %10 = sbr.rel target = $region3
    $region8: #{_lambda_.2} parent=1 // loop_exit
      _

</llo_original>
